<compile_context>
chip_gen: v5e
topology: v5e:2x2
jax: 0.10.0
libtpu: 0.0.40
codegen_flags: <defaults>
</compile_context>

<pallas_src>
import math

import jax
import jax.numpy as jnp
from jax import lax
from jax.experimental import pallas as pl
from jax.experimental.pallas import tpu as pltpu

# ----------------------- hyper-parameters (PyTorch defaults of the module) -----------------------
BATCH    = 2      # batch size of the example run
CIN      = 4      # n_inputs (input channels)
HW       = 16     # input spatial size (H = W)
KSIZE    = 5      # hparams['kernel_size'] default
HIDDEN   = 128    # hparams['hidden_dim'] default
NOUT     = 200    # self.n_outputs
NOUT_PAD = 256    # lane-dense padded head width (sliced back to NOUT in the wrapper)
BN_EPS   = 1e-5   # nn.BatchNorm2d default eps

# derived spatial sizes ("small" branch: valid convs, 2x2 max-pools)
H1   = HW - KSIZE + 1          # 12  conv1 output side
P1   = H1 // 2                 # 6   after MaxPool2d(2)
H2   = P1 - KSIZE + 1          # 2   conv2 output side (then MaxPool2d(2) -> 1x1)
TAPS = KSIZE * KSIZE           # 25

K1   = 128                     # conv1 im2col depth, padded 25*CIN=100 -> 128 (lane-dense)
PB   = P1 * P1                 # 36  pooled conv1 rows per batch (row = b*PB + a*P1 + bb)
NPH  = BATCH * PB              # 72  rows of each conv1 pooling phase
WIN  = (BATCH - 1) * PB + (H2 - 1) * P1 + H2   # 44  conv2 accumulator rows (flat-offset trick)
NM1  = WIN - P1                # 38  rows after the first (y2) pooling max
NM2  = NM1 - 1                 # 37  rows after the second (x2) pooling max

# static sanity checks for the flat-offset trick (no row carries, no out-of-range reads)
assert H1 % 2 == 0 and H2 == 2
assert TAPS * CIN <= K1
assert (KSIZE - 1) * P1 + (KSIZE - 1) + WIN <= NPH          # conv2 window slices stay in p1
assert (BATCH - 1) * PB + (H2 - 1) * P1 + (H2 - 1) < WIN    # all valid conv2 rows are computed
assert (BATCH - 1) * PB < NM2                               # feat rows exist after both maxes

_FLOPS = 2 * (4 * NPH * K1 * HIDDEN + WIN * TAPS * HIDDEN * HIDDEN + BATCH * HIDDEN * NOUT_PAD)
_BYTES = (4 * NPH * K1 * 4 + K1 * HIDDEN * 4 + HIDDEN * 4
          + TAPS * HIDDEN * HIDDEN * 2 + HIDDEN * 4
          + HIDDEN * NOUT_PAD * 4 + NOUT_PAD * 4 + BATCH * NOUT_PAD * 4)


# ------------------------------------------ kernel -----------------------------------------------
def cnn_kernel(x1_ref, w1_ref, b1_ref, w2_hbm, b2_ref, wl_ref, bl_ref, out_ref,
               p1_ref, w2_vmem, w2_sem):
    """Whole forward pass for the full batch in one invocation (no grid).

    x1_ref : (4*NPH, K1)   f32   conv1 im2col LHS, one 72-row slab per 2x2 pooling phase
    w1_ref : (K1, HIDDEN)  f32   conv1 weights (BN folded), im2col layout, zero-padded rows
    b1_ref : (1, HIDDEN)   f32   conv1 bias    (BN folded)
    w2_hbm : (KSIZE, KSIZE*HIDDEN, HIDDEN) bf16  conv2 weights (BN folded), kh-major — in HBM
    b2_ref : (1, HIDDEN)   f32   conv2 bias    (BN folded)
    wl_ref : (HIDDEN, NOUT_PAD) f32,  bl_ref: (1, NOUT_PAD) f32   classifier head (zero-padded)
    out_ref: (BATCH, NOUT_PAD) f32
    p1_ref : VMEM scratch (NPH, HIDDEN) f32    pooled conv1 activations
    w2_vmem: VMEM scratch, landing buffer for w2;  w2_sem: DMA semaphore
    """
    # Kick off the w2 HBM->VMEM copy immediately so it overlaps the conv1 compute.
    w2_copy = pltpu.make_async_copy(w2_hbm, w2_vmem, w2_sem)
    w2_copy.start()

    # ---- conv1 (+folded BN) + 2x2 max-pool: one im2col matmul over all 4 pooling phases ------
    c1 = jnp.dot(x1_ref[...], w1_ref[...], preferred_element_type=jnp.float32)  # (4*NPH, HIDDEN)
    pooled = jnp.maximum(jnp.maximum(c1[0 * NPH:1 * NPH, :], c1[1 * NPH:2 * NPH, :]),
                         jnp.maximum(c1[2 * NPH:3 * NPH, :], c1[3 * NPH:4 * NPH, :]))
    # bias + ReLU after the max (per-channel shift and monotone ReLU commute with max-pool)
    p1_ref[...] = jnp.maximum(pooled + b1_ref[...], 0.0)                        # (NPH, HIDDEN)

    w2_copy.wait()   # conv2 weights must be resident from here on

    # ---- conv2 (+folded BN): 5 wide-K (K=640) matmuls, taps grouped by kh --------------------
    # acc2 row j = b*PB + y2*P1 + x2 holds conv2[b, y2, x2, :]; other rows are garbage and are
    # never read.  Each kh group concatenates the 5 kw-shifted (WIN,128) windows along lanes.
    acc2 = jnp.zeros((WIN, HIDDEN), jnp.float32)
    for kh in range(KSIZE):
        lhs = jnp.concatenate(
            [p1_ref[pl.ds(kh * P1 + kw, WIN), :] for kw in range(KSIZE)], axis=-1)
        acc2 = acc2 + jnp.dot(lhs.astype(jnp.bfloat16), w2_vmem[kh],
                              preferred_element_type=jnp.float32)

    # ---- 2x2 max-pool of the 2x2 conv2 map (-> 1x1): two slab-wide offset maxima -------------
    m = jnp.maximum(acc2[0:NM1, :], acc2[P1:P1 + NM1, :])      # max over y2 (rows j, j+P1)
    m = jnp.maximum(m[0:NM2, :], m[1:1 + NM2, :])              # max over x2 (rows j, j+1)
    feat = jnp.concatenate([m[b * PB:b * PB + 1, :] for b in range(BATCH)], axis=0)
    feat = jnp.maximum(feat + b2_ref[...], 0.0)                # (BATCH, HIDDEN); bias+ReLU after max
    # AdaptiveAvgPool2d(1) of a 1x1 map is the identity; squeeze is implicit in the row layout.

    # ---- classifier head: Linear(HIDDEN -> NOUT_PAD) + ReLU (Identity is a no-op) -------------
    logits = jnp.dot(feat, wl_ref[...], preferred_element_type=jnp.float32) + bl_ref[...]
    out_ref[...] = jnp.maximum(logits, 0.0)                    # single lane-dense (B, 256) store


# ------------------------------------------ wrapper ----------------------------------------------
def _pack_input(x_nchw):
    """NCHW input -> conv1 im2col LHS (4*NPH, K1), one 72-row slab per 2x2 pooling phase."""
    x = jnp.transpose(x_nchw, (0, 2, 3, 1))                                   # (B, 16, 16, CIN)
    taps = [x[:, kh:kh + H1, kw:kw + H1, :] for kh in range(KSIZE) for kw in range(KSIZE)]
    pat = jnp.stack(taps, axis=3).reshape(BATCH, H1, H1, TAPS * CIN)          # (B,12,12,100)
    phases = [pat[:, ro::2, co::2, :].reshape(NPH, TAPS * CIN)
              for ro in range(2) for co in range(2)]
    lhs1 = jnp.concatenate(phases, axis=0)                                    # (4*NPH, 100)
    return jnp.pad(lhs1, ((0, 0), (0, K1 - TAPS * CIN)))                      # (4*NPH, 128)


@jax.jit
def cnn_forward(x, packed):
    """x: (BATCH, CIN, HW, HW) float32 (NCHW as in PyTorch) -> logits (BATCH, NOUT)."""
    x1 = _pack_input(x)
    out = pl.pallas_call(
        cnn_kernel,
        out_shape=jax.ShapeDtypeStruct((BATCH, NOUT_PAD), jnp.float32),
        in_specs=[
            pl.BlockSpec(memory_space=pltpu.MemorySpace.VMEM),   # x1 (im2col LHS)
            pl.BlockSpec(memory_space=pltpu.MemorySpace.VMEM),   # w1
            pl.BlockSpec(memory_space=pltpu.MemorySpace.VMEM),   # b1
            pl.BlockSpec(memory_space=pl.ANY),                   # w2 stays in HBM (manual DMA)
            pl.BlockSpec(memory_space=pltpu.MemorySpace.VMEM),   # b2
            pl.BlockSpec(memory_space=pltpu.MemorySpace.VMEM),   # wl
            pl.BlockSpec(memory_space=pltpu.MemorySpace.VMEM),   # bl
        ],
        out_specs=pl.BlockSpec(memory_space=pltpu.MemorySpace.VMEM),
        scratch_shapes=[
            pltpu.VMEM((NPH, HIDDEN), jnp.float32),                        # pooled conv1 acts
            pltpu.VMEM((KSIZE, KSIZE * HIDDEN, HIDDEN), jnp.bfloat16),     # w2 landing buffer
            pltpu.SemaphoreType.DMA(()),                                   # w2 copy semaphore
        ],
        cost_estimate=pl.CostEstimate(flops=_FLOPS, transcendentals=0, bytes_accessed=_BYTES),
    )(x1, packed["w1"], packed["b1"], packed["w2"], packed["b2"],
      packed["wl"], packed["bl"])
    return out[:, :NOUT]


# ------------------------------------- parameters ------------------------------------------------
def make_raw_params(key):
    ks = jax.random.split(key, 14)

    def u(k, shape, bound):
        return jax.random.uniform(k, shape, jnp.float32, -bound, bound)

    bc1 = 1.0 / math.sqrt(CIN * KSIZE * KSIZE)
    bc2 = 1.0 / math.sqrt(HIDDEN * KSIZE * KSIZE)
    bfc = 1.0 / math.sqrt(HIDDEN)
    return {
        "conv1_w": u(ks[0], (HIDDEN, CIN, KSIZE, KSIZE), bc1),
        "conv1_b": u(ks[1], (HIDDEN,), bc1),
        "bn1_g": 1.0 + 0.1 * jax.random.normal(ks[2], (HIDDEN,), jnp.float32),
        "bn1_b": 0.1 * jax.random.normal(ks[3], (HIDDEN,), jnp.float32),
        "bn1_m": 0.1 * jax.random.normal(ks[4], (HIDDEN,), jnp.float32),
        "bn1_v": jax.random.uniform(ks[5], (HIDDEN,), jnp.float32, 0.5, 1.5),
        "conv2_w": u(ks[6], (HIDDEN, HIDDEN, KSIZE, KSIZE), bc2),
        "conv2_b": u(ks[7], (HIDDEN,), bc2),
        "bn2_g": 1.0 + 0.1 * jax.random.normal(ks[8], (HIDDEN,), jnp.float32),
        "bn2_b": 0.1 * jax.random.normal(ks[9], (HIDDEN,), jnp.float32),
        "bn2_m": 0.1 * jax.random.normal(ks[10], (HIDDEN,), jnp.float32),
        "bn2_v": jax.random.uniform(ks[11], (HIDDEN,), jnp.float32, 0.5, 1.5),
        "fc_w": u(ks[12], (NOUT, HIDDEN), bfc),
        "fc_b": u(ks[13], (NOUT,), bfc),
    }


def _fold_conv_bn(w, b, gamma, beta, mean, var):
    """Fold eval-mode BatchNorm into the conv: returns (Cout,Cin,K,K) weight and (Cout,) bias."""
    scale = gamma / jnp.sqrt(var + BN_EPS)
    w_f = w * scale[:, None, None, None]
    b_f = (b - mean) * scale + beta
    return w_f, b_f


def pack_params(raw):
    # conv1: im2col layout (kh*K+kw)*CIN + c  ->  (K*K*CIN, HIDDEN), zero-padded to (K1, HIDDEN)
    w1f, b1f = _fold_conv_bn(raw["conv1_w"], raw["conv1_b"],
                             raw["bn1_g"], raw["bn1_b"], raw["bn1_m"], raw["bn1_v"])
    w1 = jnp.transpose(w1f, (2, 3, 1, 0)).reshape(TAPS * CIN, HIDDEN)
    w1 = jnp.pad(w1, ((0, K1 - TAPS * CIN), (0, 0)))

    # conv2: kh-major wide-K layout  w2[kh, kw*HIDDEN + cin, cout], stored bf16
    w2f, b2f = _fold_conv_bn(raw["conv2_w"], raw["conv2_b"],
                             raw["bn2_g"], raw["bn2_b"], raw["bn2_m"], raw["bn2_v"])
    w2 = jnp.transpose(w2f, (2, 3, 1, 0)).reshape(KSIZE, KSIZE * HIDDEN, HIDDEN)
    w2 = w2.astype(jnp.bfloat16)

    # classifier head, zero-padded to 256 output lanes
    wl = jnp.pad(raw["fc_w"].T, ((0, 0), (0, NOUT_PAD - NOUT)))
    bl = jnp.pad(raw["fc_b"], (0, NOUT_PAD - NOUT)).reshape(1, NOUT_PAD)

    return {"w1": w1, "b1": b1f.reshape(1, HIDDEN), "w2": w2,
            "b2": b2f.reshape(1, HIDDEN), "wl": wl, "bl": bl}


# --------------------------------- pure-XLA reference (validation) -------------------------------
def cnn_reference(x, raw):
    """Plain-JAX reference of the PyTorch forward (eval-mode BatchNorm)."""
    def block(h, w, b, g, bt, mu, var):
        out = lax.conv_general_dilated(h, w, (1, 1), "VALID",
                                       dimension_numbers=("NCHW", "OIHW", "NCHW"),
                                       precision=lax.Precision.HIGHEST)
        out = out + b[None, :, None, None]
        scale = (g / jnp.sqrt(var + BN_EPS))[None, :, None, None]
        out = (out - mu[None, :, None, None]) * scale + bt[None, :, None, None]
        out = jnp.maximum(out, 0.0)
        return lax.reduce_window(out, -jnp.inf, lax.max, (1, 1, 2, 2), (1, 1, 2, 2), "VALID")

    h = block(x, raw["conv1_w"], raw["conv1_b"], raw["bn1_g"], raw["bn1_b"], raw["bn1_m"], raw["bn1_v"])
    h = block(h, raw["conv2_w"], raw["conv2_b"], raw["bn2_g"], raw["bn2_b"], raw["bn2_m"], raw["bn2_v"])
    h = jnp.mean(h, axis=(2, 3))                                          # AdaptiveAvgPool2d(1) + squeeze
    h = jnp.dot(h, raw["fc_w"].T, precision=lax.Precision.HIGHEST) + raw["fc_b"]
    return jnp.maximum(h, 0.0)


# --------------------------------------------- main ----------------------------------------------
if __name__ == "__main__":
    key = jax.random.PRNGKey(0)
    k_x, k_p = jax.random.split(key)
    x = jax.random.normal(k_x, (BATCH, CIN, HW, HW), jnp.float32)
    raw = make_raw_params(k_p)
    packed = pack_params(raw)

    logits = cnn_forward(x, packed)
    jax.block_until_ready(logits)
    assert logits.shape == (BATCH, NOUT)
    assert bool(jnp.all(jnp.isfinite(logits)))

    # sanity check against a plain-XLA f32 reference of the same (eval-mode) forward pass.
    # Tolerance accounts for the bf16 conv2 weights/activations (f32 accumulation) in the kernel.
    ref = cnn_reference(x, raw)
    err = float(jnp.max(jnp.abs(logits - ref)))
    assert err < 3e-2, f"kernel/reference mismatch: max abs err = {err}"

    print("KERNEL_OK")
</pallas_src>

<mosaic_0001>
module attributes {stable_mosaic.version = 11 : i64} {
  func.func @cnn_kernel(%arg0: memref<288x128xf32, #tpu.memory_space<vmem>>, %arg1: memref<128x128xf32, #tpu.memory_space<vmem>>, %arg2: memref<1x128xf32, #tpu.memory_space<vmem>>, %arg3: memref<5x640x128xbf16, #tpu.memory_space<any>>, %arg4: memref<1x128xf32, #tpu.memory_space<vmem>>, %arg5: memref<128x256xf32, #tpu.memory_space<vmem>>, %arg6: memref<1x256xf32, #tpu.memory_space<vmem>>, %arg7: memref<2x256xf32, #tpu.memory_space<vmem>>, %arg8: memref<72x128xf32, #tpu.memory_space<vmem>>, %arg9: memref<5x640x128xbf16, #tpu.memory_space<vmem>>, %arg10: memref<!tpu.dma_semaphore, #tpu.memory_space<semaphore_mem>>) attributes {dimension_semantics = [], scalar_prefetch = 0 : i64, scratch_operands = 3 : i64, tpu.core_type = #tpu.core_type<tc>} {
    tpu.enqueue_dma source(%arg3 : memref<5x640x128xbf16, #tpu.memory_space<any>>) target(%arg9 : memref<5x640x128xbf16, #tpu.memory_space<vmem>>) target_semaphore(%arg10 : memref<!tpu.dma_semaphore, #tpu.memory_space<semaphore_mem>>)
    %c0 = arith.constant 0 : index
    %c0_0 = arith.constant 0 : index
    %0 = vector.load %arg0[%c0, %c0_0] : memref<288x128xf32, #tpu.memory_space<vmem>>, vector<288x128xf32>
    %c0_1 = arith.constant 0 : index
    %c0_2 = arith.constant 0 : index
    %1 = vector.load %arg1[%c0_1, %c0_2] : memref<128x128xf32, #tpu.memory_space<vmem>>, vector<128x128xf32>
    %cst = arith.constant dense<0.000000e+00> : vector<288x128xf32>
    %2 = tpu.matmul %0, %1, %cst {dimension_numbers = #tpu.dot_dimension_numbers<[1], [0], [0], [1], [0, 0, 1, 1], [], []>} : vector<288x128xf32>, vector<128x128xf32>, vector<288x128xf32> -> vector<288x128xf32>
    %3 = vector.extract_strided_slice %2 {offsets = [0, 0], sizes = [72, 128], strides = [1, 1]} : vector<288x128xf32> to vector<72x128xf32>
    %4 = vector.extract_strided_slice %2 {offsets = [72, 0], sizes = [72, 128], strides = [1, 1]} : vector<288x128xf32> to vector<72x128xf32>
    %5 = arith.maximumf %3, %4 : vector<72x128xf32>
    %6 = vector.extract_strided_slice %2 {offsets = [144, 0], sizes = [72, 128], strides = [1, 1]} : vector<288x128xf32> to vector<72x128xf32>
    %7 = vector.extract_strided_slice %2 {offsets = [216, 0], sizes = [72, 128], strides = [1, 1]} : vector<288x128xf32> to vector<72x128xf32>
    %8 = arith.maximumf %6, %7 : vector<72x128xf32>
    %9 = arith.maximumf %5, %8 : vector<72x128xf32>
    %c0_3 = arith.constant 0 : index
    %c0_4 = arith.constant 0 : index
    %10 = vector.load %arg2[%c0_3, %c0_4] : memref<1x128xf32, #tpu.memory_space<vmem>>, vector<1x128xf32>
    %11 = vector.broadcast %10 : vector<1x128xf32> to vector<72x128xf32>
    %12 = arith.addf %9, %11 : vector<72x128xf32>
    %cst_5 = arith.constant 0.000000e+00 : f32
    %13 = vector.broadcast %cst_5 : f32 to vector<72x128xf32>
    %14 = arith.maximumf %12, %13 : vector<72x128xf32>
    %c0_6 = arith.constant 0 : index
    %c0_7 = arith.constant 0 : index
    %15 = vector.load %arg8[%c0_6, %c0_7] : memref<72x128xf32, #tpu.memory_space<vmem>>, vector<72x128xf32>
    tpu.vector_store %arg8[%c0_6, %c0_7], %14 {strides = array<i32>} : memref<72x128xf32, #tpu.memory_space<vmem>>, vector<72x128xf32>,
    tpu.wait_dma2 semaphore(%arg10 : memref<!tpu.dma_semaphore, #tpu.memory_space<semaphore_mem>>) src(%arg3 : memref<5x640x128xbf16, #tpu.memory_space<any>>) dst(%arg9 : memref<5x640x128xbf16, #tpu.memory_space<vmem>>)
    %cst_8 = arith.constant 0.000000e+00 : f32
    %16 = vector.broadcast %cst_8 : f32 to vector<44x128xf32>
    %c0_9 = arith.constant 0 : index
    %c0_10 = arith.constant 0 : index
    %17 = vector.load %arg8[%c0_9, %c0_10] : memref<72x128xf32, #tpu.memory_space<vmem>>, vector<44x128xf32>
    %c1 = arith.constant 1 : index
    %c0_11 = arith.constant 0 : index
    %18 = vector.load %arg8[%c1, %c0_11] : memref<72x128xf32, #tpu.memory_space<vmem>>, vector<44x128xf32>
    %c2 = arith.constant 2 : index
    %c0_12 = arith.constant 0 : index
    %19 = vector.load %arg8[%c2, %c0_12] : memref<72x128xf32, #tpu.memory_space<vmem>>, vector<44x128xf32>
    %c3 = arith.constant 3 : index
    %c0_13 = arith.constant 0 : index
    %20 = vector.load %arg8[%c3, %c0_13] : memref<72x128xf32, #tpu.memory_space<vmem>>, vector<44x128xf32>
    %c4 = arith.constant 4 : index
    %c0_14 = arith.constant 0 : index
    %21 = vector.load %arg8[%c4, %c0_14] : memref<72x128xf32, #tpu.memory_space<vmem>>, vector<44x128xf32>
    %22 = tpu.concatenate %17, %18, %19, %20, %21 in 1 : vector<44x128xf32>, vector<44x128xf32>, vector<44x128xf32>, vector<44x128xf32>, vector<44x128xf32> -> vector<44x640xf32>
    %23 = arith.truncf %22 : vector<44x640xf32> to vector<44x640xbf16>
    %c0_15 = arith.constant 0 : index
    %c0_16 = arith.constant 0 : index
    %c0_17 = arith.constant 0 : index
    %24 = vector.load %arg9[%c0_15, %c0_16, %c0_17] : memref<5x640x128xbf16, #tpu.memory_space<vmem>>, vector<1x640x128xbf16>
    %25 = vector.shape_cast %24 : vector<1x640x128xbf16> to vector<640x128xbf16>
    %cst_18 = arith.constant dense<0.000000e+00> : vector<44x128xf32>
    %26 = tpu.matmul %23, %25, %cst_18 {dimension_numbers = #tpu.dot_dimension_numbers<[1], [0], [0], [1], [0, 0, 1, 1], [], []>} : vector<44x640xbf16>, vector<640x128xbf16>, vector<44x128xf32> -> vector<44x128xf32>
    %27 = arith.addf %16, %26 : vector<44x128xf32>
    %c6 = arith.constant 6 : index
    %c0_19 = arith.constant 0 : index
    %28 = vector.load %arg8[%c6, %c0_19] : memref<72x128xf32, #tpu.memory_space<vmem>>, vector<44x128xf32>
    %c7 = arith.constant 7 : index
    %c0_20 = arith.constant 0 : index
    %29 = vector.load %arg8[%c7, %c0_20] : memref<72x128xf32, #tpu.memory_space<vmem>>, vector<44x128xf32>
    %c8 = arith.constant 8 : index
    %c0_21 = arith.constant 0 : index
    %30 = vector.load %arg8[%c8, %c0_21] : memref<72x128xf32, #tpu.memory_space<vmem>>, vector<44x128xf32>
    %c9 = arith.constant 9 : index
    %c0_22 = arith.constant 0 : index
    %31 = vector.load %arg8[%c9, %c0_22] : memref<72x128xf32, #tpu.memory_space<vmem>>, vector<44x128xf32>
    %c10 = arith.constant 10 : index
    %c0_23 = arith.constant 0 : index
    %32 = vector.load %arg8[%c10, %c0_23] : memref<72x128xf32, #tpu.memory_space<vmem>>, vector<44x128xf32>
    %33 = tpu.concatenate %28, %29, %30, %31, %32 in 1 : vector<44x128xf32>, vector<44x128xf32>, vector<44x128xf32>, vector<44x128xf32>, vector<44x128xf32> -> vector<44x640xf32>
    %34 = arith.truncf %33 : vector<44x640xf32> to vector<44x640xbf16>
    %c1_24 = arith.constant 1 : index
    %c0_25 = arith.constant 0 : index
    %c0_26 = arith.constant 0 : index
    %35 = vector.load %arg9[%c1_24, %c0_25, %c0_26] : memref<5x640x128xbf16, #tpu.memory_space<vmem>>, vector<1x640x128xbf16>
    %36 = vector.shape_cast %35 : vector<1x640x128xbf16> to vector<640x128xbf16>
    %cst_27 = arith.constant dense<0.000000e+00> : vector<44x128xf32>
    %37 = tpu.matmul %34, %36, %cst_27 {dimension_numbers = #tpu.dot_dimension_numbers<[1], [0], [0], [1], [0, 0, 1, 1], [], []>} : vector<44x640xbf16>, vector<640x128xbf16>, vector<44x128xf32> -> vector<44x128xf32>
    %38 = arith.addf %27, %37 : vector<44x128xf32>
    %c12 = arith.constant 12 : index
    %c0_28 = arith.constant 0 : index
    %39 = vector.load %arg8[%c12, %c0_28] : memref<72x128xf32, #tpu.memory_space<vmem>>, vector<44x128xf32>
    %c13 = arith.constant 13 : index
    %c0_29 = arith.constant 0 : index
    %40 = vector.load %arg8[%c13, %c0_29] : memref<72x128xf32, #tpu.memory_space<vmem>>, vector<44x128xf32>
    %c14 = arith.constant 14 : index
    %c0_30 = arith.constant 0 : index
    %41 = vector.load %arg8[%c14, %c0_30] : memref<72x128xf32, #tpu.memory_space<vmem>>, vector<44x128xf32>
    %c15 = arith.constant 15 : index
    %c0_31 = arith.constant 0 : index
    %42 = vector.load %arg8[%c15, %c0_31] : memref<72x128xf32, #tpu.memory_space<vmem>>, vector<44x128xf32>
    %c16 = arith.constant 16 : index
    %c0_32 = arith.constant 0 : index
    %43 = vector.load %arg8[%c16, %c0_32] : memref<72x128xf32, #tpu.memory_space<vmem>>, vector<44x128xf32>
    %44 = tpu.concatenate %39, %40, %41, %42, %43 in 1 : vector<44x128xf32>, vector<44x128xf32>, vector<44x128xf32>, vector<44x128xf32>, vector<44x128xf32> -> vector<44x640xf32>
    %45 = arith.truncf %44 : vector<44x640xf32> to vector<44x640xbf16>
    %c2_33 = arith.constant 2 : index
    %c0_34 = arith.constant 0 : index
    %c0_35 = arith.constant 0 : index
    %46 = vector.load %arg9[%c2_33, %c0_34, %c0_35] : memref<5x640x128xbf16, #tpu.memory_space<vmem>>, vector<1x640x128xbf16>
    %47 = vector.shape_cast %46 : vector<1x640x128xbf16> to vector<640x128xbf16>
    %cst_36 = arith.constant dense<0.000000e+00> : vector<44x128xf32>
    %48 = tpu.matmul %45, %47, %cst_36 {dimension_numbers = #tpu.dot_dimension_numbers<[1], [0], [0], [1], [0, 0, 1, 1], [], []>} : vector<44x640xbf16>, vector<640x128xbf16>, vector<44x128xf32> -> vector<44x128xf32>
    %49 = arith.addf %38, %48 : vector<44x128xf32>
    %c18 = arith.constant 18 : index
    %c0_37 = arith.constant 0 : index
    %50 = vector.load %arg8[%c18, %c0_37] : memref<72x128xf32, #tpu.memory_space<vmem>>, vector<44x128xf32>
    %c19 = arith.constant 19 : index
    %c0_38 = arith.constant 0 : index
    %51 = vector.load %arg8[%c19, %c0_38] : memref<72x128xf32, #tpu.memory_space<vmem>>, vector<44x128xf32>
    %c20 = arith.constant 20 : index
    %c0_39 = arith.constant 0 : index
    %52 = vector.load %arg8[%c20, %c0_39] : memref<72x128xf32, #tpu.memory_space<vmem>>, vector<44x128xf32>
    %c21 = arith.constant 21 : index
    %c0_40 = arith.constant 0 : index
    %53 = vector.load %arg8[%c21, %c0_40] : memref<72x128xf32, #tpu.memory_space<vmem>>, vector<44x128xf32>
    %c22 = arith.constant 22 : index
    %c0_41 = arith.constant 0 : index
    %54 = vector.load %arg8[%c22, %c0_41] : memref<72x128xf32, #tpu.memory_space<vmem>>, vector<44x128xf32>
    %55 = tpu.concatenate %50, %51, %52, %53, %54 in 1 : vector<44x128xf32>, vector<44x128xf32>, vector<44x128xf32>, vector<44x128xf32>, vector<44x128xf32> -> vector<44x640xf32>
    %56 = arith.truncf %55 : vector<44x640xf32> to vector<44x640xbf16>
    %c3_42 = arith.constant 3 : index
    %c0_43 = arith.constant 0 : index
    %c0_44 = arith.constant 0 : index
    %57 = vector.load %arg9[%c3_42, %c0_43, %c0_44] : memref<5x640x128xbf16, #tpu.memory_space<vmem>>, vector<1x640x128xbf16>
    %58 = vector.shape_cast %57 : vector<1x640x128xbf16> to vector<640x128xbf16>
    %cst_45 = arith.constant dense<0.000000e+00> : vector<44x128xf32>
    %59 = tpu.matmul %56, %58, %cst_45 {dimension_numbers = #tpu.dot_dimension_numbers<[1], [0], [0], [1], [0, 0, 1, 1], [], []>} : vector<44x640xbf16>, vector<640x128xbf16>, vector<44x128xf32> -> vector<44x128xf32>
    %60 = arith.addf %49, %59 : vector<44x128xf32>
    %c24 = arith.constant 24 : index
    %c0_46 = arith.constant 0 : index
    %61 = vector.load %arg8[%c24, %c0_46] : memref<72x128xf32, #tpu.memory_space<vmem>>, vector<44x128xf32>
    %c25 = arith.constant 25 : index
    %c0_47 = arith.constant 0 : index
    %62 = vector.load %arg8[%c25, %c0_47] : memref<72x128xf32, #tpu.memory_space<vmem>>, vector<44x128xf32>
    %c26 = arith.constant 26 : index
    %c0_48 = arith.constant 0 : index
    %63 = vector.load %arg8[%c26, %c0_48] : memref<72x128xf32, #tpu.memory_space<vmem>>, vector<44x128xf32>
    %c27 = arith.constant 27 : index
    %c0_49 = arith.constant 0 : index
    %64 = vector.load %arg8[%c27, %c0_49] : memref<72x128xf32, #tpu.memory_space<vmem>>, vector<44x128xf32>
    %c28 = arith.constant 28 : index
    %c0_50 = arith.constant 0 : index
    %65 = vector.load %arg8[%c28, %c0_50] : memref<72x128xf32, #tpu.memory_space<vmem>>, vector<44x128xf32>
    %66 = tpu.concatenate %61, %62, %63, %64, %65 in 1 : vector<44x128xf32>, vector<44x128xf32>, vector<44x128xf32>, vector<44x128xf32>, vector<44x128xf32> -> vector<44x640xf32>
    %67 = arith.truncf %66 : vector<44x640xf32> to vector<44x640xbf16>
    %c4_51 = arith.constant 4 : index
    %c0_52 = arith.constant 0 : index
    %c0_53 = arith.constant 0 : index
    %68 = vector.load %arg9[%c4_51, %c0_52, %c0_53] : memref<5x640x128xbf16, #tpu.memory_space<vmem>>, vector<1x640x128xbf16>
    %69 = vector.shape_cast %68 : vector<1x640x128xbf16> to vector<640x128xbf16>
    %cst_54 = arith.constant dense<0.000000e+00> : vector<44x128xf32>
    %70 = tpu.matmul %67, %69, %cst_54 {dimension_numbers = #tpu.dot_dimension_numbers<[1], [0], [0], [1], [0, 0, 1, 1], [], []>} : vector<44x640xbf16>, vector<640x128xbf16>, vector<44x128xf32> -> vector<44x128xf32>
    %71 = arith.addf %60, %70 : vector<44x128xf32>
    %72 = vector.extract_strided_slice %71 {offsets = [0, 0], sizes = [38, 128], strides = [1, 1]} : vector<44x128xf32> to vector<38x128xf32>
    %73 = vector.extract_strided_slice %71 {offsets = [6, 0], sizes = [38, 128], strides = [1, 1]} : vector<44x128xf32> to vector<38x128xf32>
    %74 = arith.maximumf %72, %73 : vector<38x128xf32>
    %75 = vector.extract_strided_slice %74 {offsets = [0, 0], sizes = [37, 128], strides = [1, 1]} : vector<38x128xf32> to vector<37x128xf32>
    %76 = vector.extract_strided_slice %74 {offsets = [1, 0], sizes = [37, 128], strides = [1, 1]} : vector<38x128xf32> to vector<37x128xf32>
    %77 = arith.maximumf %75, %76 : vector<37x128xf32>
    %78 = vector.extract_strided_slice %77 {offsets = [0, 0], sizes = [1, 128], strides = [1, 1]} : vector<37x128xf32> to vector<1x128xf32>
    %79 = vector.extract_strided_slice %77 {offsets = [36, 0], sizes = [1, 128], strides = [1, 1]} : vector<37x128xf32> to vector<1x128xf32>
    %80 = tpu.concatenate %78, %79 in 0 : vector<1x128xf32>, vector<1x128xf32> -> vector<2x128xf32>
    %c0_55 = arith.constant 0 : index
    %c0_56 = arith.constant 0 : index
    %81 = vector.load %arg4[%c0_55, %c0_56] : memref<1x128xf32, #tpu.memory_space<vmem>>, vector<1x128xf32>
    %82 = vector.broadcast %81 : vector<1x128xf32> to vector<2x128xf32>
    %83 = arith.addf %80, %82 : vector<2x128xf32>
    %cst_57 = arith.constant 0.000000e+00 : f32
    %84 = vector.broadcast %cst_57 : f32 to vector<2x128xf32>
    %85 = arith.maximumf %83, %84 : vector<2x128xf32>
    %c0_58 = arith.constant 0 : index
    %c0_59 = arith.constant 0 : index
    %86 = vector.load %arg5[%c0_58, %c0_59] : memref<128x256xf32, #tpu.memory_space<vmem>>, vector<128x256xf32>
    %cst_60 = arith.constant dense<0.000000e+00> : vector<2x256xf32>
    %87 = tpu.matmul %85, %86, %cst_60 {dimension_numbers = #tpu.dot_dimension_numbers<[1], [0], [0], [1], [0, 0, 1, 1], [], []>} : vector<2x128xf32>, vector<128x256xf32>, vector<2x256xf32> -> vector<2x256xf32>
    %c0_61 = arith.constant 0 : index
    %c0_62 = arith.constant 0 : index
    %88 = vector.load %arg6[%c0_61, %c0_62] : memref<1x256xf32, #tpu.memory_space<vmem>>, vector<1x256xf32>
    %89 = vector.broadcast %88 : vector<1x256xf32> to vector<2x256xf32>
    %90 = arith.addf %87, %89 : vector<2x256xf32>
    %cst_63 = arith.constant 0.000000e+00 : f32
    %91 = vector.broadcast %cst_63 : f32 to vector<2x256xf32>
    %92 = arith.maximumf %90, %91 : vector<2x256xf32>
    %c0_64 = arith.constant 0 : index
    %c0_65 = arith.constant 0 : index
    %93 = vector.load %arg7[%c0_64, %c0_65] : memref<2x256xf32, #tpu.memory_space<vmem>>, vector<2x256xf32>
    tpu.vector_store %arg7[%c0_64, %c0_65], %92 {strides = array<i32>} : memref<2x256xf32, #tpu.memory_space<vmem>>, vector<2x256xf32>,
    return
  }
}

</mosaic_0001>

<llo_original>
// kernel: cnn_forward.1
$region0: #{cnn_forward.1}
  #allocation0 [shape = 'u32[]', space=smem, size = 0x4, offset = 0x4, fixed_abs, tag = 'smem constant byte address 0x4 - core index']
  #allocation1 [shape = 'u32[72,128]{1,0:T(1,128)}', space=vmem, size = 0x9000, scoped, tag = 'internal scratch']
  #allocation2 [shape = 'f32[72,128]{1,0:T(8,128)}', space=vmem, size = 0x9000, scoped, tag = 'scratch operand']
  #allocation3 [shape = 'bf16[5,640,128]{2,1,0:T(8,128)(2,1)}', space=vmem, size = 0xc8000, scoped, tag = 'scratch operand']
  #allocation4 [shape = 's32[1]{0}', space=sflag, size = 0x4, scoped, tag = 'scratch operand']
  #allocation7 [shape = 's32[]', space=sflag, size = 0x4, offset = 0, fixed_abs, tag = 'sflag constant byte address 0x0 - dummy sync flag']
  %s0 = inlined_call_operand.vmem [shape: f32[288,128], index: 0, kind: input, shape index: {}]
  %s1 = inlined_call_operand.vmem [shape: f32[128,128], index: 1, kind: input, shape index: {}]
  %s2 = inlined_call_operand.vmem [shape: f32[1,128], index: 2, kind: input, shape index: {}]
  %s3 = inlined_call_operand.vmem [shape: bf16[5,640,128], index: 3, kind: input, shape index: {}]
  %s4 = inlined_call_operand.vmem [shape: f32[1,128], index: 4, kind: input, shape index: {}]
  %s5 = inlined_call_operand.vmem [shape: f32[128,256], index: 5, kind: input, shape index: {}]
  %s6 = inlined_call_operand.vmem [shape: f32[1,256], index: 6, kind: input, shape index: {}]
  %s7 = inlined_call_operand.hbm [shape: f32[2,256], index: 7, kind: output, shape index: {}]
  %s8 = sld [smem:[#allocation0]]
  $region53: #{cnn_forward.1} parent=0
    _
  %s10 = ssub.s32 1, %s8
  %s11 = scalar_select 0, %s10, %s8
  $region1: #{cnn_forward.1} parent=0
    #allocation5 [shape = 'u8[2048]{0}', space=vmem, size = 0x800, scoped, tag = 'output window, operand 0, single buffered']
    #allocation6 [shape = 's32[1]{0}', space=sflag, size = 0x4, scoped, tag = 'scoped memory for cnn_forward.1']
    %12 = vsyncpa [#allocation6], 0
    // Predicated region
    $region2: #{cnn_forward.1} parent=1 // pred_check
      _
    $region3: #{cnn_forward.1} parent=1 // pred_check_branch
      %14 = sbr.rel (0) target = $region5
    $region4: #{cnn_forward.1} parent=1 // pred_region
      _
    $region5: #{cnn_forward.1} parent=1 // pred_fallthru
      _
    // Predicated region
    $region6: #{cnn_forward.1} parent=1 // pred_check
      _
    $region7: #{cnn_forward.1} parent=1 // pred_check_branch
      %16 = sbr.rel (0) target = $region9
    $region8: #{cnn_forward.1} parent=1 // pred_region
      _
    $region9: #{cnn_forward.1} parent=1 // pred_fallthru
      _
    // Predicated region
    $region10: #{cnn_forward.1} parent=1 // pred_check
      _
    $region11: #{cnn_forward.1} parent=1 // pred_check_branch
      %18 = sbr.rel (0) target = $region13
    $region12: #{cnn_forward.1} parent=1 // pred_region
      _
    $region13: #{cnn_forward.1} parent=1 // pred_fallthru
      _
    // Predicated region
    $region14: #{cnn_forward.1} parent=1 // pred_check
      _
    $region15: #{cnn_forward.1} parent=1 // pred_check_branch
      %20 = sbr.rel (0) target = $region17
    $region16: #{cnn_forward.1} parent=1 // pred_region
      _
    $region17: #{cnn_forward.1} parent=1 // pred_fallthru
      _
    // Predicated region
    $region18: #{cnn_forward.1} parent=1 // pred_check
      _
    $region19: #{cnn_forward.1} parent=1 // pred_check_branch
      %22 = sbr.rel (0) target = $region21
    $region20: #{cnn_forward.1} parent=1 // pred_region
      _
    $region21: #{cnn_forward.1} parent=1 // pred_fallthru
      _
    // Predicated region
    $region22: #{cnn_forward.1} parent=1 // pred_check
      _
    $region23: #{cnn_forward.1} parent=1 // pred_check_branch
      %24 = sbr.rel (0) target = $region25
    $region24: #{cnn_forward.1} parent=1 // pred_region
      _
    $region25: #{cnn_forward.1} parent=1 // pred_fallthru
      _
    // Predicated region
    $region26: #{cnn_forward.1} parent=1 // pred_check
      _
    $region27: #{cnn_forward.1} parent=1 // pred_check_branch
      %26 = sbr.rel (0) target = $region29
    $region28: #{cnn_forward.1} parent=1 // pred_region
      loop: start=0, step=1, limit=1
      $region30: #{cnn_forward.1} parent=28 // loop_pre_header
        _
      $region31: #{cnn_forward.1} parent=28 // loop_header
        %s28 = sphi 0, %s32
        %p29 = scmp.ge.s32.totalorder %s28, 1
        %s33 = sphi %s3, %s3
        %s34 = sphi [#allocation3], [#allocation3]
      $region32: #{cnn_forward.1} parent=28 // loop_header_branch
        %31 = sbr.rel (%p29) target = $region36
      $region33: #{cnn_forward.1} parent=28 // loop_body
        %v35 = vld [vmem:[%s33] sm:$0xff]
        %36 = vst [vmem:[%s34] sm:$0xff] %v35
        %v37 = vld [vmem:[%s33 + $0x8] sm:$0xff]
        %38 = vst [vmem:[%s34 + $0x8] sm:$0xff] %v37
        %v39 = vld [vmem:[%s33 + $0x10] sm:$0xff]
        %40 = vst [vmem:[%s34 + $0x10] sm:$0xff] %v39
        %v41 = vld [vmem:[%s33 + $0x18] sm:$0xff]
        %42 = vst [vmem:[%s34 + $0x18] sm:$0xff] %v41
        %v43 = vld [vmem:[%s33 + $0x20] sm:$0xff]
        %44 = vst [vmem:[%s34 + $0x20] sm:$0xff] %v43
        %v45 = vld [vmem:[%s33 + $0x28] sm:$0xff]
        %46 = vst [vmem:[%s34 + $0x28] sm:$0xff] %v45
        %v47 = vld [vmem:[%s33 + $0x30] sm:$0xff]
        %48 = vst [vmem:[%s34 + $0x30] sm:$0xff] %v47
        %v49 = vld [vmem:[%s33 + $0x38] sm:$0xff]
        %50 = vst [vmem:[%s34 + $0x38] sm:$0xff] %v49
        %v51 = vld [vmem:[%s33 + $0x40] sm:$0xff]
        %52 = vst [vmem:[%s34 + $0x40] sm:$0xff] %v51
        %v53 = vld [vmem:[%s33 + $0x48] sm:$0xff]
        %54 = vst [vmem:[%s34 + $0x48] sm:$0xff] %v53
        %v55 = vld [vmem:[%s33 + $0x50] sm:$0xff]
        %56 = vst [vmem:[%s34 + $0x50] sm:$0xff] %v55
        %v57 = vld [vmem:[%s33 + $0x58] sm:$0xff]
        %58 = vst [vmem:[%s34 + $0x58] sm:$0xff] %v57
        %v59 = vld [vmem:[%s33 + $0x60] sm:$0xff]
        %60 = vst [vmem:[%s34 + $0x60] sm:$0xff] %v59
        %v61 = vld [vmem:[%s33 + $0x68] sm:$0xff]
        %62 = vst [vmem:[%s34 + $0x68] sm:$0xff] %v61
        %v63 = vld [vmem:[%s33 + $0x70] sm:$0xff]
        %64 = vst [vmem:[%s34 + $0x70] sm:$0xff] %v63
        %v65 = vld [vmem:[%s33 + $0x78] sm:$0xff]
        %66 = vst [vmem:[%s34 + $0x78] sm:$0xff] %v65
        %v67 = vld [vmem:[%s33 + $0x80] sm:$0xff]
        %68 = vst [vmem:[%s34 + $0x80] sm:$0xff] %v67
        %v69 = vld [vmem:[%s33 + $0x88] sm:$0xff]
        %70 = vst [vmem:[%s34 + $0x88] sm:$0xff] %v69
        %v71 = vld [vmem:[%s33 + $0x90] sm:$0xff]
        %72 = vst [vmem:[%s34 + $0x90] sm:$0xff] %v71
        %v73 = vld [vmem:[%s33 + $0x98] sm:$0xff]
        %74 = vst [vmem:[%s34 + $0x98] sm:$0xff] %v73
        %v75 = vld [vmem:[%s33 + $0xa0] sm:$0xff]
        %76 = vst [vmem:[%s34 + $0xa0] sm:$0xff] %v75
        %v77 = vld [vmem:[%s33 + $0xa8] sm:$0xff]
        %78 = vst [vmem:[%s34 + $0xa8] sm:$0xff] %v77
        %v79 = vld [vmem:[%s33 + $0xb0] sm:$0xff]
        %80 = vst [vmem:[%s34 + $0xb0] sm:$0xff] %v79
        %v81 = vld [vmem:[%s33 + $0xb8] sm:$0xff]
        %82 = vst [vmem:[%s34 + $0xb8] sm:$0xff] %v81
        %v83 = vld [vmem:[%s33 + $0xc0] sm:$0xff]
        %84 = vst [vmem:[%s34 + $0xc0] sm:$0xff] %v83
        %v85 = vld [vmem:[%s33 + $0xc8] sm:$0xff]
        %86 = vst [vmem:[%s34 + $0xc8] sm:$0xff] %v85
        %v87 = vld [vmem:[%s33 + $0xd0] sm:$0xff]
        %88 = vst [vmem:[%s34 + $0xd0] sm:$0xff] %v87
        %v89 = vld [vmem:[%s33 + $0xd8] sm:$0xff]
        %90 = vst [vmem:[%s34 + $0xd8] sm:$0xff] %v89
        %v91 = vld [vmem:[%s33 + $0xe0] sm:$0xff]
        %92 = vst [vmem:[%s34 + $0xe0] sm:$0xff] %v91
        %v93 = vld [vmem:[%s33 + $0xe8] sm:$0xff]
        %94 = vst [vmem:[%s34 + $0xe8] sm:$0xff] %v93
        %v95 = vld [vmem:[%s33 + $0xf0] sm:$0xff]
        %96 = vst [vmem:[%s34 + $0xf0] sm:$0xff] %v95
        %v97 = vld [vmem:[%s33 + $0xf8] sm:$0xff]
        %98 = vst [vmem:[%s34 + $0xf8] sm:$0xff] %v97
        %v99 = vld [vmem:[%s33 + $0x100] sm:$0xff]
        %100 = vst [vmem:[%s34 + $0x100] sm:$0xff] %v99
        %v101 = vld [vmem:[%s33 + $0x108] sm:$0xff]
        %102 = vst [vmem:[%s34 + $0x108] sm:$0xff] %v101
        %v103 = vld [vmem:[%s33 + $0x110] sm:$0xff]
        %104 = vst [vmem:[%s34 + $0x110] sm:$0xff] %v103
        %v105 = vld [vmem:[%s33 + $0x118] sm:$0xff]
        %106 = vst [vmem:[%s34 + $0x118] sm:$0xff] %v105
        %v107 = vld [vmem:[%s33 + $0x120] sm:$0xff]
        %108 = vst [vmem:[%s34 + $0x120] sm:$0xff] %v107
        %v109 = vld [vmem:[%s33 + $0x128] sm:$0xff]
        %110 = vst [vmem:[%s34 + $0x128] sm:$0xff] %v109
        %v111 = vld [vmem:[%s33 + $0x130] sm:$0xff]
        %112 = vst [vmem:[%s34 + $0x130] sm:$0xff] %v111
        %v113 = vld [vmem:[%s33 + $0x138] sm:$0xff]
        %114 = vst [vmem:[%s34 + $0x138] sm:$0xff] %v113
        %v115 = vld [vmem:[%s33 + $0x140] sm:$0xff]
        %116 = vst [vmem:[%s34 + $0x140] sm:$0xff] %v115
        %v117 = vld [vmem:[%s33 + $0x148] sm:$0xff]
        %118 = vst [vmem:[%s34 + $0x148] sm:$0xff] %v117
        %v119 = vld [vmem:[%s33 + $0x150] sm:$0xff]
        %120 = vst [vmem:[%s34 + $0x150] sm:$0xff] %v119
        %v121 = vld [vmem:[%s33 + $0x158] sm:$0xff]
        %122 = vst [vmem:[%s34 + $0x158] sm:$0xff] %v121
        %v123 = vld [vmem:[%s33 + $0x160] sm:$0xff]
        %124 = vst [vmem:[%s34 + $0x160] sm:$0xff] %v123
        %v125 = vld [vmem:[%s33 + $0x168] sm:$0xff]
        %126 = vst [vmem:[%s34 + $0x168] sm:$0xff] %v125
        %v127 = vld [vmem:[%s33 + $0x170] sm:$0xff]
        %128 = vst [vmem:[%s34 + $0x170] sm:$0xff] %v127
        %v129 = vld [vmem:[%s33 + $0x178] sm:$0xff]
        %130 = vst [vmem:[%s34 + $0x178] sm:$0xff] %v129
        %v131 = vld [vmem:[%s33 + $0x180] sm:$0xff]
        %132 = vst [vmem:[%s34 + $0x180] sm:$0xff] %v131
        %v133 = vld [vmem:[%s33 + $0x188] sm:$0xff]
        %134 = vst [vmem:[%s34 + $0x188] sm:$0xff] %v133
        %v135 = vld [vmem:[%s33 + $0x190] sm:$0xff]
        %136 = vst [vmem:[%s34 + $0x190] sm:$0xff] %v135
        %v137 = vld [vmem:[%s33 + $0x198] sm:$0xff]
        %138 = vst [vmem:[%s34 + $0x198] sm:$0xff] %v137
        %v139 = vld [vmem:[%s33 + $0x1a0] sm:$0xff]
        %140 = vst [vmem:[%s34 + $0x1a0] sm:$0xff] %v139
        %v141 = vld [vmem:[%s33 + $0x1a8] sm:$0xff]
        %142 = vst [vmem:[%s34 + $0x1a8] sm:$0xff] %v141
        %v143 = vld [vmem:[%s33 + $0x1b0] sm:$0xff]
        %144 = vst [vmem:[%s34 + $0x1b0] sm:$0xff] %v143
        %v145 = vld [vmem:[%s33 + $0x1b8] sm:$0xff]
        %146 = vst [vmem:[%s34 + $0x1b8] sm:$0xff] %v145
        %v147 = vld [vmem:[%s33 + $0x1c0] sm:$0xff]
        %148 = vst [vmem:[%s34 + $0x1c0] sm:$0xff] %v147
        %v149 = vld [vmem:[%s33 + $0x1c8] sm:$0xff]
        %150 = vst [vmem:[%s34 + $0x1c8] sm:$0xff] %v149
        %v151 = vld [vmem:[%s33 + $0x1d0] sm:$0xff]
        %152 = vst [vmem:[%s34 + $0x1d0] sm:$0xff] %v151
        %v153 = vld [vmem:[%s33 + $0x1d8] sm:$0xff]
        %154 = vst [vmem:[%s34 + $0x1d8] sm:$0xff] %v153
        %v155 = vld [vmem:[%s33 + $0x1e0] sm:$0xff]
        %156 = vst [vmem:[%s34 + $0x1e0] sm:$0xff] %v155
        %v157 = vld [vmem:[%s33 + $0x1e8] sm:$0xff]
        %158 = vst [vmem:[%s34 + $0x1e8] sm:$0xff] %v157
        %v159 = vld [vmem:[%s33 + $0x1f0] sm:$0xff]
        %160 = vst [vmem:[%s34 + $0x1f0] sm:$0xff] %v159
        %v161 = vld [vmem:[%s33 + $0x1f8] sm:$0xff]
        %162 = vst [vmem:[%s34 + $0x1f8] sm:$0xff] %v161
        %v163 = vld [vmem:[%s33 + $0x200] sm:$0xff]
        %164 = vst [vmem:[%s34 + $0x200] sm:$0xff] %v163
        %v165 = vld [vmem:[%s33 + $0x208] sm:$0xff]
        %166 = vst [vmem:[%s34 + $0x208] sm:$0xff] %v165
        %v167 = vld [vmem:[%s33 + $0x210] sm:$0xff]
        %168 = vst [vmem:[%s34 + $0x210] sm:$0xff] %v167
        %v169 = vld [vmem:[%s33 + $0x218] sm:$0xff]
        %170 = vst [vmem:[%s34 + $0x218] sm:$0xff] %v169
        %v171 = vld [vmem:[%s33 + $0x220] sm:$0xff]
        %172 = vst [vmem:[%s34 + $0x220] sm:$0xff] %v171
        %v173 = vld [vmem:[%s33 + $0x228] sm:$0xff]
        %174 = vst [vmem:[%s34 + $0x228] sm:$0xff] %v173
        %v175 = vld [vmem:[%s33 + $0x230] sm:$0xff]
        %176 = vst [vmem:[%s34 + $0x230] sm:$0xff] %v175
        %v177 = vld [vmem:[%s33 + $0x238] sm:$0xff]
        %178 = vst [vmem:[%s34 + $0x238] sm:$0xff] %v177
        %v179 = vld [vmem:[%s33 + $0x240] sm:$0xff]
        %180 = vst [vmem:[%s34 + $0x240] sm:$0xff] %v179
        %v181 = vld [vmem:[%s33 + $0x248] sm:$0xff]
        %182 = vst [vmem:[%s34 + $0x248] sm:$0xff] %v181
        %v183 = vld [vmem:[%s33 + $0x250] sm:$0xff]
        %184 = vst [vmem:[%s34 + $0x250] sm:$0xff] %v183
        %v185 = vld [vmem:[%s33 + $0x258] sm:$0xff]
        %186 = vst [vmem:[%s34 + $0x258] sm:$0xff] %v185
        %v187 = vld [vmem:[%s33 + $0x260] sm:$0xff]
        %188 = vst [vmem:[%s34 + $0x260] sm:$0xff] %v187
        %v189 = vld [vmem:[%s33 + $0x268] sm:$0xff]
        %190 = vst [vmem:[%s34 + $0x268] sm:$0xff] %v189
        %v191 = vld [vmem:[%s33 + $0x270] sm:$0xff]
        %192 = vst [vmem:[%s34 + $0x270] sm:$0xff] %v191
        %v193 = vld [vmem:[%s33 + $0x278] sm:$0xff]
        %194 = vst [vmem:[%s34 + $0x278] sm:$0xff] %v193
        %v195 = vld [vmem:[%s33 + $0x280] sm:$0xff]
        %196 = vst [vmem:[%s34 + $0x280] sm:$0xff] %v195
        %v197 = vld [vmem:[%s33 + $0x288] sm:$0xff]
        %198 = vst [vmem:[%s34 + $0x288] sm:$0xff] %v197
        %v199 = vld [vmem:[%s33 + $0x290] sm:$0xff]
        %200 = vst [vmem:[%s34 + $0x290] sm:$0xff] %v199
        %v201 = vld [vmem:[%s33 + $0x298] sm:$0xff]
        %202 = vst [vmem:[%s34 + $0x298] sm:$0xff] %v201
        %v203 = vld [vmem:[%s33 + $0x2a0] sm:$0xff]
        %204 = vst [vmem:[%s34 + $0x2a0] sm:$0xff] %v203
        %v205 = vld [vmem:[%s33 + $0x2a8] sm:$0xff]
        %206 = vst [vmem:[%s34 + $0x2a8] sm:$0xff] %v205
        %v207 = vld [vmem:[%s33 + $0x2b0] sm:$0xff]
        %208 = vst [vmem:[%s34 + $0x2b0] sm:$0xff] %v207
        %v209 = vld [vmem:[%s33 + $0x2b8] sm:$0xff]
        %210 = vst [vmem:[%s34 + $0x2b8] sm:$0xff] %v209
        %v211 = vld [vmem:[%s33 + $0x2c0] sm:$0xff]
        %212 = vst [vmem:[%s34 + $0x2c0] sm:$0xff] %v211
        %v213 = vld [vmem:[%s33 + $0x2c8] sm:$0xff]
        %214 = vst [vmem:[%s34 + $0x2c8] sm:$0xff] %v213
        %v215 = vld [vmem:[%s33 + $0x2d0] sm:$0xff]
        %216 = vst [vmem:[%s34 + $0x2d0] sm:$0xff] %v215
        %v217 = vld [vmem:[%s33 + $0x2d8] sm:$0xff]
        %218 = vst [vmem:[%s34 + $0x2d8] sm:$0xff] %v217
        %v219 = vld [vmem:[%s33 + $0x2e0] sm:$0xff]
        %220 = vst [vmem:[%s34 + $0x2e0] sm:$0xff] %v219
        %v221 = vld [vmem:[%s33 + $0x2e8] sm:$0xff]
        %222 = vst [vmem:[%s34 + $0x2e8] sm:$0xff] %v221
        %v223 = vld [vmem:[%s33 + $0x2f0] sm:$0xff]
        %224 = vst [vmem:[%s34 + $0x2f0] sm:$0xff] %v223
        %v225 = vld [vmem:[%s33 + $0x2f8] sm:$0xff]
        %226 = vst [vmem:[%s34 + $0x2f8] sm:$0xff] %v225
        %v227 = vld [vmem:[%s33 + $0x300] sm:$0xff]
        %228 = vst [vmem:[%s34 + $0x300] sm:$0xff] %v227
        %v229 = vld [vmem:[%s33 + $0x308] sm:$0xff]
        %230 = vst [vmem:[%s34 + $0x308] sm:$0xff] %v229
        %v231 = vld [vmem:[%s33 + $0x310] sm:$0xff]
        %232 = vst [vmem:[%s34 + $0x310] sm:$0xff] %v231
        %v233 = vld [vmem:[%s33 + $0x318] sm:$0xff]
        %234 = vst [vmem:[%s34 + $0x318] sm:$0xff] %v233
        %v235 = vld [vmem:[%s33 + $0x320] sm:$0xff]
        %236 = vst [vmem:[%s34 + $0x320] sm:$0xff] %v235
        %v237 = vld [vmem:[%s33 + $0x328] sm:$0xff]
        %238 = vst [vmem:[%s34 + $0x328] sm:$0xff] %v237
        %v239 = vld [vmem:[%s33 + $0x330] sm:$0xff]
        %240 = vst [vmem:[%s34 + $0x330] sm:$0xff] %v239
        %v241 = vld [vmem:[%s33 + $0x338] sm:$0xff]
        %242 = vst [vmem:[%s34 + $0x338] sm:$0xff] %v241
        %v243 = vld [vmem:[%s33 + $0x340] sm:$0xff]
        %244 = vst [vmem:[%s34 + $0x340] sm:$0xff] %v243
        %v245 = vld [vmem:[%s33 + $0x348] sm:$0xff]
        %246 = vst [vmem:[%s34 + $0x348] sm:$0xff] %v245
        %v247 = vld [vmem:[%s33 + $0x350] sm:$0xff]
        %248 = vst [vmem:[%s34 + $0x350] sm:$0xff] %v247
        %v249 = vld [vmem:[%s33 + $0x358] sm:$0xff]
        %250 = vst [vmem:[%s34 + $0x358] sm:$0xff] %v249
        %v251 = vld [vmem:[%s33 + $0x360] sm:$0xff]
        %252 = vst [vmem:[%s34 + $0x360] sm:$0xff] %v251
        %v253 = vld [vmem:[%s33 + $0x368] sm:$0xff]
        %254 = vst [vmem:[%s34 + $0x368] sm:$0xff] %v253
        %v255 = vld [vmem:[%s33 + $0x370] sm:$0xff]
        %256 = vst [vmem:[%s34 + $0x370] sm:$0xff] %v255
        %v257 = vld [vmem:[%s33 + $0x378] sm:$0xff]
        %258 = vst [vmem:[%s34 + $0x378] sm:$0xff] %v257
        %v259 = vld [vmem:[%s33 + $0x380] sm:$0xff]
        %260 = vst [vmem:[%s34 + $0x380] sm:$0xff] %v259
        %v261 = vld [vmem:[%s33 + $0x388] sm:$0xff]
        %262 = vst [vmem:[%s34 + $0x388] sm:$0xff] %v261
        %v263 = vld [vmem:[%s33 + $0x390] sm:$0xff]
        %264 = vst [vmem:[%s34 + $0x390] sm:$0xff] %v263
        %v265 = vld [vmem:[%s33 + $0x398] sm:$0xff]
        %266 = vst [vmem:[%s34 + $0x398] sm:$0xff] %v265
        %v267 = vld [vmem:[%s33 + $0x3a0] sm:$0xff]
        %268 = vst [vmem:[%s34 + $0x3a0] sm:$0xff] %v267
        %v269 = vld [vmem:[%s33 + $0x3a8] sm:$0xff]
        %270 = vst [vmem:[%s34 + $0x3a8] sm:$0xff] %v269
        %v271 = vld [vmem:[%s33 + $0x3b0] sm:$0xff]
        %272 = vst [vmem:[%s34 + $0x3b0] sm:$0xff] %v271
        %v273 = vld [vmem:[%s33 + $0x3b8] sm:$0xff]
        %274 = vst [vmem:[%s34 + $0x3b8] sm:$0xff] %v273
        %v275 = vld [vmem:[%s33 + $0x3c0] sm:$0xff]
        %276 = vst [vmem:[%s34 + $0x3c0] sm:$0xff] %v275
        %v277 = vld [vmem:[%s33 + $0x3c8] sm:$0xff]
        %278 = vst [vmem:[%s34 + $0x3c8] sm:$0xff] %v277
        %v279 = vld [vmem:[%s33 + $0x3d0] sm:$0xff]
        %280 = vst [vmem:[%s34 + $0x3d0] sm:$0xff] %v279
        %v281 = vld [vmem:[%s33 + $0x3d8] sm:$0xff]
        %282 = vst [vmem:[%s34 + $0x3d8] sm:$0xff] %v281
        %v283 = vld [vmem:[%s33 + $0x3e0] sm:$0xff]
        %284 = vst [vmem:[%s34 + $0x3e0] sm:$0xff] %v283
        %v285 = vld [vmem:[%s33 + $0x3e8] sm:$0xff]
        %286 = vst [vmem:[%s34 + $0x3e8] sm:$0xff] %v285
        %v287 = vld [vmem:[%s33 + $0x3f0] sm:$0xff]
        %288 = vst [vmem:[%s34 + $0x3f0] sm:$0xff] %v287
        %v289 = vld [vmem:[%s33 + $0x3f8] sm:$0xff]
        %290 = vst [vmem:[%s34 + $0x3f8] sm:$0xff] %v289
        %v291 = vld [vmem:[%s33 + $0x400] sm:$0xff]
        %292 = vst [vmem:[%s34 + $0x400] sm:$0xff] %v291
        %v293 = vld [vmem:[%s33 + $0x408] sm:$0xff]
        %294 = vst [vmem:[%s34 + $0x408] sm:$0xff] %v293
        %v295 = vld [vmem:[%s33 + $0x410] sm:$0xff]
        %296 = vst [vmem:[%s34 + $0x410] sm:$0xff] %v295
        %v297 = vld [vmem:[%s33 + $0x418] sm:$0xff]
        %298 = vst [vmem:[%s34 + $0x418] sm:$0xff] %v297
        %v299 = vld [vmem:[%s33 + $0x420] sm:$0xff]
        %300 = vst [vmem:[%s34 + $0x420] sm:$0xff] %v299
        %v301 = vld [vmem:[%s33 + $0x428] sm:$0xff]
        %302 = vst [vmem:[%s34 + $0x428] sm:$0xff] %v301
        %v303 = vld [vmem:[%s33 + $0x430] sm:$0xff]
        %304 = vst [vmem:[%s34 + $0x430] sm:$0xff] %v303
        %v305 = vld [vmem:[%s33 + $0x438] sm:$0xff]
        %306 = vst [vmem:[%s34 + $0x438] sm:$0xff] %v305
        %v307 = vld [vmem:[%s33 + $0x440] sm:$0xff]
        %308 = vst [vmem:[%s34 + $0x440] sm:$0xff] %v307
        %v309 = vld [vmem:[%s33 + $0x448] sm:$0xff]
        %310 = vst [vmem:[%s34 + $0x448] sm:$0xff] %v309
        %v311 = vld [vmem:[%s33 + $0x450] sm:$0xff]
        %312 = vst [vmem:[%s34 + $0x450] sm:$0xff] %v311
        %v313 = vld [vmem:[%s33 + $0x458] sm:$0xff]
        %314 = vst [vmem:[%s34 + $0x458] sm:$0xff] %v313
        %v315 = vld [vmem:[%s33 + $0x460] sm:$0xff]
        %316 = vst [vmem:[%s34 + $0x460] sm:$0xff] %v315
        %v317 = vld [vmem:[%s33 + $0x468] sm:$0xff]
        %318 = vst [vmem:[%s34 + $0x468] sm:$0xff] %v317
        %v319 = vld [vmem:[%s33 + $0x470] sm:$0xff]
        %320 = vst [vmem:[%s34 + $0x470] sm:$0xff] %v319
        %v321 = vld [vmem:[%s33 + $0x478] sm:$0xff]
        %322 = vst [vmem:[%s34 + $0x478] sm:$0xff] %v321
        %v323 = vld [vmem:[%s33 + $0x480] sm:$0xff]
        %324 = vst [vmem:[%s34 + $0x480] sm:$0xff] %v323
        %v325 = vld [vmem:[%s33 + $0x488] sm:$0xff]
        %326 = vst [vmem:[%s34 + $0x488] sm:$0xff] %v325
        %v327 = vld [vmem:[%s33 + $0x490] sm:$0xff]
        %328 = vst [vmem:[%s34 + $0x490] sm:$0xff] %v327
        %v329 = vld [vmem:[%s33 + $0x498] sm:$0xff]
        %330 = vst [vmem:[%s34 + $0x498] sm:$0xff] %v329
        %v331 = vld [vmem:[%s33 + $0x4a0] sm:$0xff]
        %332 = vst [vmem:[%s34 + $0x4a0] sm:$0xff] %v331
        %v333 = vld [vmem:[%s33 + $0x4a8] sm:$0xff]
        %334 = vst [vmem:[%s34 + $0x4a8] sm:$0xff] %v333
        %v335 = vld [vmem:[%s33 + $0x4b0] sm:$0xff]
        %336 = vst [vmem:[%s34 + $0x4b0] sm:$0xff] %v335
        %v337 = vld [vmem:[%s33 + $0x4b8] sm:$0xff]
        %338 = vst [vmem:[%s34 + $0x4b8] sm:$0xff] %v337
        %v339 = vld [vmem:[%s33 + $0x4c0] sm:$0xff]
        %340 = vst [vmem:[%s34 + $0x4c0] sm:$0xff] %v339
        %v341 = vld [vmem:[%s33 + $0x4c8] sm:$0xff]
        %342 = vst [vmem:[%s34 + $0x4c8] sm:$0xff] %v341
        %v343 = vld [vmem:[%s33 + $0x4d0] sm:$0xff]
        %344 = vst [vmem:[%s34 + $0x4d0] sm:$0xff] %v343
        %v345 = vld [vmem:[%s33 + $0x4d8] sm:$0xff]
        %346 = vst [vmem:[%s34 + $0x4d8] sm:$0xff] %v345
        %v347 = vld [vmem:[%s33 + $0x4e0] sm:$0xff]
        %348 = vst [vmem:[%s34 + $0x4e0] sm:$0xff] %v347
        %v349 = vld [vmem:[%s33 + $0x4e8] sm:$0xff]
        %350 = vst [vmem:[%s34 + $0x4e8] sm:$0xff] %v349
        %v351 = vld [vmem:[%s33 + $0x4f0] sm:$0xff]
        %352 = vst [vmem:[%s34 + $0x4f0] sm:$0xff] %v351
        %v353 = vld [vmem:[%s33 + $0x4f8] sm:$0xff]
        %354 = vst [vmem:[%s34 + $0x4f8] sm:$0xff] %v353
        %v355 = vld [vmem:[%s33 + $0x500] sm:$0xff]
        %356 = vst [vmem:[%s34 + $0x500] sm:$0xff] %v355
        %v357 = vld [vmem:[%s33 + $0x508] sm:$0xff]
        %358 = vst [vmem:[%s34 + $0x508] sm:$0xff] %v357
        %v359 = vld [vmem:[%s33 + $0x510] sm:$0xff]
        %360 = vst [vmem:[%s34 + $0x510] sm:$0xff] %v359
        %v361 = vld [vmem:[%s33 + $0x518] sm:$0xff]
        %362 = vst [vmem:[%s34 + $0x518] sm:$0xff] %v361
        %v363 = vld [vmem:[%s33 + $0x520] sm:$0xff]
        %364 = vst [vmem:[%s34 + $0x520] sm:$0xff] %v363
        %v365 = vld [vmem:[%s33 + $0x528] sm:$0xff]
        %366 = vst [vmem:[%s34 + $0x528] sm:$0xff] %v365
        %v367 = vld [vmem:[%s33 + $0x530] sm:$0xff]
        %368 = vst [vmem:[%s34 + $0x530] sm:$0xff] %v367
        %v369 = vld [vmem:[%s33 + $0x538] sm:$0xff]
        %370 = vst [vmem:[%s34 + $0x538] sm:$0xff] %v369
        %v371 = vld [vmem:[%s33 + $0x540] sm:$0xff]
        %372 = vst [vmem:[%s34 + $0x540] sm:$0xff] %v371
        %v373 = vld [vmem:[%s33 + $0x548] sm:$0xff]
        %374 = vst [vmem:[%s34 + $0x548] sm:$0xff] %v373
        %v375 = vld [vmem:[%s33 + $0x550] sm:$0xff]
        %376 = vst [vmem:[%s34 + $0x550] sm:$0xff] %v375
        %v377 = vld [vmem:[%s33 + $0x558] sm:$0xff]
        %378 = vst [vmem:[%s34 + $0x558] sm:$0xff] %v377
        %v379 = vld [vmem:[%s33 + $0x560] sm:$0xff]
        %380 = vst [vmem:[%s34 + $0x560] sm:$0xff] %v379
        %v381 = vld [vmem:[%s33 + $0x568] sm:$0xff]
        %382 = vst [vmem:[%s34 + $0x568] sm:$0xff] %v381
        %v383 = vld [vmem:[%s33 + $0x570] sm:$0xff]
        %384 = vst [vmem:[%s34 + $0x570] sm:$0xff] %v383
        %v385 = vld [vmem:[%s33 + $0x578] sm:$0xff]
        %386 = vst [vmem:[%s34 + $0x578] sm:$0xff] %v385
        %v387 = vld [vmem:[%s33 + $0x580] sm:$0xff]
        %388 = vst [vmem:[%s34 + $0x580] sm:$0xff] %v387
        %v389 = vld [vmem:[%s33 + $0x588] sm:$0xff]
        %390 = vst [vmem:[%s34 + $0x588] sm:$0xff] %v389
        %v391 = vld [vmem:[%s33 + $0x590] sm:$0xff]
        %392 = vst [vmem:[%s34 + $0x590] sm:$0xff] %v391
        %v393 = vld [vmem:[%s33 + $0x598] sm:$0xff]
        %394 = vst [vmem:[%s34 + $0x598] sm:$0xff] %v393
        %v395 = vld [vmem:[%s33 + $0x5a0] sm:$0xff]
        %396 = vst [vmem:[%s34 + $0x5a0] sm:$0xff] %v395
        %v397 = vld [vmem:[%s33 + $0x5a8] sm:$0xff]
        %398 = vst [vmem:[%s34 + $0x5a8] sm:$0xff] %v397
        %v399 = vld [vmem:[%s33 + $0x5b0] sm:$0xff]
        %400 = vst [vmem:[%s34 + $0x5b0] sm:$0xff] %v399
        %v401 = vld [vmem:[%s33 + $0x5b8] sm:$0xff]
        %402 = vst [vmem:[%s34 + $0x5b8] sm:$0xff] %v401
        %v403 = vld [vmem:[%s33 + $0x5c0] sm:$0xff]
        %404 = vst [vmem:[%s34 + $0x5c0] sm:$0xff] %v403
        %v405 = vld [vmem:[%s33 + $0x5c8] sm:$0xff]
        %406 = vst [vmem:[%s34 + $0x5c8] sm:$0xff] %v405
        %v407 = vld [vmem:[%s33 + $0x5d0] sm:$0xff]
        %408 = vst [vmem:[%s34 + $0x5d0] sm:$0xff] %v407
        %v409 = vld [vmem:[%s33 + $0x5d8] sm:$0xff]
        %410 = vst [vmem:[%s34 + $0x5d8] sm:$0xff] %v409
        %v411 = vld [vmem:[%s33 + $0x5e0] sm:$0xff]
        %412 = vst [vmem:[%s34 + $0x5e0] sm:$0xff] %v411
        %v413 = vld [vmem:[%s33 + $0x5e8] sm:$0xff]
        %414 = vst [vmem:[%s34 + $0x5e8] sm:$0xff] %v413
        %v415 = vld [vmem:[%s33 + $0x5f0] sm:$0xff]
        %416 = vst [vmem:[%s34 + $0x5f0] sm:$0xff] %v415
        %v417 = vld [vmem:[%s33 + $0x5f8] sm:$0xff]
        %418 = vst [vmem:[%s34 + $0x5f8] sm:$0xff] %v417
        %v419 = vld [vmem:[%s33 + $0x600] sm:$0xff]
        %420 = vst [vmem:[%s34 + $0x600] sm:$0xff] %v419
        %v421 = vld [vmem:[%s33 + $0x608] sm:$0xff]
        %422 = vst [vmem:[%s34 + $0x608] sm:$0xff] %v421
        %v423 = vld [vmem:[%s33 + $0x610] sm:$0xff]
        %424 = vst [vmem:[%s34 + $0x610] sm:$0xff] %v423
        %v425 = vld [vmem:[%s33 + $0x618] sm:$0xff]
        %426 = vst [vmem:[%s34 + $0x618] sm:$0xff] %v425
        %v427 = vld [vmem:[%s33 + $0x620] sm:$0xff]
        %428 = vst [vmem:[%s34 + $0x620] sm:$0xff] %v427
        %v429 = vld [vmem:[%s33 + $0x628] sm:$0xff]
        %430 = vst [vmem:[%s34 + $0x628] sm:$0xff] %v429
        %v431 = vld [vmem:[%s33 + $0x630] sm:$0xff]
        %432 = vst [vmem:[%s34 + $0x630] sm:$0xff] %v431
        %v433 = vld [vmem:[%s33 + $0x638] sm:$0xff]
        %434 = vst [vmem:[%s34 + $0x638] sm:$0xff] %v433
      $region34: #{cnn_forward.1} parent=28 // loop_footer
        %s32 = sadd.s32 1, %s28
      $region35: #{cnn_forward.1} parent=28 // loop_footer_branch
        %27 = sbr.rel target = $region31
      $region36: #{cnn_forward.1} parent=28 // loop_exit
        _
    $region29: #{cnn_forward.1} parent=1 // pred_fallthru
      _
    // Predicated region
    $region37: #{cnn_forward.1} parent=1 // pred_check
      _
    $region38: #{cnn_forward.1} parent=1 // pred_check_branch
      %436 = sbr.rel target = $region40
    $region39: #{cnn_forward.1} parent=1 // pred_region
      _
    $region40: #{cnn_forward.1} parent=1 // pred_fallthru
      _
    // Predicated region
    $region41: #{cnn_forward.1} parent=1 // pred_check
      _
    $region42: #{cnn_forward.1} parent=1 // pred_check_branch
      %439 = sbr.rel (0) target = $region44
    $region43: #{cnn_forward.1} parent=1 // pred_region
      %440 = vsyncadd [#allocation4], 25600
    $region44: #{cnn_forward.1} parent=1 // pred_fallthru
      _
    %v441 = vld [vmem:[%s0] sm:$0xff]
    %v442 = vld [vmem:[%s0 + $0x8] sm:$0xff]
    %v443 = vld [vmem:[%s0 + $0x10] sm:$0xff]
    %v444 = vld [vmem:[%s0 + $0x18] sm:$0xff]
    %v445 = vld [vmem:[%s0 + $0x20] sm:$0xff]
    %v446 = vld [vmem:[%s0 + $0x28] sm:$0xff]
    %v447 = vld [vmem:[%s0 + $0x30] sm:$0xff]
    %v448 = vld [vmem:[%s0 + $0x38] sm:$0xff]
    %v449 = vld [vmem:[%s0 + $0x40] sm:$0xff]
    %v450 = vld [vmem:[%s0 + $0x48] sm:$0xff]
    %v451 = vld [vmem:[%s0 + $0x50] sm:$0xff]
    %v452 = vld [vmem:[%s0 + $0x58] sm:$0xff]
    %v453 = vld [vmem:[%s0 + $0x60] sm:$0xff]
    %v454 = vld [vmem:[%s0 + $0x68] sm:$0xff]
    %v455 = vld [vmem:[%s0 + $0x70] sm:$0xff]
    %v456 = vld [vmem:[%s0 + $0x78] sm:$0xff]
    %v457 = vld [vmem:[%s0 + $0x80] sm:$0xff]
    %v458 = vld [vmem:[%s0 + $0x88] sm:$0xff]
    %v459 = vld [vmem:[%s0 + $0x90] sm:$0xff]
    %v460 = vld [vmem:[%s0 + $0x98] sm:$0xff]
    %v461 = vld [vmem:[%s0 + $0xa0] sm:$0xff]
    %v462 = vld [vmem:[%s0 + $0xa8] sm:$0xff]
    %v463 = vld [vmem:[%s0 + $0xb0] sm:$0xff]
    %v464 = vld [vmem:[%s0 + $0xb8] sm:$0xff]
    %v465 = vld [vmem:[%s0 + $0xc0] sm:$0xff]
    %v466 = vld [vmem:[%s0 + $0xc8] sm:$0xff]
    %v467 = vld [vmem:[%s0 + $0xd0] sm:$0xff]
    %v468 = vld [vmem:[%s0 + $0xd8] sm:$0xff]
    %v469 = vld [vmem:[%s0 + $0xe0] sm:$0xff]
    %v470 = vld [vmem:[%s0 + $0xe8] sm:$0xff]
    %v471 = vld [vmem:[%s0 + $0xf0] sm:$0xff]
    %v472 = vld [vmem:[%s0 + $0xf8] sm:$0xff]
    %v473 = vld [vmem:[%s0 + $0x100] sm:$0xff]
    %v474 = vld [vmem:[%s0 + $0x108] sm:$0xff]
    %v475 = vld [vmem:[%s0 + $0x110] sm:$0xff]
    %v476 = vld [vmem:[%s0 + $0x118] sm:$0xff]
    %v477 = vld [vmem:[%s1] sm:$0xff]
    %v478 = vld [vmem:[%s1 + $0x8] sm:$0xff]
    %v479 = vld [vmem:[%s1 + $0x10] sm:$0xff]
    %v480 = vld [vmem:[%s1 + $0x18] sm:$0xff]
    %v481 = vld [vmem:[%s1 + $0x20] sm:$0xff]
    %v482 = vld [vmem:[%s1 + $0x28] sm:$0xff]
    %v483 = vld [vmem:[%s1 + $0x30] sm:$0xff]
    %v484 = vld [vmem:[%s1 + $0x38] sm:$0xff]
    %v485 = vld [vmem:[%s1 + $0x40] sm:$0xff]
    %v486 = vld [vmem:[%s1 + $0x48] sm:$0xff]
    %v487 = vld [vmem:[%s1 + $0x50] sm:$0xff]
    %v488 = vld [vmem:[%s1 + $0x58] sm:$0xff]
    %v489 = vld [vmem:[%s1 + $0x60] sm:$0xff]
    %v490 = vld [vmem:[%s1 + $0x68] sm:$0xff]
    %v491 = vld [vmem:[%s1 + $0x70] sm:$0xff]
    %v492 = vld [vmem:[%s1 + $0x78] sm:$0xff]
    %493 = vmatpush.msra.mxu0 %v492
    %494 = vmatpush.msra.mxu0 %v491
    %495 = vmatpush.msra.mxu0 %v490
    %496 = vmatpush.msra.mxu0 %v489
    %497 = vmatpush.msra.mxu0 %v488
    %498 = vmatpush.msra.mxu0 %v487
    %499 = vmatpush.msra.mxu0 %v486
    %500 = vmatpush.msra.mxu0 %v485
    %501 = vmatpush.msra.mxu0 %v484
    %502 = vmatpush.msra.mxu0 %v483
    %503 = vmatpush.msra.mxu0 %v482
    %504 = vmatpush.msra.mxu0 %v481
    %505 = vmatpush.msra.mxu0 %v480
    %506 = vmatpush.msra.mxu0 %v479
    %507 = vmatpush.msra.mxu0 %v478
    %508 = vmatpush.msra.mxu0 %v477
    %509 = vmatmul.f32.gmra.mxu0 %v441
    %v510 = vpop.f32.mrf.mxu0
    %v511 = vadd.f32 0.0, %v510
    %512 = vmatmul.f32.gmra.mxu0 %v442
    %v513 = vpop.f32.mrf.mxu0
    %v514 = vadd.f32 0.0, %v513
    %515 = vmatmul.f32.gmra.mxu0 %v443
    %v516 = vpop.f32.mrf.mxu0
    %v517 = vadd.f32 0.0, %v516
    %518 = vmatmul.f32.gmra.mxu0 %v444
    %v519 = vpop.f32.mrf.mxu0
    %v520 = vadd.f32 0.0, %v519
    %521 = vmatmul.f32.gmra.mxu0 %v445
    %v522 = vpop.f32.mrf.mxu0
    %v523 = vadd.f32 0.0, %v522
    %524 = vmatmul.f32.gmra.mxu0 %v446
    %v525 = vpop.f32.mrf.mxu0
    %v526 = vadd.f32 0.0, %v525
    %527 = vmatmul.f32.gmra.mxu0 %v447
    %v528 = vpop.f32.mrf.mxu0
    %v529 = vadd.f32 0.0, %v528
    %530 = vmatmul.f32.gmra.mxu0 %v448
    %v531 = vpop.f32.mrf.mxu0
    %v532 = vadd.f32 0.0, %v531
    %533 = vmatmul.f32.gmra.mxu0 %v449
    %v534 = vpop.f32.mrf.mxu0
    %v535 = vadd.f32 0.0, %v534
    %536 = vmatmul.f32.gmra.mxu0 %v450
    %v537 = vpop.f32.mrf.mxu0
    %v538 = vadd.f32 0.0, %v537
    %539 = vmatmul.f32.gmra.mxu0 %v451
    %v540 = vpop.f32.mrf.mxu0
    %v541 = vadd.f32 0.0, %v540
    %542 = vmatmul.f32.gmra.mxu0 %v452
    %v543 = vpop.f32.mrf.mxu0
    %v544 = vadd.f32 0.0, %v543
    %545 = vmatmul.f32.gmra.mxu0 %v453
    %v546 = vpop.f32.mrf.mxu0
    %v547 = vadd.f32 0.0, %v546
    %548 = vmatmul.f32.gmra.mxu0 %v454
    %v549 = vpop.f32.mrf.mxu0
    %v550 = vadd.f32 0.0, %v549
    %551 = vmatmul.f32.gmra.mxu0 %v455
    %v552 = vpop.f32.mrf.mxu0
    %v553 = vadd.f32 0.0, %v552
    %554 = vmatmul.f32.gmra.mxu0 %v456
    %v555 = vpop.f32.mrf.mxu0
    %v556 = vadd.f32 0.0, %v555
    %557 = vmatmul.f32.gmra.mxu0 %v457
    %v558 = vpop.f32.mrf.mxu0
    %v559 = vadd.f32 0.0, %v558
    %560 = vmatmul.f32.gmra.mxu0 %v458
    %v561 = vpop.f32.mrf.mxu0
    %v562 = vadd.f32 0.0, %v561
    %563 = vmatmul.f32.gmra.mxu0 %v459
    %v564 = vpop.f32.mrf.mxu0
    %v565 = vadd.f32 0.0, %v564
    %566 = vmatmul.f32.gmra.mxu0 %v460
    %v567 = vpop.f32.mrf.mxu0
    %v568 = vadd.f32 0.0, %v567
    %569 = vmatmul.f32.gmra.mxu0 %v461
    %v570 = vpop.f32.mrf.mxu0
    %v571 = vadd.f32 0.0, %v570
    %572 = vmatmul.f32.gmra.mxu0 %v462
    %v573 = vpop.f32.mrf.mxu0
    %v574 = vadd.f32 0.0, %v573
    %575 = vmatmul.f32.gmra.mxu0 %v463
    %v576 = vpop.f32.mrf.mxu0
    %v577 = vadd.f32 0.0, %v576
    %578 = vmatmul.f32.gmra.mxu0 %v464
    %v579 = vpop.f32.mrf.mxu0
    %v580 = vadd.f32 0.0, %v579
    %581 = vmatmul.f32.gmra.mxu0 %v465
    %v582 = vpop.f32.mrf.mxu0
    %v583 = vadd.f32 0.0, %v582
    %584 = vmatmul.f32.gmra.mxu0 %v466
    %v585 = vpop.f32.mrf.mxu0
    %v586 = vadd.f32 0.0, %v585
    %587 = vmatmul.f32.gmra.mxu0 %v467
    %v588 = vpop.f32.mrf.mxu0
    %v589 = vadd.f32 0.0, %v588
    %590 = vmatmul.f32.gmra.mxu0 %v468
    %v591 = vpop.f32.mrf.mxu0
    %v592 = vadd.f32 0.0, %v591
    %593 = vmatmul.f32.gmra.mxu0 %v469
    %v594 = vpop.f32.mrf.mxu0
    %v595 = vadd.f32 0.0, %v594
    %596 = vmatmul.f32.gmra.mxu0 %v470
    %v597 = vpop.f32.mrf.mxu0
    %v598 = vadd.f32 0.0, %v597
    %599 = vmatmul.f32.gmra.mxu0 %v471
    %v600 = vpop.f32.mrf.mxu0
    %v601 = vadd.f32 0.0, %v600
    %602 = vmatmul.f32.gmra.mxu0 %v472
    %v603 = vpop.f32.mrf.mxu0
    %v604 = vadd.f32 0.0, %v603
    %605 = vmatmul.f32.gmra.mxu0 %v473
    %v606 = vpop.f32.mrf.mxu0
    %v607 = vadd.f32 0.0, %v606
    %608 = vmatmul.f32.gmra.mxu0 %v474
    %v609 = vpop.f32.mrf.mxu0
    %v610 = vadd.f32 0.0, %v609
    %611 = vmatmul.f32.gmra.mxu0 %v475
    %v612 = vpop.f32.mrf.mxu0
    %v613 = vadd.f32 0.0, %v612
    %614 = vmatmul.f32.gmra.mxu0 %v476
    %v615 = vpop.f32.mrf.mxu0
    %v616 = vadd.f32 0.0, %v615
    %617 = vdwg.mxu0
    %v618 = vmax.f32 %v511, %v538
    %v619 = vmax.f32 %v514, %v541
    %v620 = vmax.f32 %v517, %v544
    %v621 = vmax.f32 %v520, %v547
    %v622 = vmax.f32 %v523, %v550
    %v623 = vmax.f32 %v526, %v553
    %v624 = vmax.f32 %v529, %v556
    %v625 = vmax.f32 %v532, %v559
    %v626 = vmax.f32 %v535, %v562
    %v627 = vmax.f32 %v565, %v592
    %v628 = vmax.f32 %v568, %v595
    %v629 = vmax.f32 %v571, %v598
    %v630 = vmax.f32 %v574, %v601
    %v631 = vmax.f32 %v577, %v604
    %v632 = vmax.f32 %v580, %v607
    %v633 = vmax.f32 %v583, %v610
    %v634 = vmax.f32 %v586, %v613
    %v635 = vmax.f32 %v589, %v616
    %v636 = vmax.f32 %v618, %v627
    %v637 = vmax.f32 %v619, %v628
    %v638 = vmax.f32 %v620, %v629
    %v639 = vmax.f32 %v621, %v630
    %v640 = vmax.f32 %v622, %v631
    %v641 = vmax.f32 %v623, %v632
    %v642 = vmax.f32 %v624, %v633
    %v643 = vmax.f32 %v625, %v634
    %v644 = vmax.f32 %v626, %v635
    %v645 = vld [vmem:[%s2] sm:$0x1]
    %v647 = vperm.slane %v645, 0
    %v649 = vadd.f32 %v636, %v647
    %v650 = vadd.f32 %v637, %v647
    %v651 = vadd.f32 %v638, %v647
    %v652 = vadd.f32 %v639, %v647
    %v653 = vadd.f32 %v640, %v647
    %v654 = vadd.f32 %v641, %v647
    %v655 = vadd.f32 %v642, %v647
    %v656 = vadd.f32 %v643, %v647
    %v657 = vadd.f32 %v644, %v647
    %v658 = vmax.f32 %v649, 0.0
    %v659 = vmax.f32 %v650, 0.0
    %v660 = vmax.f32 %v651, 0.0
    %v661 = vmax.f32 %v652, 0.0
    %v662 = vmax.f32 %v653, 0.0
    %v663 = vmax.f32 %v654, 0.0
    %v664 = vmax.f32 %v655, 0.0
    %v665 = vmax.f32 %v656, 0.0
    %v666 = vmax.f32 %v657, 0.0
    %667 = vst [vmem:[#allocation2] sm:$0xff] %v658
    %668 = vst [vmem:[#allocation2 + $0x8] sm:$0xff] %v659
    %669 = vst [vmem:[#allocation2 + $0x10] sm:$0xff] %v660
    %670 = vst [vmem:[#allocation2 + $0x18] sm:$0xff] %v661
    %671 = vst [vmem:[#allocation2 + $0x20] sm:$0xff] %v662
    %672 = vst [vmem:[#allocation2 + $0x28] sm:$0xff] %v663
    %673 = vst [vmem:[#allocation2 + $0x30] sm:$0xff] %v664
    %674 = vst [vmem:[#allocation2 + $0x38] sm:$0xff] %v665
    %675 = vst [vmem:[#allocation2 + $0x40] sm:$0xff] %v666
    %s676 = smul.u32 4, 5
    %s677 = smul.u32 %s676, 80
    %s678 = smul.u32 %s677, 1
    %s679 = sshll.u32 %s678, 4
    %680 = dma.done [#allocation4], %s679
    %v681 = vld [vmem:[#allocation2] sm:$0xff]
    %v682 = vld [vmem:[#allocation2 + $0x8] sm:$0xff]
    %v683 = vld [vmem:[#allocation2 + $0x10] sm:$0xff]
    %v684 = vld [vmem:[#allocation2 + $0x18] sm:$0xff]
    %v685 = vld [vmem:[#allocation2 + $0x20] sm:$0xff]
    %v686 = vld [vmem:[#allocation2 + $0x28] sm:$0xf]
    %v687 = vld [vmem:[#allocation2 + $0x1] sm:$0xff]
    %v688 = vld [vmem:[#allocation2 + $0x9] sm:$0xff]
    %v689 = vld [vmem:[#allocation2 + $0x11] sm:$0xff]
    %v690 = vld [vmem:[#allocation2 + $0x19] sm:$0xff]
    %v691 = vld [vmem:[#allocation2 + $0x21] sm:$0xff]
    %v692 = vld [vmem:[#allocation2 + $0x29] sm:$0xf]
    %v693 = vld [vmem:[#allocation2 + $0x2] sm:$0xff]
    %v694 = vld [vmem:[#allocation2 + $0xa] sm:$0xff]
    %v695 = vld [vmem:[#allocation2 + $0x12] sm:$0xff]
    %v696 = vld [vmem:[#allocation2 + $0x1a] sm:$0xff]
    %v697 = vld [vmem:[#allocation2 + $0x22] sm:$0xff]
    %v698 = vld [vmem:[#allocation2 + $0x2a] sm:$0xf]
    %v699 = vld [vmem:[#allocation2 + $0x3] sm:$0xff]
    %v700 = vld [vmem:[#allocation2 + $0xb] sm:$0xff]
    %v701 = vld [vmem:[#allocation2 + $0x13] sm:$0xff]
    %v702 = vld [vmem:[#allocation2 + $0x1b] sm:$0xff]
    %v703 = vld [vmem:[#allocation2 + $0x23] sm:$0xff]
    %v704 = vld [vmem:[#allocation2 + $0x2b] sm:$0xf]
    %v705 = vld [vmem:[#allocation2 + $0x4] sm:$0xff]
    %v706 = vld [vmem:[#allocation2 + $0xc] sm:$0xff]
    %v707 = vld [vmem:[#allocation2 + $0x14] sm:$0xff]
    %v708 = vld [vmem:[#allocation2 + $0x1c] sm:$0xff]
    %v709 = vld [vmem:[#allocation2 + $0x24] sm:$0xff]
    %v710 = vld [vmem:[#allocation2 + $0x2c] sm:$0xf]
    %v711 = vpack.c.bf16 %v682, %v681
    %v712 = vpack.c.bf16 %v688, %v687
    %v713 = vpack.c.bf16 %v694, %v693
    %v714 = vpack.c.bf16 %v700, %v699
    %v715 = vpack.c.bf16 %v706, %v705
    %v716 = vpack.c.bf16 %v684, %v683
    %v717 = vpack.c.bf16 %v690, %v689
    %v718 = vpack.c.bf16 %v696, %v695
    %v719 = vpack.c.bf16 %v702, %v701
    %v720 = vpack.c.bf16 %v708, %v707
    %v721 = vpack.c.bf16 %v686, %v685
    %v722 = vpack.c.bf16 %v692, %v691
    %v723 = vpack.c.bf16 %v698, %v697
    %v724 = vpack.c.bf16 %v704, %v703
    %v725 = vpack.c.bf16 %v710, %v709
    %v726 = vld [vmem:[#allocation3] sm:$0xf]
    %v727 = vld [vmem:[#allocation3 + $0x4] sm:$0xf]
    %v728 = vld [vmem:[#allocation3 + $0x8] sm:$0xf]
    %v729 = vld [vmem:[#allocation3 + $0xc] sm:$0xf]
    %v730 = vld [vmem:[#allocation3 + $0x10] sm:$0xf]
    %v731 = vld [vmem:[#allocation3 + $0x14] sm:$0xf]
    %v732 = vld [vmem:[#allocation3 + $0x18] sm:$0xf]
    %v733 = vld [vmem:[#allocation3 + $0x1c] sm:$0xf]
    %v734 = vld [vmem:[#allocation3 + $0x20] sm:$0xf]
    %v735 = vld [vmem:[#allocation3 + $0x24] sm:$0xf]
    %v736 = vld [vmem:[#allocation3 + $0x28] sm:$0xf]
    %v737 = vld [vmem:[#allocation3 + $0x2c] sm:$0xf]
    %v738 = vld [vmem:[#allocation3 + $0x30] sm:$0xf]
    %v739 = vld [vmem:[#allocation3 + $0x34] sm:$0xf]
    %v740 = vld [vmem:[#allocation3 + $0x38] sm:$0xf]
    %v741 = vld [vmem:[#allocation3 + $0x3c] sm:$0xf]
    %v742 = vld [vmem:[#allocation3 + $0x40] sm:$0xf]
    %v743 = vld [vmem:[#allocation3 + $0x44] sm:$0xf]
    %v744 = vld [vmem:[#allocation3 + $0x48] sm:$0xf]
    %v745 = vld [vmem:[#allocation3 + $0x4c] sm:$0xf]
    %v746 = vld [vmem:[#allocation3 + $0x50] sm:$0xf]
    %v747 = vld [vmem:[#allocation3 + $0x54] sm:$0xf]
    %v748 = vld [vmem:[#allocation3 + $0x58] sm:$0xf]
    %v749 = vld [vmem:[#allocation3 + $0x5c] sm:$0xf]
    %v750 = vld [vmem:[#allocation3 + $0x60] sm:$0xf]
    %v751 = vld [vmem:[#allocation3 + $0x64] sm:$0xf]
    %v752 = vld [vmem:[#allocation3 + $0x68] sm:$0xf]
    %v753 = vld [vmem:[#allocation3 + $0x6c] sm:$0xf]
    %v754 = vld [vmem:[#allocation3 + $0x70] sm:$0xf]
    %v755 = vld [vmem:[#allocation3 + $0x74] sm:$0xf]
    %v756 = vld [vmem:[#allocation3 + $0x78] sm:$0xf]
    %v757 = vld [vmem:[#allocation3 + $0x7c] sm:$0xf]
    %v758 = vld [vmem:[#allocation3 + $0x80] sm:$0xf]
    %v759 = vld [vmem:[#allocation3 + $0x84] sm:$0xf]
    %v760 = vld [vmem:[#allocation3 + $0x88] sm:$0xf]
    %v761 = vld [vmem:[#allocation3 + $0x8c] sm:$0xf]
    %v762 = vld [vmem:[#allocation3 + $0x90] sm:$0xf]
    %v763 = vld [vmem:[#allocation3 + $0x94] sm:$0xf]
    %v764 = vld [vmem:[#allocation3 + $0x98] sm:$0xf]
    %v765 = vld [vmem:[#allocation3 + $0x9c] sm:$0xf]
    %v766 = vld [vmem:[#allocation3 + $0xa0] sm:$0xf]
    %v767 = vld [vmem:[#allocation3 + $0xa4] sm:$0xf]
    %v768 = vld [vmem:[#allocation3 + $0xa8] sm:$0xf]
    %v769 = vld [vmem:[#allocation3 + $0xac] sm:$0xf]
    %v770 = vld [vmem:[#allocation3 + $0xb0] sm:$0xf]
    %v771 = vld [vmem:[#allocation3 + $0xb4] sm:$0xf]
    %v772 = vld [vmem:[#allocation3 + $0xb8] sm:$0xf]
    %v773 = vld [vmem:[#allocation3 + $0xbc] sm:$0xf]
    %v774 = vld [vmem:[#allocation3 + $0xc0] sm:$0xf]
    %v775 = vld [vmem:[#allocation3 + $0xc4] sm:$0xf]
    %v776 = vld [vmem:[#allocation3 + $0xc8] sm:$0xf]
    %v777 = vld [vmem:[#allocation3 + $0xcc] sm:$0xf]
    %v778 = vld [vmem:[#allocation3 + $0xd0] sm:$0xf]
    %v779 = vld [vmem:[#allocation3 + $0xd4] sm:$0xf]
    %v780 = vld [vmem:[#allocation3 + $0xd8] sm:$0xf]
    %v781 = vld [vmem:[#allocation3 + $0xdc] sm:$0xf]
    %v782 = vld [vmem:[#allocation3 + $0xe0] sm:$0xf]
    %v783 = vld [vmem:[#allocation3 + $0xe4] sm:$0xf]
    %v784 = vld [vmem:[#allocation3 + $0xe8] sm:$0xf]
    %v785 = vld [vmem:[#allocation3 + $0xec] sm:$0xf]
    %v786 = vld [vmem:[#allocation3 + $0xf0] sm:$0xf]
    %v787 = vld [vmem:[#allocation3 + $0xf4] sm:$0xf]
    %v788 = vld [vmem:[#allocation3 + $0xf8] sm:$0xf]
    %v789 = vld [vmem:[#allocation3 + $0xfc] sm:$0xf]
    %v790 = vld [vmem:[#allocation3 + $0x100] sm:$0xf]
    %v791 = vld [vmem:[#allocation3 + $0x104] sm:$0xf]
    %v792 = vld [vmem:[#allocation3 + $0x108] sm:$0xf]
    %v793 = vld [vmem:[#allocation3 + $0x10c] sm:$0xf]
    %v794 = vld [vmem:[#allocation3 + $0x110] sm:$0xf]
    %v795 = vld [vmem:[#allocation3 + $0x114] sm:$0xf]
    %v796 = vld [vmem:[#allocation3 + $0x118] sm:$0xf]
    %v797 = vld [vmem:[#allocation3 + $0x11c] sm:$0xf]
    %v798 = vld [vmem:[#allocation3 + $0x120] sm:$0xf]
    %v799 = vld [vmem:[#allocation3 + $0x124] sm:$0xf]
    %v800 = vld [vmem:[#allocation3 + $0x128] sm:$0xf]
    %v801 = vld [vmem:[#allocation3 + $0x12c] sm:$0xf]
    %v802 = vld [vmem:[#allocation3 + $0x130] sm:$0xf]
    %v803 = vld [vmem:[#allocation3 + $0x134] sm:$0xf]
    %v804 = vld [vmem:[#allocation3 + $0x138] sm:$0xf]
    %v805 = vld [vmem:[#allocation3 + $0x13c] sm:$0xf]
    %v806 = vld [vmem:[#allocation2 + $0x6] sm:$0xff]
    %v807 = vld [vmem:[#allocation2 + $0xe] sm:$0xff]
    %v808 = vld [vmem:[#allocation2 + $0x16] sm:$0xff]
    %v809 = vld [vmem:[#allocation2 + $0x1e] sm:$0xff]
    %v810 = vld [vmem:[#allocation2 + $0x26] sm:$0xff]
    %v811 = vld [vmem:[#allocation2 + $0x2e] sm:$0xf]
    %v812 = vld [vmem:[#allocation2 + $0x7] sm:$0xff]
    %v813 = vld [vmem:[#allocation2 + $0xf] sm:$0xff]
    %v814 = vld [vmem:[#allocation2 + $0x17] sm:$0xff]
    %v815 = vld [vmem:[#allocation2 + $0x1f] sm:$0xff]
    %v816 = vld [vmem:[#allocation2 + $0x27] sm:$0xff]
    %v817 = vld [vmem:[#allocation2 + $0x2f] sm:$0xf]
    %v818 = vld [vmem:[#allocation2 + $0x28] sm:$0xff]
    %v819 = vld [vmem:[#allocation2 + $0x30] sm:$0xf]
    %v820 = vld [vmem:[#allocation2 + $0x29] sm:$0xff]
    %v821 = vld [vmem:[#allocation2 + $0x31] sm:$0xf]
    %v822 = vld [vmem:[#allocation2 + $0x2a] sm:$0xff]
    %v823 = vld [vmem:[#allocation2 + $0x32] sm:$0xf]
    %v824 = vpack.c.bf16 %v807, %v806
    %v825 = vpack.c.bf16 %v813, %v812
    %v826 = vpack.c.bf16 %v683, %v682
    %v827 = vpack.c.bf16 %v689, %v688
    %v828 = vpack.c.bf16 %v695, %v694
    %v829 = vpack.c.bf16 %v809, %v808
    %v830 = vpack.c.bf16 %v815, %v814
    %v831 = vpack.c.bf16 %v685, %v684
    %v832 = vpack.c.bf16 %v691, %v690
    %v833 = vpack.c.bf16 %v697, %v696
    %v834 = vpack.c.bf16 %v811, %v810
    %v835 = vpack.c.bf16 %v817, %v816
    %v836 = vpack.c.bf16 %v819, %v818
    %v837 = vpack.c.bf16 %v821, %v820
    %v838 = vpack.c.bf16 %v823, %v822
    %s839 = scalar_lea.vmem [#allocation3], 320
    %v840 = vld [vmem:[%s839] sm:$0xf]
    %v841 = vld [vmem:[%s839 + $0x4] sm:$0xf]
    %v842 = vld [vmem:[%s839 + $0x8] sm:$0xf]
    %v843 = vld [vmem:[%s839 + $0xc] sm:$0xf]
    %v844 = vld [vmem:[%s839 + $0x10] sm:$0xf]
    %v845 = vld [vmem:[%s839 + $0x14] sm:$0xf]
    %v846 = vld [vmem:[%s839 + $0x18] sm:$0xf]
    %v847 = vld [vmem:[%s839 + $0x1c] sm:$0xf]
    %v848 = vld [vmem:[%s839 + $0x20] sm:$0xf]
    %v849 = vld [vmem:[%s839 + $0x24] sm:$0xf]
    %v850 = vld [vmem:[%s839 + $0x28] sm:$0xf]
    %v851 = vld [vmem:[%s839 + $0x2c] sm:$0xf]
    %v852 = vld [vmem:[%s839 + $0x30] sm:$0xf]
    %v853 = vld [vmem:[%s839 + $0x34] sm:$0xf]
    %v854 = vld [vmem:[%s839 + $0x38] sm:$0xf]
    %v855 = vld [vmem:[%s839 + $0x3c] sm:$0xf]
    %v856 = vld [vmem:[%s839 + $0x40] sm:$0xf]
    %v857 = vld [vmem:[%s839 + $0x44] sm:$0xf]
    %v858 = vld [vmem:[%s839 + $0x48] sm:$0xf]
    %v859 = vld [vmem:[%s839 + $0x4c] sm:$0xf]
    %v860 = vld [vmem:[%s839 + $0x50] sm:$0xf]
    %v861 = vld [vmem:[%s839 + $0x54] sm:$0xf]
    %v862 = vld [vmem:[%s839 + $0x58] sm:$0xf]
    %v863 = vld [vmem:[%s839 + $0x5c] sm:$0xf]
    %v864 = vld [vmem:[%s839 + $0x60] sm:$0xf]
    %v865 = vld [vmem:[%s839 + $0x64] sm:$0xf]
    %v866 = vld [vmem:[%s839 + $0x68] sm:$0xf]
    %v867 = vld [vmem:[%s839 + $0x6c] sm:$0xf]
    %v868 = vld [vmem:[%s839 + $0x70] sm:$0xf]
    %v869 = vld [vmem:[%s839 + $0x74] sm:$0xf]
    %v870 = vld [vmem:[%s839 + $0x78] sm:$0xf]
    %v871 = vld [vmem:[%s839 + $0x7c] sm:$0xf]
    %v872 = vld [vmem:[%s839 + $0x80] sm:$0xf]
    %v873 = vld [vmem:[%s839 + $0x84] sm:$0xf]
    %v874 = vld [vmem:[%s839 + $0x88] sm:$0xf]
    %v875 = vld [vmem:[%s839 + $0x8c] sm:$0xf]
    %v876 = vld [vmem:[%s839 + $0x90] sm:$0xf]
    %v877 = vld [vmem:[%s839 + $0x94] sm:$0xf]
    %v878 = vld [vmem:[%s839 + $0x98] sm:$0xf]
    %v879 = vld [vmem:[%s839 + $0x9c] sm:$0xf]
    %v880 = vld [vmem:[%s839 + $0xa0] sm:$0xf]
    %v881 = vld [vmem:[%s839 + $0xa4] sm:$0xf]
    %v882 = vld [vmem:[%s839 + $0xa8] sm:$0xf]
    %v883 = vld [vmem:[%s839 + $0xac] sm:$0xf]
    %v884 = vld [vmem:[%s839 + $0xb0] sm:$0xf]
    %v885 = vld [vmem:[%s839 + $0xb4] sm:$0xf]
    %v886 = vld [vmem:[%s839 + $0xb8] sm:$0xf]
    %v887 = vld [vmem:[%s839 + $0xbc] sm:$0xf]
    %v888 = vld [vmem:[%s839 + $0xc0] sm:$0xf]
    %v889 = vld [vmem:[%s839 + $0xc4] sm:$0xf]
    %v890 = vld [vmem:[%s839 + $0xc8] sm:$0xf]
    %v891 = vld [vmem:[%s839 + $0xcc] sm:$0xf]
    %v892 = vld [vmem:[%s839 + $0xd0] sm:$0xf]
    %v893 = vld [vmem:[%s839 + $0xd4] sm:$0xf]
    %v894 = vld [vmem:[%s839 + $0xd8] sm:$0xf]
    %v895 = vld [vmem:[%s839 + $0xdc] sm:$0xf]
    %v896 = vld [vmem:[%s839 + $0xe0] sm:$0xf]
    %v897 = vld [vmem:[%s839 + $0xe4] sm:$0xf]
    %v898 = vld [vmem:[%s839 + $0xe8] sm:$0xf]
    %v899 = vld [vmem:[%s839 + $0xec] sm:$0xf]
    %v900 = vld [vmem:[%s839 + $0xf0] sm:$0xf]
    %v901 = vld [vmem:[%s839 + $0xf4] sm:$0xf]
    %v902 = vld [vmem:[%s839 + $0xf8] sm:$0xf]
    %v903 = vld [vmem:[%s839 + $0xfc] sm:$0xf]
    %v904 = vld [vmem:[%s839 + $0x100] sm:$0xf]
    %v905 = vld [vmem:[%s839 + $0x104] sm:$0xf]
    %v906 = vld [vmem:[%s839 + $0x108] sm:$0xf]
    %v907 = vld [vmem:[%s839 + $0x10c] sm:$0xf]
    %v908 = vld [vmem:[%s839 + $0x110] sm:$0xf]
    %v909 = vld [vmem:[%s839 + $0x114] sm:$0xf]
    %v910 = vld [vmem:[%s839 + $0x118] sm:$0xf]
    %v911 = vld [vmem:[%s839 + $0x11c] sm:$0xf]
    %v912 = vld [vmem:[%s839 + $0x120] sm:$0xf]
    %v913 = vld [vmem:[%s839 + $0x124] sm:$0xf]
    %v914 = vld [vmem:[%s839 + $0x128] sm:$0xf]
    %v915 = vld [vmem:[%s839 + $0x12c] sm:$0xf]
    %v916 = vld [vmem:[%s839 + $0x130] sm:$0xf]
    %v917 = vld [vmem:[%s839 + $0x134] sm:$0xf]
    %v918 = vld [vmem:[%s839 + $0x138] sm:$0xf]
    %v919 = vld [vmem:[%s839 + $0x13c] sm:$0xf]
    %v1000 = vunpack.c.l.b16 %v840
    %v1001 = vunpack.c.l.b16 %v841
    %v1002 = vunpack.c.l.b16 %v842
    %v1003 = vunpack.c.l.b16 %v843
    %v1004 = vunpack.c.l.b16 %v844
    %v1005 = vunpack.c.l.b16 %v845
    %v1006 = vunpack.c.l.b16 %v846
    %v1007 = vunpack.c.l.b16 %v847
    %v1008 = vunpack.c.l.b16 %v848
    %v1009 = vunpack.c.l.b16 %v849
    %v1010 = vunpack.c.l.b16 %v850
    %v1011 = vunpack.c.l.b16 %v851
    %v1012 = vunpack.c.l.b16 %v852
    %v1013 = vunpack.c.l.b16 %v853
    %v1014 = vunpack.c.l.b16 %v854
    %v1015 = vunpack.c.l.b16 %v855
    %v1016 = vunpack.c.l.b16 %v856
    %v1017 = vunpack.c.l.b16 %v857
    %v1018 = vunpack.c.l.b16 %v858
    %v1019 = vunpack.c.l.b16 %v859
    %v1020 = vunpack.c.l.b16 %v860
    %v1021 = vunpack.c.l.b16 %v861
    %v1022 = vunpack.c.l.b16 %v862
    %v1023 = vunpack.c.l.b16 %v863
    %v1024 = vunpack.c.l.b16 %v864
    %v1025 = vunpack.c.l.b16 %v865
    %v1026 = vunpack.c.l.b16 %v866
    %v1027 = vunpack.c.l.b16 %v867
    %v1028 = vunpack.c.l.b16 %v868
    %v1029 = vunpack.c.l.b16 %v869
    %v1030 = vunpack.c.l.b16 %v870
    %v1031 = vunpack.c.l.b16 %v871
    %v1032 = vunpack.c.l.b16 %v872
    %v1033 = vunpack.c.l.b16 %v873
    %v1034 = vunpack.c.l.b16 %v874
    %v1035 = vunpack.c.l.b16 %v875
    %v1036 = vunpack.c.l.b16 %v876
    %v1037 = vunpack.c.l.b16 %v877
    %v1038 = vunpack.c.l.b16 %v878
    %v1039 = vunpack.c.l.b16 %v879
    %v1040 = vunpack.c.l.b16 %v880
    %v1041 = vunpack.c.l.b16 %v881
    %v1042 = vunpack.c.l.b16 %v882
    %v1043 = vunpack.c.l.b16 %v883
    %v1044 = vunpack.c.l.b16 %v884
    %v1045 = vunpack.c.l.b16 %v885
    %v1046 = vunpack.c.l.b16 %v886
    %v1047 = vunpack.c.l.b16 %v887
    %v1048 = vunpack.c.l.b16 %v888
    %v1049 = vunpack.c.l.b16 %v889
    %v1050 = vunpack.c.l.b16 %v890
    %v1051 = vunpack.c.l.b16 %v891
    %v1052 = vunpack.c.l.b16 %v892
    %v1053 = vunpack.c.l.b16 %v893
    %v1054 = vunpack.c.l.b16 %v894
    %v1055 = vunpack.c.l.b16 %v895
    %v1056 = vunpack.c.l.b16 %v896
    %v1057 = vunpack.c.l.b16 %v897
    %v1058 = vunpack.c.l.b16 %v898
    %v1059 = vunpack.c.l.b16 %v899
    %v1060 = vunpack.c.l.b16 %v900
    %v1061 = vunpack.c.l.b16 %v901
    %v1062 = vunpack.c.l.b16 %v902
    %v1063 = vunpack.c.l.b16 %v903
    %v1064 = vunpack.c.l.b16 %v904
    %v1065 = vunpack.c.l.b16 %v905
    %v1066 = vunpack.c.l.b16 %v906
    %v1067 = vunpack.c.l.b16 %v907
    %v1068 = vunpack.c.l.b16 %v908
    %v1069 = vunpack.c.l.b16 %v909
    %v1070 = vunpack.c.l.b16 %v910
    %v1071 = vunpack.c.l.b16 %v911
    %v1072 = vunpack.c.l.b16 %v912
    %v1073 = vunpack.c.l.b16 %v913
    %v1074 = vunpack.c.l.b16 %v914
    %v1075 = vunpack.c.l.b16 %v915
    %v1076 = vunpack.c.l.b16 %v916
    %v1077 = vunpack.c.l.b16 %v917
    %v1078 = vunpack.c.l.b16 %v918
    %v1079 = vunpack.c.l.b16 %v919
    %v1080 = vpack.c.b16 %v1001, %v1000
    %v1081 = vpack.c.b16 %v1003, %v1002
    %v1082 = vpack.c.b16 %v1005, %v1004
    %v1083 = vpack.c.b16 %v1007, %v1006
    %v1084 = vpack.c.b16 %v1009, %v1008
    %v1085 = vpack.c.b16 %v1011, %v1010
    %v1086 = vpack.c.b16 %v1013, %v1012
    %v1087 = vpack.c.b16 %v1015, %v1014
    %v1088 = vpack.c.b16 %v1017, %v1016
    %v1089 = vpack.c.b16 %v1019, %v1018
    %v1090 = vpack.c.b16 %v1021, %v1020
    %v1091 = vpack.c.b16 %v1023, %v1022
    %v1092 = vpack.c.b16 %v1025, %v1024
    %v1093 = vpack.c.b16 %v1027, %v1026
    %v1094 = vpack.c.b16 %v1029, %v1028
    %v1095 = vpack.c.b16 %v1031, %v1030
    %v1096 = vpack.c.b16 %v1033, %v1032
    %v1097 = vpack.c.b16 %v1035, %v1034
    %v1098 = vpack.c.b16 %v1037, %v1036
    %v1099 = vpack.c.b16 %v1039, %v1038
    %v1100 = vpack.c.b16 %v1041, %v1040
    %v1101 = vpack.c.b16 %v1043, %v1042
    %v1102 = vpack.c.b16 %v1045, %v1044
    %v1103 = vpack.c.b16 %v1047, %v1046
    %v1104 = vpack.c.b16 %v1049, %v1048
    %v1105 = vpack.c.b16 %v1051, %v1050
    %v1106 = vpack.c.b16 %v1053, %v1052
    %v1107 = vpack.c.b16 %v1055, %v1054
    %v1108 = vpack.c.b16 %v1057, %v1056
    %v1109 = vpack.c.b16 %v1059, %v1058
    %v1110 = vpack.c.b16 %v1061, %v1060
    %v1111 = vpack.c.b16 %v1063, %v1062
    %v1112 = vpack.c.b16 %v1065, %v1064
    %v1113 = vpack.c.b16 %v1067, %v1066
    %v1114 = vpack.c.b16 %v1069, %v1068
    %v1115 = vpack.c.b16 %v1071, %v1070
    %v1116 = vpack.c.b16 %v1073, %v1072
    %v1117 = vpack.c.b16 %v1075, %v1074
    %v1118 = vpack.c.b16 %v1077, %v1076
    %v1119 = vpack.c.b16 %v1079, %v1078
    %1160 = vmatpush.bf16.msra.mxu0 %v1087
    %1161 = vmatpush.bf16.msra.mxu0 %v1086
    %1162 = vmatpush.bf16.msra.mxu0 %v1085
    %1163 = vmatpush.bf16.msra.mxu0 %v1084
    %1164 = vmatpush.bf16.msra.mxu0 %v1083
    %1165 = vmatpush.bf16.msra.mxu0 %v1082
    %1166 = vmatpush.bf16.msra.mxu0 %v1081
    %1167 = vmatpush.bf16.msra.mxu0 %v1080
    %1168 = vmatmul.bf16.gmra.mxu0 %v824
    %v1169 = vpop.f32.mrf.mxu0
    %v1170 = vadd.f32 0.0, %v1169
    %v1171 = vpop.f32.mrf.mxu0
    %v1172 = vadd.f32 0.0, %v1171
    %1173 = vmatmul.bf16.gmra.mxu0 %v829
    %v1174 = vpop.f32.mrf.mxu0
    %v1175 = vadd.f32 0.0, %v1174
    %v1176 = vpop.f32.mrf.mxu0
    %1177 = vmatmul.bf16.gmra.mxu0 %v834
    %v1178 = vpop.f32.mrf.mxu0
    %v1179 = vadd.f32 0.0, %v1178
    %v1180 = vpop.f32.mrf.mxu0
    %v1181 = vadd.f32 0.0, %v1180
    %1182 = vdwg.mxu0
    %1183 = vmatpush.bf16.msra.mxu0 %v1095
    %1184 = vmatpush.bf16.msra.mxu0 %v1094
    %1185 = vmatpush.bf16.msra.mxu0 %v1093
    %1186 = vmatpush.bf16.msra.mxu0 %v1092
    %1187 = vmatpush.bf16.msra.mxu0 %v1091
    %1188 = vmatpush.bf16.msra.mxu0 %v1090
    %1189 = vmatpush.bf16.msra.mxu0 %v1089
    %1190 = vmatpush.bf16.msra.mxu0 %v1088
    %1191 = vmatmul.bf16.gmra.mxu0 %v825
    %v1192 = vpop.f32.mrf.mxu0
    %v1193 = vadd.f32 %v1170, %v1192
    %v1194 = vpop.f32.mrf.mxu0
    %v1195 = vadd.f32 %v1172, %v1194
    %1196 = vmatmul.bf16.gmra.mxu0 %v830
    %v1197 = vpop.f32.mrf.mxu0
    %v1198 = vadd.f32 %v1175, %v1197
    %v1199 = vpop.f32.mrf.mxu0
    %1200 = vmatmul.bf16.gmra.mxu0 %v835
    %v1201 = vpop.f32.mrf.mxu0
    %v1202 = vadd.f32 %v1179, %v1201
    %v1203 = vpop.f32.mrf.mxu0
    %v1204 = vadd.f32 %v1181, %v1203
    %1205 = vdwg.mxu0
    %1206 = vmatpush.bf16.msra.mxu0 %v1103
    %1207 = vmatpush.bf16.msra.mxu0 %v1102
    %1208 = vmatpush.bf16.msra.mxu0 %v1101
    %1209 = vmatpush.bf16.msra.mxu0 %v1100
    %1210 = vmatpush.bf16.msra.mxu0 %v1099
    %1211 = vmatpush.bf16.msra.mxu0 %v1098
    %1212 = vmatpush.bf16.msra.mxu0 %v1097
    %1213 = vmatpush.bf16.msra.mxu0 %v1096
    %1214 = vmatmul.bf16.gmra.mxu0 %v826
    %v1215 = vpop.f32.mrf.mxu0
    %v1216 = vadd.f32 %v1193, %v1215
    %v1217 = vpop.f32.mrf.mxu0
    %v1218 = vadd.f32 %v1195, %v1217
    %1219 = vmatmul.bf16.gmra.mxu0 %v831
    %v1220 = vpop.f32.mrf.mxu0
    %v1221 = vadd.f32 %v1198, %v1220
    %v1222 = vpop.f32.mrf.mxu0
    %1223 = vmatmul.bf16.gmra.mxu0 %v836
    %v1224 = vpop.f32.mrf.mxu0
    %v1225 = vadd.f32 %v1202, %v1224
    %v1226 = vpop.f32.mrf.mxu0
    %v1227 = vadd.f32 %v1204, %v1226
    %1228 = vdwg.mxu0
    %1229 = vmatpush.bf16.msra.mxu0 %v1111
    %1230 = vmatpush.bf16.msra.mxu0 %v1110
    %1231 = vmatpush.bf16.msra.mxu0 %v1109
    %1232 = vmatpush.bf16.msra.mxu0 %v1108
    %1233 = vmatpush.bf16.msra.mxu0 %v1107
    %1234 = vmatpush.bf16.msra.mxu0 %v1106
    %1235 = vmatpush.bf16.msra.mxu0 %v1105
    %1236 = vmatpush.bf16.msra.mxu0 %v1104
    %1237 = vmatmul.bf16.gmra.mxu0 %v827
    %v1238 = vpop.f32.mrf.mxu0
    %v1239 = vadd.f32 %v1216, %v1238
    %v1240 = vpop.f32.mrf.mxu0
    %v1241 = vadd.f32 %v1218, %v1240
    %1242 = vmatmul.bf16.gmra.mxu0 %v832
    %v1243 = vpop.f32.mrf.mxu0
    %v1244 = vadd.f32 %v1221, %v1243
    %v1245 = vpop.f32.mrf.mxu0
    %1246 = vmatmul.bf16.gmra.mxu0 %v837
    %v1247 = vpop.f32.mrf.mxu0
    %v1248 = vadd.f32 %v1225, %v1247
    %v1249 = vpop.f32.mrf.mxu0
    %v1250 = vadd.f32 %v1227, %v1249
    %1251 = vdwg.mxu0
    %1252 = vmatpush.bf16.msra.mxu0 %v1119
    %1253 = vmatpush.bf16.msra.mxu0 %v1118
    %1254 = vmatpush.bf16.msra.mxu0 %v1117
    %1255 = vmatpush.bf16.msra.mxu0 %v1116
    %1256 = vmatpush.bf16.msra.mxu0 %v1115
    %1257 = vmatpush.bf16.msra.mxu0 %v1114
    %1258 = vmatpush.bf16.msra.mxu0 %v1113
    %1259 = vmatpush.bf16.msra.mxu0 %v1112
    %1260 = vmatmul.bf16.gmra.mxu0 %v828
    %v1261 = vpop.f32.mrf.mxu0
    %v1262 = vadd.f32 %v1239, %v1261
    %v1263 = vpop.f32.mrf.mxu0
    %v1264 = vadd.f32 %v1241, %v1263
    %1265 = vmatmul.bf16.gmra.mxu0 %v833
    %v1266 = vpop.f32.mrf.mxu0
    %v1267 = vadd.f32 %v1244, %v1266
    %v1268 = vpop.f32.mrf.mxu0
    %1269 = vmatmul.bf16.gmra.mxu0 %v838
    %v1270 = vpop.f32.mrf.mxu0
    %v1271 = vadd.f32 %v1248, %v1270
    %v1272 = vpop.f32.mrf.mxu0
    %v1273 = vadd.f32 %v1250, %v1272
    %1274 = vdwg.mxu0
    %v1355 = vunpack.c.l.b16 %v726
    %v1356 = vunpack.c.l.b16 %v727
    %v1357 = vunpack.c.l.b16 %v728
    %v1358 = vunpack.c.l.b16 %v729
    %v1359 = vunpack.c.l.b16 %v730
    %v1360 = vunpack.c.l.b16 %v731
    %v1361 = vunpack.c.l.b16 %v732
    %v1362 = vunpack.c.l.b16 %v733
    %v1363 = vunpack.c.l.b16 %v734
    %v1364 = vunpack.c.l.b16 %v735
    %v1365 = vunpack.c.l.b16 %v736
    %v1366 = vunpack.c.l.b16 %v737
    %v1367 = vunpack.c.l.b16 %v738
    %v1368 = vunpack.c.l.b16 %v739
    %v1369 = vunpack.c.l.b16 %v740
    %v1370 = vunpack.c.l.b16 %v741
    %v1371 = vunpack.c.l.b16 %v742
    %v1372 = vunpack.c.l.b16 %v743
    %v1373 = vunpack.c.l.b16 %v744
    %v1374 = vunpack.c.l.b16 %v745
    %v1375 = vunpack.c.l.b16 %v746
    %v1376 = vunpack.c.l.b16 %v747
    %v1377 = vunpack.c.l.b16 %v748
    %v1378 = vunpack.c.l.b16 %v749
    %v1379 = vunpack.c.l.b16 %v750
    %v1380 = vunpack.c.l.b16 %v751
    %v1381 = vunpack.c.l.b16 %v752
    %v1382 = vunpack.c.l.b16 %v753
    %v1383 = vunpack.c.l.b16 %v754
    %v1384 = vunpack.c.l.b16 %v755
    %v1385 = vunpack.c.l.b16 %v756
    %v1386 = vunpack.c.l.b16 %v757
    %v1387 = vunpack.c.l.b16 %v758
    %v1388 = vunpack.c.l.b16 %v759
    %v1389 = vunpack.c.l.b16 %v760
    %v1390 = vunpack.c.l.b16 %v761
    %v1391 = vunpack.c.l.b16 %v762
    %v1392 = vunpack.c.l.b16 %v763
    %v1393 = vunpack.c.l.b16 %v764
    %v1394 = vunpack.c.l.b16 %v765
    %v1395 = vunpack.c.l.b16 %v766
    %v1396 = vunpack.c.l.b16 %v767
    %v1397 = vunpack.c.l.b16 %v768
    %v1398 = vunpack.c.l.b16 %v769
    %v1399 = vunpack.c.l.b16 %v770
    %v1400 = vunpack.c.l.b16 %v771
    %v1401 = vunpack.c.l.b16 %v772
    %v1402 = vunpack.c.l.b16 %v773
    %v1403 = vunpack.c.l.b16 %v774
    %v1404 = vunpack.c.l.b16 %v775
    %v1405 = vunpack.c.l.b16 %v776
    %v1406 = vunpack.c.l.b16 %v777
    %v1407 = vunpack.c.l.b16 %v778
    %v1408 = vunpack.c.l.b16 %v779
    %v1409 = vunpack.c.l.b16 %v780
    %v1410 = vunpack.c.l.b16 %v781
    %v1411 = vunpack.c.l.b16 %v782
    %v1412 = vunpack.c.l.b16 %v783
    %v1413 = vunpack.c.l.b16 %v784
    %v1414 = vunpack.c.l.b16 %v785
    %v1415 = vunpack.c.l.b16 %v786
    %v1416 = vunpack.c.l.b16 %v787
    %v1417 = vunpack.c.l.b16 %v788
    %v1418 = vunpack.c.l.b16 %v789
    %v1419 = vunpack.c.l.b16 %v790
    %v1420 = vunpack.c.l.b16 %v791
    %v1421 = vunpack.c.l.b16 %v792
    %v1422 = vunpack.c.l.b16 %v793
    %v1423 = vunpack.c.l.b16 %v794
    %v1424 = vunpack.c.l.b16 %v795
    %v1425 = vunpack.c.l.b16 %v796
    %v1426 = vunpack.c.l.b16 %v797
    %v1427 = vunpack.c.l.b16 %v798
    %v1428 = vunpack.c.l.b16 %v799
    %v1429 = vunpack.c.l.b16 %v800
    %v1430 = vunpack.c.l.b16 %v801
    %v1431 = vunpack.c.l.b16 %v802
    %v1432 = vunpack.c.l.b16 %v803
    %v1433 = vunpack.c.l.b16 %v804
    %v1434 = vunpack.c.l.b16 %v805
    %v1435 = vpack.c.b16 %v1356, %v1355
    %v1436 = vpack.c.b16 %v1358, %v1357
    %v1437 = vpack.c.b16 %v1360, %v1359
    %v1438 = vpack.c.b16 %v1362, %v1361
    %v1439 = vpack.c.b16 %v1364, %v1363
    %v1440 = vpack.c.b16 %v1366, %v1365
    %v1441 = vpack.c.b16 %v1368, %v1367
    %v1442 = vpack.c.b16 %v1370, %v1369
    %v1443 = vpack.c.b16 %v1372, %v1371
    %v1444 = vpack.c.b16 %v1374, %v1373
    %v1445 = vpack.c.b16 %v1376, %v1375
    %v1446 = vpack.c.b16 %v1378, %v1377
    %v1447 = vpack.c.b16 %v1380, %v1379
    %v1448 = vpack.c.b16 %v1382, %v1381
    %v1449 = vpack.c.b16 %v1384, %v1383
    %v1450 = vpack.c.b16 %v1386, %v1385
    %v1451 = vpack.c.b16 %v1388, %v1387
    %v1452 = vpack.c.b16 %v1390, %v1389
    %v1453 = vpack.c.b16 %v1392, %v1391
    %v1454 = vpack.c.b16 %v1394, %v1393
    %v1455 = vpack.c.b16 %v1396, %v1395
    %v1456 = vpack.c.b16 %v1398, %v1397
    %v1457 = vpack.c.b16 %v1400, %v1399
    %v1458 = vpack.c.b16 %v1402, %v1401
    %v1459 = vpack.c.b16 %v1404, %v1403
    %v1460 = vpack.c.b16 %v1406, %v1405
    %v1461 = vpack.c.b16 %v1408, %v1407
    %v1462 = vpack.c.b16 %v1410, %v1409
    %v1463 = vpack.c.b16 %v1412, %v1411
    %v1464 = vpack.c.b16 %v1414, %v1413
    %v1465 = vpack.c.b16 %v1416, %v1415
    %v1466 = vpack.c.b16 %v1418, %v1417
    %v1467 = vpack.c.b16 %v1420, %v1419
    %v1468 = vpack.c.b16 %v1422, %v1421
    %v1469 = vpack.c.b16 %v1424, %v1423
    %v1470 = vpack.c.b16 %v1426, %v1425
    %v1471 = vpack.c.b16 %v1428, %v1427
    %v1472 = vpack.c.b16 %v1430, %v1429
    %v1473 = vpack.c.b16 %v1432, %v1431
    %v1474 = vpack.c.b16 %v1434, %v1433
    %1515 = vmatpush.bf16.msra.mxu0 %v1442
    %1516 = vmatpush.bf16.msra.mxu0 %v1441
    %1517 = vmatpush.bf16.msra.mxu0 %v1440
    %1518 = vmatpush.bf16.msra.mxu0 %v1439
    %1519 = vmatpush.bf16.msra.mxu0 %v1438
    %1520 = vmatpush.bf16.msra.mxu0 %v1437
    %1521 = vmatpush.bf16.msra.mxu0 %v1436
    %1522 = vmatpush.bf16.msra.mxu0 %v1435
    %1523 = vmatmul.bf16.gmra.mxu0 %v711
    %v1524 = vpop.f32.mrf.mxu0
    %v1525 = vadd.f32 %v1262, %v1524
    %v1526 = vpop.f32.mrf.mxu0
    %v1527 = vadd.f32 %v1264, %v1526
    %1528 = vmatmul.bf16.gmra.mxu0 %v716
    %v1529 = vpop.f32.mrf.mxu0
    %v1530 = vadd.f32 %v1267, %v1529
    %v1531 = vpop.f32.mrf.mxu0
    %1532 = vmatmul.bf16.gmra.mxu0 %v721
    %v1533 = vpop.f32.mrf.mxu0
    %v1534 = vadd.f32 %v1271, %v1533
    %v1535 = vpop.f32.mrf.mxu0
    %v1536 = vadd.f32 %v1273, %v1535
    %1537 = vdwg.mxu0
    %1538 = vmatpush.bf16.msra.mxu0 %v1450
    %1539 = vmatpush.bf16.msra.mxu0 %v1449
    %1540 = vmatpush.bf16.msra.mxu0 %v1448
    %1541 = vmatpush.bf16.msra.mxu0 %v1447
    %1542 = vmatpush.bf16.msra.mxu0 %v1446
    %1543 = vmatpush.bf16.msra.mxu0 %v1445
    %1544 = vmatpush.bf16.msra.mxu0 %v1444
    %1545 = vmatpush.bf16.msra.mxu0 %v1443
    %1546 = vmatmul.bf16.gmra.mxu0 %v712
    %v1547 = vpop.f32.mrf.mxu0
    %v1548 = vadd.f32 %v1525, %v1547
    %v1549 = vpop.f32.mrf.mxu0
    %v1550 = vadd.f32 %v1527, %v1549
    %1551 = vmatmul.bf16.gmra.mxu0 %v717
    %v1552 = vpop.f32.mrf.mxu0
    %v1553 = vadd.f32 %v1530, %v1552
    %v1554 = vpop.f32.mrf.mxu0
    %1555 = vmatmul.bf16.gmra.mxu0 %v722
    %v1556 = vpop.f32.mrf.mxu0
    %v1557 = vadd.f32 %v1534, %v1556
    %v1558 = vpop.f32.mrf.mxu0
    %v1559 = vadd.f32 %v1536, %v1558
    %1560 = vdwg.mxu0
    %1561 = vmatpush.bf16.msra.mxu0 %v1458
    %1562 = vmatpush.bf16.msra.mxu0 %v1457
    %1563 = vmatpush.bf16.msra.mxu0 %v1456
    %1564 = vmatpush.bf16.msra.mxu0 %v1455
    %1565 = vmatpush.bf16.msra.mxu0 %v1454
    %1566 = vmatpush.bf16.msra.mxu0 %v1453
    %1567 = vmatpush.bf16.msra.mxu0 %v1452
    %1568 = vmatpush.bf16.msra.mxu0 %v1451
    %1569 = vmatmul.bf16.gmra.mxu0 %v713
    %v1570 = vpop.f32.mrf.mxu0
    %v1571 = vadd.f32 %v1548, %v1570
    %v1572 = vpop.f32.mrf.mxu0
    %v1573 = vadd.f32 %v1550, %v1572
    %1574 = vmatmul.bf16.gmra.mxu0 %v718
    %v1575 = vpop.f32.mrf.mxu0
    %v1576 = vadd.f32 %v1553, %v1575
    %v1577 = vpop.f32.mrf.mxu0
    %1578 = vmatmul.bf16.gmra.mxu0 %v723
    %v1579 = vpop.f32.mrf.mxu0
    %v1580 = vadd.f32 %v1557, %v1579
    %v1581 = vpop.f32.mrf.mxu0
    %v1582 = vadd.f32 %v1559, %v1581
    %1583 = vdwg.mxu0
    %1584 = vmatpush.bf16.msra.mxu0 %v1466
    %1585 = vmatpush.bf16.msra.mxu0 %v1465
    %1586 = vmatpush.bf16.msra.mxu0 %v1464
    %1587 = vmatpush.bf16.msra.mxu0 %v1463
    %1588 = vmatpush.bf16.msra.mxu0 %v1462
    %1589 = vmatpush.bf16.msra.mxu0 %v1461
    %1590 = vmatpush.bf16.msra.mxu0 %v1460
    %1591 = vmatpush.bf16.msra.mxu0 %v1459
    %1592 = vmatmul.bf16.gmra.mxu0 %v714
    %v1593 = vpop.f32.mrf.mxu0
    %v1594 = vadd.f32 %v1571, %v1593
    %v1595 = vpop.f32.mrf.mxu0
    %v1596 = vadd.f32 %v1573, %v1595
    %1597 = vmatmul.bf16.gmra.mxu0 %v719
    %v1598 = vpop.f32.mrf.mxu0
    %v1599 = vadd.f32 %v1576, %v1598
    %v1600 = vpop.f32.mrf.mxu0
    %1601 = vmatmul.bf16.gmra.mxu0 %v724
    %v1602 = vpop.f32.mrf.mxu0
    %v1603 = vadd.f32 %v1580, %v1602
    %v1604 = vpop.f32.mrf.mxu0
    %v1605 = vadd.f32 %v1582, %v1604
    %1606 = vdwg.mxu0
    %1607 = vmatpush.bf16.msra.mxu0 %v1474
    %1608 = vmatpush.bf16.msra.mxu0 %v1473
    %1609 = vmatpush.bf16.msra.mxu0 %v1472
    %1610 = vmatpush.bf16.msra.mxu0 %v1471
    %1611 = vmatpush.bf16.msra.mxu0 %v1470
    %1612 = vmatpush.bf16.msra.mxu0 %v1469
    %1613 = vmatpush.bf16.msra.mxu0 %v1468
    %1614 = vmatpush.bf16.msra.mxu0 %v1467
    %1615 = vmatmul.bf16.gmra.mxu0 %v715
    %v1616 = vpop.f32.mrf.mxu0
    %v1617 = vadd.f32 %v1594, %v1616
    %v1618 = vpop.f32.mrf.mxu0
    %v1619 = vadd.f32 %v1596, %v1618
    %1620 = vmatmul.bf16.gmra.mxu0 %v720
    %v1621 = vpop.f32.mrf.mxu0
    %v1622 = vadd.f32 %v1599, %v1621
    %v1623 = vpop.f32.mrf.mxu0
    %1624 = vmatmul.bf16.gmra.mxu0 %v725
    %v1625 = vpop.f32.mrf.mxu0
    %v1626 = vadd.f32 %v1603, %v1625
    %v1627 = vpop.f32.mrf.mxu0
    %v1628 = vadd.f32 %v1605, %v1627
    %1629 = vdwg.mxu0
    %v1630 = vld [vmem:[#allocation2 + $0xc] sm:$0xff]
    %v1631 = vld [vmem:[#allocation2 + $0x14] sm:$0xff]
    %v1632 = vld [vmem:[#allocation2 + $0x1c] sm:$0xff]
    %v1633 = vld [vmem:[#allocation2 + $0x24] sm:$0xff]
    %v1634 = vld [vmem:[#allocation2 + $0x2c] sm:$0xff]
    %v1635 = vld [vmem:[#allocation2 + $0x34] sm:$0xf]
    %v1636 = vld [vmem:[#allocation2 + $0xd] sm:$0xff]
    %v1637 = vld [vmem:[#allocation2 + $0x15] sm:$0xff]
    %v1638 = vld [vmem:[#allocation2 + $0x1d] sm:$0xff]
    %v1639 = vld [vmem:[#allocation2 + $0x25] sm:$0xff]
    %v1640 = vld [vmem:[#allocation2 + $0x2d] sm:$0xff]
    %v1641 = vld [vmem:[#allocation2 + $0x35] sm:$0xf]
    %v1642 = vld [vmem:[#allocation2 + $0xe] sm:$0xff]
    %v1643 = vld [vmem:[#allocation2 + $0x16] sm:$0xff]
    %v1644 = vld [vmem:[#allocation2 + $0x1e] sm:$0xff]
    %v1645 = vld [vmem:[#allocation2 + $0x26] sm:$0xff]
    %v1646 = vld [vmem:[#allocation2 + $0x2e] sm:$0xff]
    %v1647 = vld [vmem:[#allocation2 + $0x36] sm:$0xf]
    %v1648 = vld [vmem:[#allocation2 + $0xf] sm:$0xff]
    %v1649 = vld [vmem:[#allocation2 + $0x17] sm:$0xff]
    %v1650 = vld [vmem:[#allocation2 + $0x1f] sm:$0xff]
    %v1651 = vld [vmem:[#allocation2 + $0x27] sm:$0xff]
    %v1652 = vld [vmem:[#allocation2 + $0x2f] sm:$0xff]
    %v1653 = vld [vmem:[#allocation2 + $0x37] sm:$0xf]
    %v1654 = vld [vmem:[#allocation2 + $0x10] sm:$0xff]
    %v1655 = vld [vmem:[#allocation2 + $0x18] sm:$0xff]
    %v1656 = vld [vmem:[#allocation2 + $0x20] sm:$0xff]
    %v1657 = vld [vmem:[#allocation2 + $0x28] sm:$0xff]
    %v1658 = vld [vmem:[#allocation2 + $0x30] sm:$0xff]
    %v1659 = vld [vmem:[#allocation2 + $0x38] sm:$0xf]
    %v1660 = vpack.c.bf16 %v1631, %v1630
    %v1661 = vpack.c.bf16 %v1637, %v1636
    %v1662 = vpack.c.bf16 %v1643, %v1642
    %v1663 = vpack.c.bf16 %v1649, %v1648
    %v1664 = vpack.c.bf16 %v1655, %v1654
    %v1665 = vpack.c.bf16 %v1633, %v1632
    %v1666 = vpack.c.bf16 %v1639, %v1638
    %v1667 = vpack.c.bf16 %v1645, %v1644
    %v1668 = vpack.c.bf16 %v1651, %v1650
    %v1669 = vpack.c.bf16 %v1657, %v1656
    %v1670 = vpack.c.bf16 %v1635, %v1634
    %v1671 = vpack.c.bf16 %v1641, %v1640
    %v1672 = vpack.c.bf16 %v1647, %v1646
    %v1673 = vpack.c.bf16 %v1653, %v1652
    %v1674 = vpack.c.bf16 %v1659, %v1658
    %s1675 = scalar_lea.vmem [#allocation3], 640
    %v1676 = vld [vmem:[%s1675] sm:$0xf]
    %v1677 = vld [vmem:[%s1675 + $0x4] sm:$0xf]
    %v1678 = vld [vmem:[%s1675 + $0x8] sm:$0xf]
    %v1679 = vld [vmem:[%s1675 + $0xc] sm:$0xf]
    %v1680 = vld [vmem:[%s1675 + $0x10] sm:$0xf]
    %v1681 = vld [vmem:[%s1675 + $0x14] sm:$0xf]
    %v1682 = vld [vmem:[%s1675 + $0x18] sm:$0xf]
    %v1683 = vld [vmem:[%s1675 + $0x1c] sm:$0xf]
    %v1684 = vld [vmem:[%s1675 + $0x20] sm:$0xf]
    %v1685 = vld [vmem:[%s1675 + $0x24] sm:$0xf]
    %v1686 = vld [vmem:[%s1675 + $0x28] sm:$0xf]
    %v1687 = vld [vmem:[%s1675 + $0x2c] sm:$0xf]
    %v1688 = vld [vmem:[%s1675 + $0x30] sm:$0xf]
    %v1689 = vld [vmem:[%s1675 + $0x34] sm:$0xf]
    %v1690 = vld [vmem:[%s1675 + $0x38] sm:$0xf]
    %v1691 = vld [vmem:[%s1675 + $0x3c] sm:$0xf]
    %v1692 = vld [vmem:[%s1675 + $0x40] sm:$0xf]
    %v1693 = vld [vmem:[%s1675 + $0x44] sm:$0xf]
    %v1694 = vld [vmem:[%s1675 + $0x48] sm:$0xf]
    %v1695 = vld [vmem:[%s1675 + $0x4c] sm:$0xf]
    %v1696 = vld [vmem:[%s1675 + $0x50] sm:$0xf]
    %v1697 = vld [vmem:[%s1675 + $0x54] sm:$0xf]
    %v1698 = vld [vmem:[%s1675 + $0x58] sm:$0xf]
    %v1699 = vld [vmem:[%s1675 + $0x5c] sm:$0xf]
    %v1700 = vld [vmem:[%s1675 + $0x60] sm:$0xf]
    %v1701 = vld [vmem:[%s1675 + $0x64] sm:$0xf]
    %v1702 = vld [vmem:[%s1675 + $0x68] sm:$0xf]
    %v1703 = vld [vmem:[%s1675 + $0x6c] sm:$0xf]
    %v1704 = vld [vmem:[%s1675 + $0x70] sm:$0xf]
    %v1705 = vld [vmem:[%s1675 + $0x74] sm:$0xf]
    %v1706 = vld [vmem:[%s1675 + $0x78] sm:$0xf]
    %v1707 = vld [vmem:[%s1675 + $0x7c] sm:$0xf]
    %v1708 = vld [vmem:[%s1675 + $0x80] sm:$0xf]
    %v1709 = vld [vmem:[%s1675 + $0x84] sm:$0xf]
    %v1710 = vld [vmem:[%s1675 + $0x88] sm:$0xf]
    %v1711 = vld [vmem:[%s1675 + $0x8c] sm:$0xf]
    %v1712 = vld [vmem:[%s1675 + $0x90] sm:$0xf]
    %v1713 = vld [vmem:[%s1675 + $0x94] sm:$0xf]
    %v1714 = vld [vmem:[%s1675 + $0x98] sm:$0xf]
    %v1715 = vld [vmem:[%s1675 + $0x9c] sm:$0xf]
    %v1716 = vld [vmem:[%s1675 + $0xa0] sm:$0xf]
    %v1717 = vld [vmem:[%s1675 + $0xa4] sm:$0xf]
    %v1718 = vld [vmem:[%s1675 + $0xa8] sm:$0xf]
    %v1719 = vld [vmem:[%s1675 + $0xac] sm:$0xf]
    %v1720 = vld [vmem:[%s1675 + $0xb0] sm:$0xf]
    %v1721 = vld [vmem:[%s1675 + $0xb4] sm:$0xf]
    %v1722 = vld [vmem:[%s1675 + $0xb8] sm:$0xf]
    %v1723 = vld [vmem:[%s1675 + $0xbc] sm:$0xf]
    %v1724 = vld [vmem:[%s1675 + $0xc0] sm:$0xf]
    %v1725 = vld [vmem:[%s1675 + $0xc4] sm:$0xf]
    %v1726 = vld [vmem:[%s1675 + $0xc8] sm:$0xf]
    %v1727 = vld [vmem:[%s1675 + $0xcc] sm:$0xf]
    %v1728 = vld [vmem:[%s1675 + $0xd0] sm:$0xf]
    %v1729 = vld [vmem:[%s1675 + $0xd4] sm:$0xf]
    %v1730 = vld [vmem:[%s1675 + $0xd8] sm:$0xf]
    %v1731 = vld [vmem:[%s1675 + $0xdc] sm:$0xf]
    %v1732 = vld [vmem:[%s1675 + $0xe0] sm:$0xf]
    %v1733 = vld [vmem:[%s1675 + $0xe4] sm:$0xf]
    %v1734 = vld [vmem:[%s1675 + $0xe8] sm:$0xf]
    %v1735 = vld [vmem:[%s1675 + $0xec] sm:$0xf]
    %v1736 = vld [vmem:[%s1675 + $0xf0] sm:$0xf]
    %v1737 = vld [vmem:[%s1675 + $0xf4] sm:$0xf]
    %v1738 = vld [vmem:[%s1675 + $0xf8] sm:$0xf]
    %v1739 = vld [vmem:[%s1675 + $0xfc] sm:$0xf]
    %v1740 = vld [vmem:[%s1675 + $0x100] sm:$0xf]
    %v1741 = vld [vmem:[%s1675 + $0x104] sm:$0xf]
    %v1742 = vld [vmem:[%s1675 + $0x108] sm:$0xf]
    %v1743 = vld [vmem:[%s1675 + $0x10c] sm:$0xf]
    %v1744 = vld [vmem:[%s1675 + $0x110] sm:$0xf]
    %v1745 = vld [vmem:[%s1675 + $0x114] sm:$0xf]
    %v1746 = vld [vmem:[%s1675 + $0x118] sm:$0xf]
    %v1747 = vld [vmem:[%s1675 + $0x11c] sm:$0xf]
    %v1748 = vld [vmem:[%s1675 + $0x120] sm:$0xf]
    %v1749 = vld [vmem:[%s1675 + $0x124] sm:$0xf]
    %v1750 = vld [vmem:[%s1675 + $0x128] sm:$0xf]
    %v1751 = vld [vmem:[%s1675 + $0x12c] sm:$0xf]
    %v1752 = vld [vmem:[%s1675 + $0x130] sm:$0xf]
    %v1753 = vld [vmem:[%s1675 + $0x134] sm:$0xf]
    %v1754 = vld [vmem:[%s1675 + $0x138] sm:$0xf]
    %v1755 = vld [vmem:[%s1675 + $0x13c] sm:$0xf]
    %v1836 = vunpack.c.l.b16 %v1676
    %v1837 = vunpack.c.l.b16 %v1677
    %v1838 = vunpack.c.l.b16 %v1678
    %v1839 = vunpack.c.l.b16 %v1679
    %v1840 = vunpack.c.l.b16 %v1680
    %v1841 = vunpack.c.l.b16 %v1681
    %v1842 = vunpack.c.l.b16 %v1682
    %v1843 = vunpack.c.l.b16 %v1683
    %v1844 = vunpack.c.l.b16 %v1684
    %v1845 = vunpack.c.l.b16 %v1685
    %v1846 = vunpack.c.l.b16 %v1686
    %v1847 = vunpack.c.l.b16 %v1687
    %v1848 = vunpack.c.l.b16 %v1688
    %v1849 = vunpack.c.l.b16 %v1689
    %v1850 = vunpack.c.l.b16 %v1690
    %v1851 = vunpack.c.l.b16 %v1691
    %v1852 = vunpack.c.l.b16 %v1692
    %v1853 = vunpack.c.l.b16 %v1693
    %v1854 = vunpack.c.l.b16 %v1694
    %v1855 = vunpack.c.l.b16 %v1695
    %v1856 = vunpack.c.l.b16 %v1696
    %v1857 = vunpack.c.l.b16 %v1697
    %v1858 = vunpack.c.l.b16 %v1698
    %v1859 = vunpack.c.l.b16 %v1699
    %v1860 = vunpack.c.l.b16 %v1700
    %v1861 = vunpack.c.l.b16 %v1701
    %v1862 = vunpack.c.l.b16 %v1702
    %v1863 = vunpack.c.l.b16 %v1703
    %v1864 = vunpack.c.l.b16 %v1704
    %v1865 = vunpack.c.l.b16 %v1705
    %v1866 = vunpack.c.l.b16 %v1706
    %v1867 = vunpack.c.l.b16 %v1707
    %v1868 = vunpack.c.l.b16 %v1708
    %v1869 = vunpack.c.l.b16 %v1709
    %v1870 = vunpack.c.l.b16 %v1710
    %v1871 = vunpack.c.l.b16 %v1711
    %v1872 = vunpack.c.l.b16 %v1712
    %v1873 = vunpack.c.l.b16 %v1713
    %v1874 = vunpack.c.l.b16 %v1714
    %v1875 = vunpack.c.l.b16 %v1715
    %v1876 = vunpack.c.l.b16 %v1716
    %v1877 = vunpack.c.l.b16 %v1717
    %v1878 = vunpack.c.l.b16 %v1718
    %v1879 = vunpack.c.l.b16 %v1719
    %v1880 = vunpack.c.l.b16 %v1720
    %v1881 = vunpack.c.l.b16 %v1721
    %v1882 = vunpack.c.l.b16 %v1722
    %v1883 = vunpack.c.l.b16 %v1723
    %v1884 = vunpack.c.l.b16 %v1724
    %v1885 = vunpack.c.l.b16 %v1725
    %v1886 = vunpack.c.l.b16 %v1726
    %v1887 = vunpack.c.l.b16 %v1727
    %v1888 = vunpack.c.l.b16 %v1728
    %v1889 = vunpack.c.l.b16 %v1729
    %v1890 = vunpack.c.l.b16 %v1730
    %v1891 = vunpack.c.l.b16 %v1731
    %v1892 = vunpack.c.l.b16 %v1732
    %v1893 = vunpack.c.l.b16 %v1733
    %v1894 = vunpack.c.l.b16 %v1734
    %v1895 = vunpack.c.l.b16 %v1735
    %v1896 = vunpack.c.l.b16 %v1736
    %v1897 = vunpack.c.l.b16 %v1737
    %v1898 = vunpack.c.l.b16 %v1738
    %v1899 = vunpack.c.l.b16 %v1739
    %v1900 = vunpack.c.l.b16 %v1740
    %v1901 = vunpack.c.l.b16 %v1741
    %v1902 = vunpack.c.l.b16 %v1742
    %v1903 = vunpack.c.l.b16 %v1743
    %v1904 = vunpack.c.l.b16 %v1744
    %v1905 = vunpack.c.l.b16 %v1745
    %v1906 = vunpack.c.l.b16 %v1746
    %v1907 = vunpack.c.l.b16 %v1747
    %v1908 = vunpack.c.l.b16 %v1748
    %v1909 = vunpack.c.l.b16 %v1749
    %v1910 = vunpack.c.l.b16 %v1750
    %v1911 = vunpack.c.l.b16 %v1751
    %v1912 = vunpack.c.l.b16 %v1752
    %v1913 = vunpack.c.l.b16 %v1753
    %v1914 = vunpack.c.l.b16 %v1754
    %v1915 = vunpack.c.l.b16 %v1755
    %v1916 = vpack.c.b16 %v1837, %v1836
    %v1917 = vpack.c.b16 %v1839, %v1838
    %v1918 = vpack.c.b16 %v1841, %v1840
    %v1919 = vpack.c.b16 %v1843, %v1842
    %v1920 = vpack.c.b16 %v1845, %v1844
    %v1921 = vpack.c.b16 %v1847, %v1846
    %v1922 = vpack.c.b16 %v1849, %v1848
    %v1923 = vpack.c.b16 %v1851, %v1850
    %v1924 = vpack.c.b16 %v1853, %v1852
    %v1925 = vpack.c.b16 %v1855, %v1854
    %v1926 = vpack.c.b16 %v1857, %v1856
    %v1927 = vpack.c.b16 %v1859, %v1858
    %v1928 = vpack.c.b16 %v1861, %v1860
    %v1929 = vpack.c.b16 %v1863, %v1862
    %v1930 = vpack.c.b16 %v1865, %v1864
    %v1931 = vpack.c.b16 %v1867, %v1866
    %v1932 = vpack.c.b16 %v1869, %v1868
    %v1933 = vpack.c.b16 %v1871, %v1870
    %v1934 = vpack.c.b16 %v1873, %v1872
    %v1935 = vpack.c.b16 %v1875, %v1874
    %v1936 = vpack.c.b16 %v1877, %v1876
    %v1937 = vpack.c.b16 %v1879, %v1878
    %v1938 = vpack.c.b16 %v1881, %v1880
    %v1939 = vpack.c.b16 %v1883, %v1882
    %v1940 = vpack.c.b16 %v1885, %v1884
    %v1941 = vpack.c.b16 %v1887, %v1886
    %v1942 = vpack.c.b16 %v1889, %v1888
    %v1943 = vpack.c.b16 %v1891, %v1890
    %v1944 = vpack.c.b16 %v1893, %v1892
    %v1945 = vpack.c.b16 %v1895, %v1894
    %v1946 = vpack.c.b16 %v1897, %v1896
    %v1947 = vpack.c.b16 %v1899, %v1898
    %v1948 = vpack.c.b16 %v1901, %v1900
    %v1949 = vpack.c.b16 %v1903, %v1902
    %v1950 = vpack.c.b16 %v1905, %v1904
    %v1951 = vpack.c.b16 %v1907, %v1906
    %v1952 = vpack.c.b16 %v1909, %v1908
    %v1953 = vpack.c.b16 %v1911, %v1910
    %v1954 = vpack.c.b16 %v1913, %v1912
    %v1955 = vpack.c.b16 %v1915, %v1914
    %1996 = vmatpush.bf16.msra.mxu0 %v1923
    %1997 = vmatpush.bf16.msra.mxu0 %v1922
    %1998 = vmatpush.bf16.msra.mxu0 %v1921
    %1999 = vmatpush.bf16.msra.mxu0 %v1920
    %2000 = vmatpush.bf16.msra.mxu0 %v1919
    %2001 = vmatpush.bf16.msra.mxu0 %v1918
    %2002 = vmatpush.bf16.msra.mxu0 %v1917
    %2003 = vmatpush.bf16.msra.mxu0 %v1916
    %2004 = vmatmul.bf16.gmra.mxu0 %v1660
    %v2005 = vpop.f32.mrf.mxu0
    %v2006 = vadd.f32 0.0, %v2005
    %v2007 = vpop.f32.mrf.mxu0
    %v2008 = vadd.f32 0.0, %v2007
    %2009 = vmatmul.bf16.gmra.mxu0 %v1665
    %v2010 = vpop.f32.mrf.mxu0
    %v2011 = vadd.f32 0.0, %v2010
    %v2012 = vpop.f32.mrf.mxu0
    %2013 = vmatmul.bf16.gmra.mxu0 %v1670
    %v2014 = vpop.f32.mrf.mxu0
    %v2015 = vadd.f32 0.0, %v2014
    %v2016 = vpop.f32.mrf.mxu0
    %v2017 = vadd.f32 0.0, %v2016
    %2018 = vdwg.mxu0
    %2019 = vmatpush.bf16.msra.mxu0 %v1931
    %2020 = vmatpush.bf16.msra.mxu0 %v1930
    %2021 = vmatpush.bf16.msra.mxu0 %v1929
    %2022 = vmatpush.bf16.msra.mxu0 %v1928
    %2023 = vmatpush.bf16.msra.mxu0 %v1927
    %2024 = vmatpush.bf16.msra.mxu0 %v1926
    %2025 = vmatpush.bf16.msra.mxu0 %v1925
    %2026 = vmatpush.bf16.msra.mxu0 %v1924
    %2027 = vmatmul.bf16.gmra.mxu0 %v1661
    %v2028 = vpop.f32.mrf.mxu0
    %v2029 = vadd.f32 %v2006, %v2028
    %v2030 = vpop.f32.mrf.mxu0
    %v2031 = vadd.f32 %v2008, %v2030
    %2032 = vmatmul.bf16.gmra.mxu0 %v1666
    %v2033 = vpop.f32.mrf.mxu0
    %v2034 = vadd.f32 %v2011, %v2033
    %v2035 = vpop.f32.mrf.mxu0
    %2036 = vmatmul.bf16.gmra.mxu0 %v1671
    %v2037 = vpop.f32.mrf.mxu0
    %v2038 = vadd.f32 %v2015, %v2037
    %v2039 = vpop.f32.mrf.mxu0
    %v2040 = vadd.f32 %v2017, %v2039
    %2041 = vdwg.mxu0
    %2042 = vmatpush.bf16.msra.mxu0 %v1939
    %2043 = vmatpush.bf16.msra.mxu0 %v1938
    %2044 = vmatpush.bf16.msra.mxu0 %v1937
    %2045 = vmatpush.bf16.msra.mxu0 %v1936
    %2046 = vmatpush.bf16.msra.mxu0 %v1935
    %2047 = vmatpush.bf16.msra.mxu0 %v1934
    %2048 = vmatpush.bf16.msra.mxu0 %v1933
    %2049 = vmatpush.bf16.msra.mxu0 %v1932
    %2050 = vmatmul.bf16.gmra.mxu0 %v1662
    %v2051 = vpop.f32.mrf.mxu0
    %v2052 = vadd.f32 %v2029, %v2051
    %v2053 = vpop.f32.mrf.mxu0
    %v2054 = vadd.f32 %v2031, %v2053
    %2055 = vmatmul.bf16.gmra.mxu0 %v1667
    %v2056 = vpop.f32.mrf.mxu0
    %v2057 = vadd.f32 %v2034, %v2056
    %v2058 = vpop.f32.mrf.mxu0
    %2059 = vmatmul.bf16.gmra.mxu0 %v1672
    %v2060 = vpop.f32.mrf.mxu0
    %v2061 = vadd.f32 %v2038, %v2060
    %v2062 = vpop.f32.mrf.mxu0
    %v2063 = vadd.f32 %v2040, %v2062
    %2064 = vdwg.mxu0
    %2065 = vmatpush.bf16.msra.mxu0 %v1947
    %2066 = vmatpush.bf16.msra.mxu0 %v1946
    %2067 = vmatpush.bf16.msra.mxu0 %v1945
    %2068 = vmatpush.bf16.msra.mxu0 %v1944
    %2069 = vmatpush.bf16.msra.mxu0 %v1943
    %2070 = vmatpush.bf16.msra.mxu0 %v1942
    %2071 = vmatpush.bf16.msra.mxu0 %v1941
    %2072 = vmatpush.bf16.msra.mxu0 %v1940
    %2073 = vmatmul.bf16.gmra.mxu0 %v1663
    %v2074 = vpop.f32.mrf.mxu0
    %v2075 = vadd.f32 %v2052, %v2074
    %v2076 = vpop.f32.mrf.mxu0
    %v2077 = vadd.f32 %v2054, %v2076
    %2078 = vmatmul.bf16.gmra.mxu0 %v1668
    %v2079 = vpop.f32.mrf.mxu0
    %v2080 = vadd.f32 %v2057, %v2079
    %v2081 = vpop.f32.mrf.mxu0
    %2082 = vmatmul.bf16.gmra.mxu0 %v1673
    %v2083 = vpop.f32.mrf.mxu0
    %v2084 = vadd.f32 %v2061, %v2083
    %v2085 = vpop.f32.mrf.mxu0
    %v2086 = vadd.f32 %v2063, %v2085
    %2087 = vdwg.mxu0
    %2088 = vmatpush.bf16.msra.mxu0 %v1955
    %2089 = vmatpush.bf16.msra.mxu0 %v1954
    %2090 = vmatpush.bf16.msra.mxu0 %v1953
    %2091 = vmatpush.bf16.msra.mxu0 %v1952
    %2092 = vmatpush.bf16.msra.mxu0 %v1951
    %2093 = vmatpush.bf16.msra.mxu0 %v1950
    %2094 = vmatpush.bf16.msra.mxu0 %v1949
    %2095 = vmatpush.bf16.msra.mxu0 %v1948
    %2096 = vmatmul.bf16.gmra.mxu0 %v1664
    %v2097 = vpop.f32.mrf.mxu0
    %v2098 = vadd.f32 %v2075, %v2097
    %v2099 = vpop.f32.mrf.mxu0
    %v2100 = vadd.f32 %v2077, %v2099
    %2101 = vmatmul.bf16.gmra.mxu0 %v1669
    %v2102 = vpop.f32.mrf.mxu0
    %v2103 = vadd.f32 %v2080, %v2102
    %v2104 = vpop.f32.mrf.mxu0
    %2105 = vmatmul.bf16.gmra.mxu0 %v1674
    %v2106 = vpop.f32.mrf.mxu0
    %v2107 = vadd.f32 %v2084, %v2106
    %v2108 = vpop.f32.mrf.mxu0
    %v2109 = vadd.f32 %v2086, %v2108
    %2110 = vdwg.mxu0
    %v2111 = vadd.f32 %v1617, %v2098
    %v2112 = vadd.f32 %v1619, %v2100
    %v2113 = vadd.f32 %v1622, %v2103
    %v2114 = vadd.f32 %v1626, %v2107
    %v2115 = vadd.f32 %v1628, %v2109
    %v2116 = vld [vmem:[#allocation2 + $0x12] sm:$0xff]
    %v2117 = vld [vmem:[#allocation2 + $0x1a] sm:$0xff]
    %v2118 = vld [vmem:[#allocation2 + $0x22] sm:$0xff]
    %v2119 = vld [vmem:[#allocation2 + $0x2a] sm:$0xff]
    %v2120 = vld [vmem:[#allocation2 + $0x32] sm:$0xff]
    %v2121 = vld [vmem:[#allocation2 + $0x3a] sm:$0xf]
    %v2122 = vld [vmem:[#allocation2 + $0x13] sm:$0xff]
    %v2123 = vld [vmem:[#allocation2 + $0x1b] sm:$0xff]
    %v2124 = vld [vmem:[#allocation2 + $0x23] sm:$0xff]
    %v2125 = vld [vmem:[#allocation2 + $0x2b] sm:$0xff]
    %v2126 = vld [vmem:[#allocation2 + $0x33] sm:$0xff]
    %v2127 = vld [vmem:[#allocation2 + $0x3b] sm:$0xf]
    %v2128 = vld [vmem:[#allocation2 + $0x14] sm:$0xff]
    %v2129 = vld [vmem:[#allocation2 + $0x1c] sm:$0xff]
    %v2130 = vld [vmem:[#allocation2 + $0x24] sm:$0xff]
    %v2131 = vld [vmem:[#allocation2 + $0x2c] sm:$0xff]
    %v2132 = vld [vmem:[#allocation2 + $0x34] sm:$0xff]
    %v2133 = vld [vmem:[#allocation2 + $0x3c] sm:$0xf]
    %v2134 = vld [vmem:[#allocation2 + $0x15] sm:$0xff]
    %v2135 = vld [vmem:[#allocation2 + $0x1d] sm:$0xff]
    %v2136 = vld [vmem:[#allocation2 + $0x25] sm:$0xff]
    %v2137 = vld [vmem:[#allocation2 + $0x2d] sm:$0xff]
    %v2138 = vld [vmem:[#allocation2 + $0x35] sm:$0xff]
    %v2139 = vld [vmem:[#allocation2 + $0x3d] sm:$0xf]
    %v2140 = vld [vmem:[#allocation2 + $0x16] sm:$0xff]
    %v2141 = vld [vmem:[#allocation2 + $0x1e] sm:$0xff]
    %v2142 = vld [vmem:[#allocation2 + $0x26] sm:$0xff]
    %v2143 = vld [vmem:[#allocation2 + $0x2e] sm:$0xff]
    %v2144 = vld [vmem:[#allocation2 + $0x36] sm:$0xff]
    %v2145 = vld [vmem:[#allocation2 + $0x3e] sm:$0xf]
    %v2146 = vpack.c.bf16 %v2117, %v2116
    %v2147 = vpack.c.bf16 %v2123, %v2122
    %v2148 = vpack.c.bf16 %v2129, %v2128
    %v2149 = vpack.c.bf16 %v2135, %v2134
    %v2150 = vpack.c.bf16 %v2141, %v2140
    %v2151 = vpack.c.bf16 %v2119, %v2118
    %v2152 = vpack.c.bf16 %v2125, %v2124
    %v2153 = vpack.c.bf16 %v2131, %v2130
    %v2154 = vpack.c.bf16 %v2137, %v2136
    %v2155 = vpack.c.bf16 %v2143, %v2142
    %v2156 = vpack.c.bf16 %v2121, %v2120
    %v2157 = vpack.c.bf16 %v2127, %v2126
    %v2158 = vpack.c.bf16 %v2133, %v2132
    %v2159 = vpack.c.bf16 %v2139, %v2138
    %v2160 = vpack.c.bf16 %v2145, %v2144
    %s2161 = scalar_lea.vmem [#allocation3], 960
    %v2162 = vld [vmem:[%s2161] sm:$0xf]
    %v2163 = vld [vmem:[%s2161 + $0x4] sm:$0xf]
    %v2164 = vld [vmem:[%s2161 + $0x8] sm:$0xf]
    %v2165 = vld [vmem:[%s2161 + $0xc] sm:$0xf]
    %v2166 = vld [vmem:[%s2161 + $0x10] sm:$0xf]
    %v2167 = vld [vmem:[%s2161 + $0x14] sm:$0xf]
    %v2168 = vld [vmem:[%s2161 + $0x18] sm:$0xf]
    %v2169 = vld [vmem:[%s2161 + $0x1c] sm:$0xf]
    %v2170 = vld [vmem:[%s2161 + $0x20] sm:$0xf]
    %v2171 = vld [vmem:[%s2161 + $0x24] sm:$0xf]
    %v2172 = vld [vmem:[%s2161 + $0x28] sm:$0xf]
    %v2173 = vld [vmem:[%s2161 + $0x2c] sm:$0xf]
    %v2174 = vld [vmem:[%s2161 + $0x30] sm:$0xf]
    %v2175 = vld [vmem:[%s2161 + $0x34] sm:$0xf]
    %v2176 = vld [vmem:[%s2161 + $0x38] sm:$0xf]
    %v2177 = vld [vmem:[%s2161 + $0x3c] sm:$0xf]
    %v2178 = vld [vmem:[%s2161 + $0x40] sm:$0xf]
    %v2179 = vld [vmem:[%s2161 + $0x44] sm:$0xf]
    %v2180 = vld [vmem:[%s2161 + $0x48] sm:$0xf]
    %v2181 = vld [vmem:[%s2161 + $0x4c] sm:$0xf]
    %v2182 = vld [vmem:[%s2161 + $0x50] sm:$0xf]
    %v2183 = vld [vmem:[%s2161 + $0x54] sm:$0xf]
    %v2184 = vld [vmem:[%s2161 + $0x58] sm:$0xf]
    %v2185 = vld [vmem:[%s2161 + $0x5c] sm:$0xf]
    %v2186 = vld [vmem:[%s2161 + $0x60] sm:$0xf]
    %v2187 = vld [vmem:[%s2161 + $0x64] sm:$0xf]
    %v2188 = vld [vmem:[%s2161 + $0x68] sm:$0xf]
    %v2189 = vld [vmem:[%s2161 + $0x6c] sm:$0xf]
    %v2190 = vld [vmem:[%s2161 + $0x70] sm:$0xf]
    %v2191 = vld [vmem:[%s2161 + $0x74] sm:$0xf]
    %v2192 = vld [vmem:[%s2161 + $0x78] sm:$0xf]
    %v2193 = vld [vmem:[%s2161 + $0x7c] sm:$0xf]
    %v2194 = vld [vmem:[%s2161 + $0x80] sm:$0xf]
    %v2195 = vld [vmem:[%s2161 + $0x84] sm:$0xf]
    %v2196 = vld [vmem:[%s2161 + $0x88] sm:$0xf]
    %v2197 = vld [vmem:[%s2161 + $0x8c] sm:$0xf]
    %v2198 = vld [vmem:[%s2161 + $0x90] sm:$0xf]
    %v2199 = vld [vmem:[%s2161 + $0x94] sm:$0xf]
    %v2200 = vld [vmem:[%s2161 + $0x98] sm:$0xf]
    %v2201 = vld [vmem:[%s2161 + $0x9c] sm:$0xf]
    %v2202 = vld [vmem:[%s2161 + $0xa0] sm:$0xf]
    %v2203 = vld [vmem:[%s2161 + $0xa4] sm:$0xf]
    %v2204 = vld [vmem:[%s2161 + $0xa8] sm:$0xf]
    %v2205 = vld [vmem:[%s2161 + $0xac] sm:$0xf]
    %v2206 = vld [vmem:[%s2161 + $0xb0] sm:$0xf]
    %v2207 = vld [vmem:[%s2161 + $0xb4] sm:$0xf]
    %v2208 = vld [vmem:[%s2161 + $0xb8] sm:$0xf]
    %v2209 = vld [vmem:[%s2161 + $0xbc] sm:$0xf]
    %v2210 = vld [vmem:[%s2161 + $0xc0] sm:$0xf]
    %v2211 = vld [vmem:[%s2161 + $0xc4] sm:$0xf]
    %v2212 = vld [vmem:[%s2161 + $0xc8] sm:$0xf]
    %v2213 = vld [vmem:[%s2161 + $0xcc] sm:$0xf]
    %v2214 = vld [vmem:[%s2161 + $0xd0] sm:$0xf]
    %v2215 = vld [vmem:[%s2161 + $0xd4] sm:$0xf]
    %v2216 = vld [vmem:[%s2161 + $0xd8] sm:$0xf]
    %v2217 = vld [vmem:[%s2161 + $0xdc] sm:$0xf]
    %v2218 = vld [vmem:[%s2161 + $0xe0] sm:$0xf]
    %v2219 = vld [vmem:[%s2161 + $0xe4] sm:$0xf]
    %v2220 = vld [vmem:[%s2161 + $0xe8] sm:$0xf]
    %v2221 = vld [vmem:[%s2161 + $0xec] sm:$0xf]
    %v2222 = vld [vmem:[%s2161 + $0xf0] sm:$0xf]
    %v2223 = vld [vmem:[%s2161 + $0xf4] sm:$0xf]
    %v2224 = vld [vmem:[%s2161 + $0xf8] sm:$0xf]
    %v2225 = vld [vmem:[%s2161 + $0xfc] sm:$0xf]
    %v2226 = vld [vmem:[%s2161 + $0x100] sm:$0xf]
    %v2227 = vld [vmem:[%s2161 + $0x104] sm:$0xf]
    %v2228 = vld [vmem:[%s2161 + $0x108] sm:$0xf]
    %v2229 = vld [vmem:[%s2161 + $0x10c] sm:$0xf]
    %v2230 = vld [vmem:[%s2161 + $0x110] sm:$0xf]
    %v2231 = vld [vmem:[%s2161 + $0x114] sm:$0xf]
    %v2232 = vld [vmem:[%s2161 + $0x118] sm:$0xf]
    %v2233 = vld [vmem:[%s2161 + $0x11c] sm:$0xf]
    %v2234 = vld [vmem:[%s2161 + $0x120] sm:$0xf]
    %v2235 = vld [vmem:[%s2161 + $0x124] sm:$0xf]
    %v2236 = vld [vmem:[%s2161 + $0x128] sm:$0xf]
    %v2237 = vld [vmem:[%s2161 + $0x12c] sm:$0xf]
    %v2238 = vld [vmem:[%s2161 + $0x130] sm:$0xf]
    %v2239 = vld [vmem:[%s2161 + $0x134] sm:$0xf]
    %v2240 = vld [vmem:[%s2161 + $0x138] sm:$0xf]
    %v2241 = vld [vmem:[%s2161 + $0x13c] sm:$0xf]
    %v2322 = vunpack.c.l.b16 %v2162
    %v2323 = vunpack.c.l.b16 %v2163
    %v2324 = vunpack.c.l.b16 %v2164
    %v2325 = vunpack.c.l.b16 %v2165
    %v2326 = vunpack.c.l.b16 %v2166
    %v2327 = vunpack.c.l.b16 %v2167
    %v2328 = vunpack.c.l.b16 %v2168
    %v2329 = vunpack.c.l.b16 %v2169
    %v2330 = vunpack.c.l.b16 %v2170
    %v2331 = vunpack.c.l.b16 %v2171
    %v2332 = vunpack.c.l.b16 %v2172
    %v2333 = vunpack.c.l.b16 %v2173
    %v2334 = vunpack.c.l.b16 %v2174
    %v2335 = vunpack.c.l.b16 %v2175
    %v2336 = vunpack.c.l.b16 %v2176
    %v2337 = vunpack.c.l.b16 %v2177
    %v2338 = vunpack.c.l.b16 %v2178
    %v2339 = vunpack.c.l.b16 %v2179
    %v2340 = vunpack.c.l.b16 %v2180
    %v2341 = vunpack.c.l.b16 %v2181
    %v2342 = vunpack.c.l.b16 %v2182
    %v2343 = vunpack.c.l.b16 %v2183
    %v2344 = vunpack.c.l.b16 %v2184
    %v2345 = vunpack.c.l.b16 %v2185
    %v2346 = vunpack.c.l.b16 %v2186
    %v2347 = vunpack.c.l.b16 %v2187
    %v2348 = vunpack.c.l.b16 %v2188
    %v2349 = vunpack.c.l.b16 %v2189
    %v2350 = vunpack.c.l.b16 %v2190
    %v2351 = vunpack.c.l.b16 %v2191
    %v2352 = vunpack.c.l.b16 %v2192
    %v2353 = vunpack.c.l.b16 %v2193
    %v2354 = vunpack.c.l.b16 %v2194
    %v2355 = vunpack.c.l.b16 %v2195
    %v2356 = vunpack.c.l.b16 %v2196
    %v2357 = vunpack.c.l.b16 %v2197
    %v2358 = vunpack.c.l.b16 %v2198
    %v2359 = vunpack.c.l.b16 %v2199
    %v2360 = vunpack.c.l.b16 %v2200
    %v2361 = vunpack.c.l.b16 %v2201
    %v2362 = vunpack.c.l.b16 %v2202
    %v2363 = vunpack.c.l.b16 %v2203
    %v2364 = vunpack.c.l.b16 %v2204
    %v2365 = vunpack.c.l.b16 %v2205
    %v2366 = vunpack.c.l.b16 %v2206
    %v2367 = vunpack.c.l.b16 %v2207
    %v2368 = vunpack.c.l.b16 %v2208
    %v2369 = vunpack.c.l.b16 %v2209
    %v2370 = vunpack.c.l.b16 %v2210
    %v2371 = vunpack.c.l.b16 %v2211
    %v2372 = vunpack.c.l.b16 %v2212
    %v2373 = vunpack.c.l.b16 %v2213
    %v2374 = vunpack.c.l.b16 %v2214
    %v2375 = vunpack.c.l.b16 %v2215
    %v2376 = vunpack.c.l.b16 %v2216
    %v2377 = vunpack.c.l.b16 %v2217
    %v2378 = vunpack.c.l.b16 %v2218
    %v2379 = vunpack.c.l.b16 %v2219
    %v2380 = vunpack.c.l.b16 %v2220
    %v2381 = vunpack.c.l.b16 %v2221
    %v2382 = vunpack.c.l.b16 %v2222
    %v2383 = vunpack.c.l.b16 %v2223
    %v2384 = vunpack.c.l.b16 %v2224
    %v2385 = vunpack.c.l.b16 %v2225
    %v2386 = vunpack.c.l.b16 %v2226
    %v2387 = vunpack.c.l.b16 %v2227
    %v2388 = vunpack.c.l.b16 %v2228
    %v2389 = vunpack.c.l.b16 %v2229
    %v2390 = vunpack.c.l.b16 %v2230
    %v2391 = vunpack.c.l.b16 %v2231
    %v2392 = vunpack.c.l.b16 %v2232
    %v2393 = vunpack.c.l.b16 %v2233
    %v2394 = vunpack.c.l.b16 %v2234
    %v2395 = vunpack.c.l.b16 %v2235
    %v2396 = vunpack.c.l.b16 %v2236
    %v2397 = vunpack.c.l.b16 %v2237
    %v2398 = vunpack.c.l.b16 %v2238
    %v2399 = vunpack.c.l.b16 %v2239
    %v2400 = vunpack.c.l.b16 %v2240
    %v2401 = vunpack.c.l.b16 %v2241
    %v2402 = vpack.c.b16 %v2323, %v2322
    %v2403 = vpack.c.b16 %v2325, %v2324
    %v2404 = vpack.c.b16 %v2327, %v2326
    %v2405 = vpack.c.b16 %v2329, %v2328
    %v2406 = vpack.c.b16 %v2331, %v2330
    %v2407 = vpack.c.b16 %v2333, %v2332
    %v2408 = vpack.c.b16 %v2335, %v2334
    %v2409 = vpack.c.b16 %v2337, %v2336
    %v2410 = vpack.c.b16 %v2339, %v2338
    %v2411 = vpack.c.b16 %v2341, %v2340
    %v2412 = vpack.c.b16 %v2343, %v2342
    %v2413 = vpack.c.b16 %v2345, %v2344
    %v2414 = vpack.c.b16 %v2347, %v2346
    %v2415 = vpack.c.b16 %v2349, %v2348
    %v2416 = vpack.c.b16 %v2351, %v2350
    %v2417 = vpack.c.b16 %v2353, %v2352
    %v2418 = vpack.c.b16 %v2355, %v2354
    %v2419 = vpack.c.b16 %v2357, %v2356
    %v2420 = vpack.c.b16 %v2359, %v2358
    %v2421 = vpack.c.b16 %v2361, %v2360
    %v2422 = vpack.c.b16 %v2363, %v2362
    %v2423 = vpack.c.b16 %v2365, %v2364
    %v2424 = vpack.c.b16 %v2367, %v2366
    %v2425 = vpack.c.b16 %v2369, %v2368
    %v2426 = vpack.c.b16 %v2371, %v2370
    %v2427 = vpack.c.b16 %v2373, %v2372
    %v2428 = vpack.c.b16 %v2375, %v2374
    %v2429 = vpack.c.b16 %v2377, %v2376
    %v2430 = vpack.c.b16 %v2379, %v2378
    %v2431 = vpack.c.b16 %v2381, %v2380
    %v2432 = vpack.c.b16 %v2383, %v2382
    %v2433 = vpack.c.b16 %v2385, %v2384
    %v2434 = vpack.c.b16 %v2387, %v2386
    %v2435 = vpack.c.b16 %v2389, %v2388
    %v2436 = vpack.c.b16 %v2391, %v2390
    %v2437 = vpack.c.b16 %v2393, %v2392
    %v2438 = vpack.c.b16 %v2395, %v2394
    %v2439 = vpack.c.b16 %v2397, %v2396
    %v2440 = vpack.c.b16 %v2399, %v2398
    %v2441 = vpack.c.b16 %v2401, %v2400
    %2482 = vmatpush.bf16.msra.mxu0 %v2409
    %2483 = vmatpush.bf16.msra.mxu0 %v2408
    %2484 = vmatpush.bf16.msra.mxu0 %v2407
    %2485 = vmatpush.bf16.msra.mxu0 %v2406
    %2486 = vmatpush.bf16.msra.mxu0 %v2405
    %2487 = vmatpush.bf16.msra.mxu0 %v2404
    %2488 = vmatpush.bf16.msra.mxu0 %v2403
    %2489 = vmatpush.bf16.msra.mxu0 %v2402
    %2490 = vmatmul.bf16.gmra.mxu0 %v2146
    %v2491 = vpop.f32.mrf.mxu0
    %v2492 = vadd.f32 0.0, %v2491
    %v2493 = vpop.f32.mrf.mxu0
    %v2494 = vadd.f32 0.0, %v2493
    %2495 = vmatmul.bf16.gmra.mxu0 %v2151
    %v2496 = vpop.f32.mrf.mxu0
    %v2497 = vadd.f32 0.0, %v2496
    %v2498 = vpop.f32.mrf.mxu0
    %2499 = vmatmul.bf16.gmra.mxu0 %v2156
    %v2500 = vpop.f32.mrf.mxu0
    %v2501 = vadd.f32 0.0, %v2500
    %v2502 = vpop.f32.mrf.mxu0
    %v2503 = vadd.f32 0.0, %v2502
    %2504 = vdwg.mxu0
    %2505 = vmatpush.bf16.msra.mxu0 %v2417
    %2506 = vmatpush.bf16.msra.mxu0 %v2416
    %2507 = vmatpush.bf16.msra.mxu0 %v2415
    %2508 = vmatpush.bf16.msra.mxu0 %v2414
    %2509 = vmatpush.bf16.msra.mxu0 %v2413
    %2510 = vmatpush.bf16.msra.mxu0 %v2412
    %2511 = vmatpush.bf16.msra.mxu0 %v2411
    %2512 = vmatpush.bf16.msra.mxu0 %v2410
    %2513 = vmatmul.bf16.gmra.mxu0 %v2147
    %v2514 = vpop.f32.mrf.mxu0
    %v2515 = vadd.f32 %v2492, %v2514
    %v2516 = vpop.f32.mrf.mxu0
    %v2517 = vadd.f32 %v2494, %v2516
    %2518 = vmatmul.bf16.gmra.mxu0 %v2152
    %v2519 = vpop.f32.mrf.mxu0
    %v2520 = vadd.f32 %v2497, %v2519
    %v2521 = vpop.f32.mrf.mxu0
    %2522 = vmatmul.bf16.gmra.mxu0 %v2157
    %v2523 = vpop.f32.mrf.mxu0
    %v2524 = vadd.f32 %v2501, %v2523
    %v2525 = vpop.f32.mrf.mxu0
    %v2526 = vadd.f32 %v2503, %v2525
    %2527 = vdwg.mxu0
    %2528 = vmatpush.bf16.msra.mxu0 %v2425
    %2529 = vmatpush.bf16.msra.mxu0 %v2424
    %2530 = vmatpush.bf16.msra.mxu0 %v2423
    %2531 = vmatpush.bf16.msra.mxu0 %v2422
    %2532 = vmatpush.bf16.msra.mxu0 %v2421
    %2533 = vmatpush.bf16.msra.mxu0 %v2420
    %2534 = vmatpush.bf16.msra.mxu0 %v2419
    %2535 = vmatpush.bf16.msra.mxu0 %v2418
    %2536 = vmatmul.bf16.gmra.mxu0 %v2148
    %v2537 = vpop.f32.mrf.mxu0
    %v2538 = vadd.f32 %v2515, %v2537
    %v2539 = vpop.f32.mrf.mxu0
    %v2540 = vadd.f32 %v2517, %v2539
    %2541 = vmatmul.bf16.gmra.mxu0 %v2153
    %v2542 = vpop.f32.mrf.mxu0
    %v2543 = vadd.f32 %v2520, %v2542
    %v2544 = vpop.f32.mrf.mxu0
    %2545 = vmatmul.bf16.gmra.mxu0 %v2158
    %v2546 = vpop.f32.mrf.mxu0
    %v2547 = vadd.f32 %v2524, %v2546
    %v2548 = vpop.f32.mrf.mxu0
    %v2549 = vadd.f32 %v2526, %v2548
    %2550 = vdwg.mxu0
    %2551 = vmatpush.bf16.msra.mxu0 %v2433
    %2552 = vmatpush.bf16.msra.mxu0 %v2432
    %2553 = vmatpush.bf16.msra.mxu0 %v2431
    %2554 = vmatpush.bf16.msra.mxu0 %v2430
    %2555 = vmatpush.bf16.msra.mxu0 %v2429
    %2556 = vmatpush.bf16.msra.mxu0 %v2428
    %2557 = vmatpush.bf16.msra.mxu0 %v2427
    %2558 = vmatpush.bf16.msra.mxu0 %v2426
    %2559 = vmatmul.bf16.gmra.mxu0 %v2149
    %v2560 = vpop.f32.mrf.mxu0
    %v2561 = vadd.f32 %v2538, %v2560
    %v2562 = vpop.f32.mrf.mxu0
    %v2563 = vadd.f32 %v2540, %v2562
    %2564 = vmatmul.bf16.gmra.mxu0 %v2154
    %v2565 = vpop.f32.mrf.mxu0
    %v2566 = vadd.f32 %v2543, %v2565
    %v2567 = vpop.f32.mrf.mxu0
    %2568 = vmatmul.bf16.gmra.mxu0 %v2159
    %v2569 = vpop.f32.mrf.mxu0
    %v2570 = vadd.f32 %v2547, %v2569
    %v2571 = vpop.f32.mrf.mxu0
    %v2572 = vadd.f32 %v2549, %v2571
    %2573 = vdwg.mxu0
    %2574 = vmatpush.bf16.msra.mxu0 %v2441
    %2575 = vmatpush.bf16.msra.mxu0 %v2440
    %2576 = vmatpush.bf16.msra.mxu0 %v2439
    %2577 = vmatpush.bf16.msra.mxu0 %v2438
    %2578 = vmatpush.bf16.msra.mxu0 %v2437
    %2579 = vmatpush.bf16.msra.mxu0 %v2436
    %2580 = vmatpush.bf16.msra.mxu0 %v2435
    %2581 = vmatpush.bf16.msra.mxu0 %v2434
    %2582 = vmatmul.bf16.gmra.mxu0 %v2150
    %v2583 = vpop.f32.mrf.mxu0
    %v2584 = vadd.f32 %v2561, %v2583
    %v2585 = vpop.f32.mrf.mxu0
    %v2586 = vadd.f32 %v2563, %v2585
    %2587 = vmatmul.bf16.gmra.mxu0 %v2155
    %v2588 = vpop.f32.mrf.mxu0
    %v2589 = vadd.f32 %v2566, %v2588
    %v2590 = vpop.f32.mrf.mxu0
    %2591 = vmatmul.bf16.gmra.mxu0 %v2160
    %v2592 = vpop.f32.mrf.mxu0
    %v2593 = vadd.f32 %v2570, %v2592
    %v2594 = vpop.f32.mrf.mxu0
    %v2595 = vadd.f32 %v2572, %v2594
    %2596 = vdwg.mxu0
    %v2597 = vadd.f32 %v2111, %v2584
    %v2598 = vadd.f32 %v2112, %v2586
    %v2599 = vadd.f32 %v2113, %v2589
    %v2600 = vadd.f32 %v2114, %v2593
    %v2601 = vadd.f32 %v2115, %v2595
    %v2602 = vld [vmem:[#allocation2 + $0x18] sm:$0xff]
    %v2603 = vld [vmem:[#allocation2 + $0x20] sm:$0xff]
    %v2604 = vld [vmem:[#allocation2 + $0x28] sm:$0xff]
    %v2605 = vld [vmem:[#allocation2 + $0x30] sm:$0xff]
    %v2606 = vld [vmem:[#allocation2 + $0x38] sm:$0xff]
    %v2607 = vld [vmem:[#allocation2 + $0x40] sm:$0xf]
    %v2608 = vld [vmem:[#allocation2 + $0x19] sm:$0xff]
    %v2609 = vld [vmem:[#allocation2 + $0x21] sm:$0xff]
    %v2610 = vld [vmem:[#allocation2 + $0x29] sm:$0xff]
    %v2611 = vld [vmem:[#allocation2 + $0x31] sm:$0xff]
    %v2612 = vld [vmem:[#allocation2 + $0x39] sm:$0xff]
    %v2613 = vld [vmem:[#allocation2 + $0x41] sm:$0xf]
    %v2614 = vld [vmem:[#allocation2 + $0x1a] sm:$0xff]
    %v2615 = vld [vmem:[#allocation2 + $0x22] sm:$0xff]
    %v2616 = vld [vmem:[#allocation2 + $0x2a] sm:$0xff]
    %v2617 = vld [vmem:[#allocation2 + $0x32] sm:$0xff]
    %v2618 = vld [vmem:[#allocation2 + $0x3a] sm:$0xff]
    %v2619 = vld [vmem:[#allocation2 + $0x42] sm:$0xf]
    %v2620 = vld [vmem:[#allocation2 + $0x1b] sm:$0xff]
    %v2621 = vld [vmem:[#allocation2 + $0x23] sm:$0xff]
    %v2622 = vld [vmem:[#allocation2 + $0x2b] sm:$0xff]
    %v2623 = vld [vmem:[#allocation2 + $0x33] sm:$0xff]
    %v2624 = vld [vmem:[#allocation2 + $0x3b] sm:$0xff]
    %v2625 = vld [vmem:[#allocation2 + $0x43] sm:$0xf]
    %v2626 = vld [vmem:[#allocation2 + $0x1c] sm:$0xff]
    %v2627 = vld [vmem:[#allocation2 + $0x24] sm:$0xff]
    %v2628 = vld [vmem:[#allocation2 + $0x2c] sm:$0xff]
    %v2629 = vld [vmem:[#allocation2 + $0x34] sm:$0xff]
    %v2630 = vld [vmem:[#allocation2 + $0x3c] sm:$0xff]
    %v2631 = vld [vmem:[#allocation2 + $0x44] sm:$0xf]
    %v2632 = vpack.c.bf16 %v2603, %v2602
    %v2633 = vpack.c.bf16 %v2609, %v2608
    %v2634 = vpack.c.bf16 %v2615, %v2614
    %v2635 = vpack.c.bf16 %v2621, %v2620
    %v2636 = vpack.c.bf16 %v2627, %v2626
    %v2637 = vpack.c.bf16 %v2605, %v2604
    %v2638 = vpack.c.bf16 %v2611, %v2610
    %v2639 = vpack.c.bf16 %v2617, %v2616
    %v2640 = vpack.c.bf16 %v2623, %v2622
    %v2641 = vpack.c.bf16 %v2629, %v2628
    %v2642 = vpack.c.bf16 %v2607, %v2606
    %v2643 = vpack.c.bf16 %v2613, %v2612
    %v2644 = vpack.c.bf16 %v2619, %v2618
    %v2645 = vpack.c.bf16 %v2625, %v2624
    %v2646 = vpack.c.bf16 %v2631, %v2630
    %s2647 = scalar_lea.vmem [#allocation3], 1280
    %v2648 = vld [vmem:[%s2647] sm:$0xf]
    %v2649 = vld [vmem:[%s2647 + $0x4] sm:$0xf]
    %v2650 = vld [vmem:[%s2647 + $0x8] sm:$0xf]
    %v2651 = vld [vmem:[%s2647 + $0xc] sm:$0xf]
    %v2652 = vld [vmem:[%s2647 + $0x10] sm:$0xf]
    %v2653 = vld [vmem:[%s2647 + $0x14] sm:$0xf]
    %v2654 = vld [vmem:[%s2647 + $0x18] sm:$0xf]
    %v2655 = vld [vmem:[%s2647 + $0x1c] sm:$0xf]
    %v2656 = vld [vmem:[%s2647 + $0x20] sm:$0xf]
    %v2657 = vld [vmem:[%s2647 + $0x24] sm:$0xf]
    %v2658 = vld [vmem:[%s2647 + $0x28] sm:$0xf]
    %v2659 = vld [vmem:[%s2647 + $0x2c] sm:$0xf]
    %v2660 = vld [vmem:[%s2647 + $0x30] sm:$0xf]
    %v2661 = vld [vmem:[%s2647 + $0x34] sm:$0xf]
    %v2662 = vld [vmem:[%s2647 + $0x38] sm:$0xf]
    %v2663 = vld [vmem:[%s2647 + $0x3c] sm:$0xf]
    %v2664 = vld [vmem:[%s2647 + $0x40] sm:$0xf]
    %v2665 = vld [vmem:[%s2647 + $0x44] sm:$0xf]
    %v2666 = vld [vmem:[%s2647 + $0x48] sm:$0xf]
    %v2667 = vld [vmem:[%s2647 + $0x4c] sm:$0xf]
    %v2668 = vld [vmem:[%s2647 + $0x50] sm:$0xf]
    %v2669 = vld [vmem:[%s2647 + $0x54] sm:$0xf]
    %v2670 = vld [vmem:[%s2647 + $0x58] sm:$0xf]
    %v2671 = vld [vmem:[%s2647 + $0x5c] sm:$0xf]
    %v2672 = vld [vmem:[%s2647 + $0x60] sm:$0xf]
    %v2673 = vld [vmem:[%s2647 + $0x64] sm:$0xf]
    %v2674 = vld [vmem:[%s2647 + $0x68] sm:$0xf]
    %v2675 = vld [vmem:[%s2647 + $0x6c] sm:$0xf]
    %v2676 = vld [vmem:[%s2647 + $0x70] sm:$0xf]
    %v2677 = vld [vmem:[%s2647 + $0x74] sm:$0xf]
    %v2678 = vld [vmem:[%s2647 + $0x78] sm:$0xf]
    %v2679 = vld [vmem:[%s2647 + $0x7c] sm:$0xf]
    %v2680 = vld [vmem:[%s2647 + $0x80] sm:$0xf]
    %v2681 = vld [vmem:[%s2647 + $0x84] sm:$0xf]
    %v2682 = vld [vmem:[%s2647 + $0x88] sm:$0xf]
    %v2683 = vld [vmem:[%s2647 + $0x8c] sm:$0xf]
    %v2684 = vld [vmem:[%s2647 + $0x90] sm:$0xf]
    %v2685 = vld [vmem:[%s2647 + $0x94] sm:$0xf]
    %v2686 = vld [vmem:[%s2647 + $0x98] sm:$0xf]
    %v2687 = vld [vmem:[%s2647 + $0x9c] sm:$0xf]
    %v2688 = vld [vmem:[%s2647 + $0xa0] sm:$0xf]
    %v2689 = vld [vmem:[%s2647 + $0xa4] sm:$0xf]
    %v2690 = vld [vmem:[%s2647 + $0xa8] sm:$0xf]
    %v2691 = vld [vmem:[%s2647 + $0xac] sm:$0xf]
    %v2692 = vld [vmem:[%s2647 + $0xb0] sm:$0xf]
    %v2693 = vld [vmem:[%s2647 + $0xb4] sm:$0xf]
    %v2694 = vld [vmem:[%s2647 + $0xb8] sm:$0xf]
    %v2695 = vld [vmem:[%s2647 + $0xbc] sm:$0xf]
    %v2696 = vld [vmem:[%s2647 + $0xc0] sm:$0xf]
    %v2697 = vld [vmem:[%s2647 + $0xc4] sm:$0xf]
    %v2698 = vld [vmem:[%s2647 + $0xc8] sm:$0xf]
    %v2699 = vld [vmem:[%s2647 + $0xcc] sm:$0xf]
    %v2700 = vld [vmem:[%s2647 + $0xd0] sm:$0xf]
    %v2701 = vld [vmem:[%s2647 + $0xd4] sm:$0xf]
    %v2702 = vld [vmem:[%s2647 + $0xd8] sm:$0xf]
    %v2703 = vld [vmem:[%s2647 + $0xdc] sm:$0xf]
    %v2704 = vld [vmem:[%s2647 + $0xe0] sm:$0xf]
    %v2705 = vld [vmem:[%s2647 + $0xe4] sm:$0xf]
    %v2706 = vld [vmem:[%s2647 + $0xe8] sm:$0xf]
    %v2707 = vld [vmem:[%s2647 + $0xec] sm:$0xf]
    %v2708 = vld [vmem:[%s2647 + $0xf0] sm:$0xf]
    %v2709 = vld [vmem:[%s2647 + $0xf4] sm:$0xf]
    %v2710 = vld [vmem:[%s2647 + $0xf8] sm:$0xf]
    %v2711 = vld [vmem:[%s2647 + $0xfc] sm:$0xf]
    %v2712 = vld [vmem:[%s2647 + $0x100] sm:$0xf]
    %v2713 = vld [vmem:[%s2647 + $0x104] sm:$0xf]
    %v2714 = vld [vmem:[%s2647 + $0x108] sm:$0xf]
    %v2715 = vld [vmem:[%s2647 + $0x10c] sm:$0xf]
    %v2716 = vld [vmem:[%s2647 + $0x110] sm:$0xf]
    %v2717 = vld [vmem:[%s2647 + $0x114] sm:$0xf]
    %v2718 = vld [vmem:[%s2647 + $0x118] sm:$0xf]
    %v2719 = vld [vmem:[%s2647 + $0x11c] sm:$0xf]
    %v2720 = vld [vmem:[%s2647 + $0x120] sm:$0xf]
    %v2721 = vld [vmem:[%s2647 + $0x124] sm:$0xf]
    %v2722 = vld [vmem:[%s2647 + $0x128] sm:$0xf]
    %v2723 = vld [vmem:[%s2647 + $0x12c] sm:$0xf]
    %v2724 = vld [vmem:[%s2647 + $0x130] sm:$0xf]
    %v2725 = vld [vmem:[%s2647 + $0x134] sm:$0xf]
    %v2726 = vld [vmem:[%s2647 + $0x138] sm:$0xf]
    %v2727 = vld [vmem:[%s2647 + $0x13c] sm:$0xf]
    %v2808 = vunpack.c.l.b16 %v2648
    %v2809 = vunpack.c.l.b16 %v2649
    %v2810 = vunpack.c.l.b16 %v2650
    %v2811 = vunpack.c.l.b16 %v2651
    %v2812 = vunpack.c.l.b16 %v2652
    %v2813 = vunpack.c.l.b16 %v2653
    %v2814 = vunpack.c.l.b16 %v2654
    %v2815 = vunpack.c.l.b16 %v2655
    %v2816 = vunpack.c.l.b16 %v2656
    %v2817 = vunpack.c.l.b16 %v2657
    %v2818 = vunpack.c.l.b16 %v2658
    %v2819 = vunpack.c.l.b16 %v2659
    %v2820 = vunpack.c.l.b16 %v2660
    %v2821 = vunpack.c.l.b16 %v2661
    %v2822 = vunpack.c.l.b16 %v2662
    %v2823 = vunpack.c.l.b16 %v2663
    %v2824 = vunpack.c.l.b16 %v2664
    %v2825 = vunpack.c.l.b16 %v2665
    %v2826 = vunpack.c.l.b16 %v2666
    %v2827 = vunpack.c.l.b16 %v2667
    %v2828 = vunpack.c.l.b16 %v2668
    %v2829 = vunpack.c.l.b16 %v2669
    %v2830 = vunpack.c.l.b16 %v2670
    %v2831 = vunpack.c.l.b16 %v2671
    %v2832 = vunpack.c.l.b16 %v2672
    %v2833 = vunpack.c.l.b16 %v2673
    %v2834 = vunpack.c.l.b16 %v2674
    %v2835 = vunpack.c.l.b16 %v2675
    %v2836 = vunpack.c.l.b16 %v2676
    %v2837 = vunpack.c.l.b16 %v2677
    %v2838 = vunpack.c.l.b16 %v2678
    %v2839 = vunpack.c.l.b16 %v2679
    %v2840 = vunpack.c.l.b16 %v2680
    %v2841 = vunpack.c.l.b16 %v2681
    %v2842 = vunpack.c.l.b16 %v2682
    %v2843 = vunpack.c.l.b16 %v2683
    %v2844 = vunpack.c.l.b16 %v2684
    %v2845 = vunpack.c.l.b16 %v2685
    %v2846 = vunpack.c.l.b16 %v2686
    %v2847 = vunpack.c.l.b16 %v2687
    %v2848 = vunpack.c.l.b16 %v2688
    %v2849 = vunpack.c.l.b16 %v2689
    %v2850 = vunpack.c.l.b16 %v2690
    %v2851 = vunpack.c.l.b16 %v2691
    %v2852 = vunpack.c.l.b16 %v2692
    %v2853 = vunpack.c.l.b16 %v2693
    %v2854 = vunpack.c.l.b16 %v2694
    %v2855 = vunpack.c.l.b16 %v2695
    %v2856 = vunpack.c.l.b16 %v2696
    %v2857 = vunpack.c.l.b16 %v2697
    %v2858 = vunpack.c.l.b16 %v2698
    %v2859 = vunpack.c.l.b16 %v2699
    %v2860 = vunpack.c.l.b16 %v2700
    %v2861 = vunpack.c.l.b16 %v2701
    %v2862 = vunpack.c.l.b16 %v2702
    %v2863 = vunpack.c.l.b16 %v2703
    %v2864 = vunpack.c.l.b16 %v2704
    %v2865 = vunpack.c.l.b16 %v2705
    %v2866 = vunpack.c.l.b16 %v2706
    %v2867 = vunpack.c.l.b16 %v2707
    %v2868 = vunpack.c.l.b16 %v2708
    %v2869 = vunpack.c.l.b16 %v2709
    %v2870 = vunpack.c.l.b16 %v2710
    %v2871 = vunpack.c.l.b16 %v2711
    %v2872 = vunpack.c.l.b16 %v2712
    %v2873 = vunpack.c.l.b16 %v2713
    %v2874 = vunpack.c.l.b16 %v2714
    %v2875 = vunpack.c.l.b16 %v2715
    %v2876 = vunpack.c.l.b16 %v2716
    %v2877 = vunpack.c.l.b16 %v2717
    %v2878 = vunpack.c.l.b16 %v2718
    %v2879 = vunpack.c.l.b16 %v2719
    %v2880 = vunpack.c.l.b16 %v2720
    %v2881 = vunpack.c.l.b16 %v2721
    %v2882 = vunpack.c.l.b16 %v2722
    %v2883 = vunpack.c.l.b16 %v2723
    %v2884 = vunpack.c.l.b16 %v2724
    %v2885 = vunpack.c.l.b16 %v2725
    %v2886 = vunpack.c.l.b16 %v2726
    %v2887 = vunpack.c.l.b16 %v2727
    %v2888 = vpack.c.b16 %v2809, %v2808
    %v2889 = vpack.c.b16 %v2811, %v2810
    %v2890 = vpack.c.b16 %v2813, %v2812
    %v2891 = vpack.c.b16 %v2815, %v2814
    %v2892 = vpack.c.b16 %v2817, %v2816
    %v2893 = vpack.c.b16 %v2819, %v2818
    %v2894 = vpack.c.b16 %v2821, %v2820
    %v2895 = vpack.c.b16 %v2823, %v2822
    %v2896 = vpack.c.b16 %v2825, %v2824
    %v2897 = vpack.c.b16 %v2827, %v2826
    %v2898 = vpack.c.b16 %v2829, %v2828
    %v2899 = vpack.c.b16 %v2831, %v2830
    %v2900 = vpack.c.b16 %v2833, %v2832
    %v2901 = vpack.c.b16 %v2835, %v2834
    %v2902 = vpack.c.b16 %v2837, %v2836
    %v2903 = vpack.c.b16 %v2839, %v2838
    %v2904 = vpack.c.b16 %v2841, %v2840
    %v2905 = vpack.c.b16 %v2843, %v2842
    %v2906 = vpack.c.b16 %v2845, %v2844
    %v2907 = vpack.c.b16 %v2847, %v2846
    %v2908 = vpack.c.b16 %v2849, %v2848
    %v2909 = vpack.c.b16 %v2851, %v2850
    %v2910 = vpack.c.b16 %v2853, %v2852
    %v2911 = vpack.c.b16 %v2855, %v2854
    %v2912 = vpack.c.b16 %v2857, %v2856
    %v2913 = vpack.c.b16 %v2859, %v2858
    %v2914 = vpack.c.b16 %v2861, %v2860
    %v2915 = vpack.c.b16 %v2863, %v2862
    %v2916 = vpack.c.b16 %v2865, %v2864
    %v2917 = vpack.c.b16 %v2867, %v2866
    %v2918 = vpack.c.b16 %v2869, %v2868
    %v2919 = vpack.c.b16 %v2871, %v2870
    %v2920 = vpack.c.b16 %v2873, %v2872
    %v2921 = vpack.c.b16 %v2875, %v2874
    %v2922 = vpack.c.b16 %v2877, %v2876
    %v2923 = vpack.c.b16 %v2879, %v2878
    %v2924 = vpack.c.b16 %v2881, %v2880
    %v2925 = vpack.c.b16 %v2883, %v2882
    %v2926 = vpack.c.b16 %v2885, %v2884
    %v2927 = vpack.c.b16 %v2887, %v2886
    %2968 = vmatpush.bf16.msra.mxu0 %v2895
    %2969 = vmatpush.bf16.msra.mxu0 %v2894
    %2970 = vmatpush.bf16.msra.mxu0 %v2893
    %2971 = vmatpush.bf16.msra.mxu0 %v2892
    %2972 = vmatpush.bf16.msra.mxu0 %v2891
    %2973 = vmatpush.bf16.msra.mxu0 %v2890
    %2974 = vmatpush.bf16.msra.mxu0 %v2889
    %2975 = vmatpush.bf16.msra.mxu0 %v2888
    %2976 = vmatmul.bf16.gmra.mxu0 %v2632
    %v2977 = vpop.f32.mrf.mxu0
    %v2978 = vadd.f32 0.0, %v2977
    %v2979 = vpop.f32.mrf.mxu0
    %v2980 = vadd.f32 0.0, %v2979
    %2981 = vmatmul.bf16.gmra.mxu0 %v2637
    %v2982 = vpop.f32.mrf.mxu0
    %v2983 = vadd.f32 0.0, %v2982
    %v2984 = vpop.f32.mrf.mxu0
    %2985 = vmatmul.bf16.gmra.mxu0 %v2642
    %v2986 = vpop.f32.mrf.mxu0
    %v2987 = vadd.f32 0.0, %v2986
    %v2988 = vpop.f32.mrf.mxu0
    %v2989 = vadd.f32 0.0, %v2988
    %2990 = vdwg.mxu0
    %2991 = vmatpush.bf16.msra.mxu0 %v2903
    %2992 = vmatpush.bf16.msra.mxu0 %v2902
    %2993 = vmatpush.bf16.msra.mxu0 %v2901
    %2994 = vmatpush.bf16.msra.mxu0 %v2900
    %2995 = vmatpush.bf16.msra.mxu0 %v2899
    %2996 = vmatpush.bf16.msra.mxu0 %v2898
    %2997 = vmatpush.bf16.msra.mxu0 %v2897
    %2998 = vmatpush.bf16.msra.mxu0 %v2896
    %2999 = vmatmul.bf16.gmra.mxu0 %v2633
    %v3000 = vpop.f32.mrf.mxu0
    %v3001 = vadd.f32 %v2978, %v3000
    %v3002 = vpop.f32.mrf.mxu0
    %v3003 = vadd.f32 %v2980, %v3002
    %3004 = vmatmul.bf16.gmra.mxu0 %v2638
    %v3005 = vpop.f32.mrf.mxu0
    %v3006 = vadd.f32 %v2983, %v3005
    %v3007 = vpop.f32.mrf.mxu0
    %3008 = vmatmul.bf16.gmra.mxu0 %v2643
    %v3009 = vpop.f32.mrf.mxu0
    %v3010 = vadd.f32 %v2987, %v3009
    %v3011 = vpop.f32.mrf.mxu0
    %v3012 = vadd.f32 %v2989, %v3011
    %3013 = vdwg.mxu0
    %3014 = vmatpush.bf16.msra.mxu0 %v2911
    %3015 = vmatpush.bf16.msra.mxu0 %v2910
    %3016 = vmatpush.bf16.msra.mxu0 %v2909
    %3017 = vmatpush.bf16.msra.mxu0 %v2908
    %3018 = vmatpush.bf16.msra.mxu0 %v2907
    %3019 = vmatpush.bf16.msra.mxu0 %v2906
    %3020 = vmatpush.bf16.msra.mxu0 %v2905
    %3021 = vmatpush.bf16.msra.mxu0 %v2904
    %3022 = vmatmul.bf16.gmra.mxu0 %v2634
    %v3023 = vpop.f32.mrf.mxu0
    %v3024 = vadd.f32 %v3001, %v3023
    %v3025 = vpop.f32.mrf.mxu0
    %v3026 = vadd.f32 %v3003, %v3025
    %3027 = vmatmul.bf16.gmra.mxu0 %v2639
    %v3028 = vpop.f32.mrf.mxu0
    %v3029 = vadd.f32 %v3006, %v3028
    %v3030 = vpop.f32.mrf.mxu0
    %3031 = vmatmul.bf16.gmra.mxu0 %v2644
    %v3032 = vpop.f32.mrf.mxu0
    %v3033 = vadd.f32 %v3010, %v3032
    %v3034 = vpop.f32.mrf.mxu0
    %v3035 = vadd.f32 %v3012, %v3034
    %3036 = vdwg.mxu0
    %3037 = vmatpush.bf16.msra.mxu0 %v2919
    %3038 = vmatpush.bf16.msra.mxu0 %v2918
    %3039 = vmatpush.bf16.msra.mxu0 %v2917
    %3040 = vmatpush.bf16.msra.mxu0 %v2916
    %3041 = vmatpush.bf16.msra.mxu0 %v2915
    %3042 = vmatpush.bf16.msra.mxu0 %v2914
    %3043 = vmatpush.bf16.msra.mxu0 %v2913
    %3044 = vmatpush.bf16.msra.mxu0 %v2912
    %3045 = vmatmul.bf16.gmra.mxu0 %v2635
    %v3046 = vpop.f32.mrf.mxu0
    %v3047 = vadd.f32 %v3024, %v3046
    %v3048 = vpop.f32.mrf.mxu0
    %v3049 = vadd.f32 %v3026, %v3048
    %3050 = vmatmul.bf16.gmra.mxu0 %v2640
    %v3051 = vpop.f32.mrf.mxu0
    %v3052 = vadd.f32 %v3029, %v3051
    %v3053 = vpop.f32.mrf.mxu0
    %3054 = vmatmul.bf16.gmra.mxu0 %v2645
    %v3055 = vpop.f32.mrf.mxu0
    %v3056 = vadd.f32 %v3033, %v3055
    %v3057 = vpop.f32.mrf.mxu0
    %v3058 = vadd.f32 %v3035, %v3057
    %3059 = vdwg.mxu0
    %3060 = vmatpush.bf16.msra.mxu0 %v2927
    %3061 = vmatpush.bf16.msra.mxu0 %v2926
    %3062 = vmatpush.bf16.msra.mxu0 %v2925
    %3063 = vmatpush.bf16.msra.mxu0 %v2924
    %3064 = vmatpush.bf16.msra.mxu0 %v2923
    %3065 = vmatpush.bf16.msra.mxu0 %v2922
    %3066 = vmatpush.bf16.msra.mxu0 %v2921
    %3067 = vmatpush.bf16.msra.mxu0 %v2920
    %3068 = vmatmul.bf16.gmra.mxu0 %v2636
    %v3069 = vpop.f32.mrf.mxu0
    %v3070 = vadd.f32 %v3047, %v3069
    %v3071 = vpop.f32.mrf.mxu0
    %v3072 = vadd.f32 %v3049, %v3071
    %3073 = vmatmul.bf16.gmra.mxu0 %v2641
    %v3074 = vpop.f32.mrf.mxu0
    %v3075 = vadd.f32 %v3052, %v3074
    %v3076 = vpop.f32.mrf.mxu0
    %3077 = vmatmul.bf16.gmra.mxu0 %v2646
    %v3078 = vpop.f32.mrf.mxu0
    %v3079 = vadd.f32 %v3056, %v3078
    %v3080 = vpop.f32.mrf.mxu0
    %v3081 = vadd.f32 %v3058, %v3080
    %3082 = vdwg.mxu0
    %v3083 = vadd.f32 %v2597, %v3070
    %v3084 = vadd.f32 %v2598, %v3072
    %v3085 = vadd.f32 %v2599, %v3075
    %v3086 = vadd.f32 %v2600, %v3079
    %v3087 = vadd.f32 %v2601, %v3081
    %vm3093 = vcmask 1041408
    %v3094 = vrot.slane %v3083, 6
    %v3095 = vrot.slane %v3084, 6
    %v3096 = vsel %vm3093, %v3094, %v3095
    %v3097 = vrot.slane %v3085, 6
    %v3098 = vsel %vm3093, %v3095, %v3097
    %v3099 = vrot.slane %v3086, 6
    %v3100 = vrot.slane %v3087, 6
    %v3101 = vsel %vm3093, %v3099, %v3100
    %v3105 = vmax.f32 %v3083, %v3096
    %v3106 = vmax.f32 %v3084, %v3098
    %v3107 = vmax.f32 %v3086, %v3101
    %vm3111 = vcmask 1046528
    %v3112 = vrot.slane %v3105, 1
    %v3113 = vrot.slane %v3106, 1
    %v3114 = vsel %vm3111, %v3112, %v3113
    %v3115 = vrot.slane %v3107, 1
    %v3118 = vmax.f32 %v3105, %v3114
    %v3119 = vmax.f32 %v3107, %v3115
    %v3121 = vrot.slane %v3119, 3
    %vm3123 = vcmask 1040384
    %v3124 = vsel %vm3123, %v3118, %v3121
    %v3125 = vld [vmem:[%s4] sm:$0x1]
    %v3127 = vperm.slane %v3125, 0
    %v3129 = vadd.f32 %v3124, %v3127
    %v3130 = vmax.f32 %v3129, 0.0
    %v3131 = vld [vmem:[%s5] sm:$0xff]
    %v3132 = vld [vmem:[%s5 + $0x8] sm:$0xff]
    %v3133 = vld [vmem:[%s5 + $0x10] sm:$0xff]
    %v3134 = vld [vmem:[%s5 + $0x18] sm:$0xff]
    %v3135 = vld [vmem:[%s5 + $0x20] sm:$0xff]
    %v3136 = vld [vmem:[%s5 + $0x28] sm:$0xff]
    %v3137 = vld [vmem:[%s5 + $0x30] sm:$0xff]
    %v3138 = vld [vmem:[%s5 + $0x38] sm:$0xff]
    %v3139 = vld [vmem:[%s5 + $0x40] sm:$0xff]
    %v3140 = vld [vmem:[%s5 + $0x48] sm:$0xff]
    %v3141 = vld [vmem:[%s5 + $0x50] sm:$0xff]
    %v3142 = vld [vmem:[%s5 + $0x58] sm:$0xff]
    %v3143 = vld [vmem:[%s5 + $0x60] sm:$0xff]
    %v3144 = vld [vmem:[%s5 + $0x68] sm:$0xff]
    %v3145 = vld [vmem:[%s5 + $0x70] sm:$0xff]
    %v3146 = vld [vmem:[%s5 + $0x78] sm:$0xff]
    %v3147 = vld [vmem:[%s5 + $0x80] sm:$0xff]
    %v3148 = vld [vmem:[%s5 + $0x88] sm:$0xff]
    %v3149 = vld [vmem:[%s5 + $0x90] sm:$0xff]
    %v3150 = vld [vmem:[%s5 + $0x98] sm:$0xff]
    %v3151 = vld [vmem:[%s5 + $0xa0] sm:$0xff]
    %v3152 = vld [vmem:[%s5 + $0xa8] sm:$0xff]
    %v3153 = vld [vmem:[%s5 + $0xb0] sm:$0xff]
    %v3154 = vld [vmem:[%s5 + $0xb8] sm:$0xff]
    %v3155 = vld [vmem:[%s5 + $0xc0] sm:$0xff]
    %v3156 = vld [vmem:[%s5 + $0xc8] sm:$0xff]
    %v3157 = vld [vmem:[%s5 + $0xd0] sm:$0xff]
    %v3158 = vld [vmem:[%s5 + $0xd8] sm:$0xff]
    %v3159 = vld [vmem:[%s5 + $0xe0] sm:$0xff]
    %v3160 = vld [vmem:[%s5 + $0xe8] sm:$0xff]
    %v3161 = vld [vmem:[%s5 + $0xf0] sm:$0xff]
    %v3162 = vld [vmem:[%s5 + $0xf8] sm:$0xff]
    %v3163 = vld [vmem:[%s6] sm:$0x3]
    %v3165 = vperm.slane %v3163, 0
    %v3166 = vperm.slane %v3163, 1
    %3169 = vmatpush.msra.mxu0 %v3161
    %3170 = vmatpush.msra.mxu0 %v3159
    %3171 = vmatpush.msra.mxu0 %v3157
    %3172 = vmatpush.msra.mxu0 %v3155
    %3173 = vmatpush.msra.mxu0 %v3153
    %3174 = vmatpush.msra.mxu0 %v3151
    %3175 = vmatpush.msra.mxu0 %v3149
    %3176 = vmatpush.msra.mxu0 %v3147
    %3177 = vmatpush.msra.mxu0 %v3145
    %3178 = vmatpush.msra.mxu0 %v3143
    %3179 = vmatpush.msra.mxu0 %v3141
    %3180 = vmatpush.msra.mxu0 %v3139
    %3181 = vmatpush.msra.mxu0 %v3137
    %3182 = vmatpush.msra.mxu0 %v3135
    %3183 = vmatpush.msra.mxu0 %v3133
    %3184 = vmatpush.msra.mxu0 %v3131
    %3185 = vmatmul.f32.gmra.mxu0 %v3130
    %v3186 = vpop.f32.mrf.mxu0
    %v3187 = vadd.f32 %v3165, %v3186
    %3188 = vdwg.mxu0
    %3189 = vmatpush.msra.mxu0 %v3162
    %3190 = vmatpush.msra.mxu0 %v3160
    %3191 = vmatpush.msra.mxu0 %v3158
    %3192 = vmatpush.msra.mxu0 %v3156
    %3193 = vmatpush.msra.mxu0 %v3154
    %3194 = vmatpush.msra.mxu0 %v3152
    %3195 = vmatpush.msra.mxu0 %v3150
    %3196 = vmatpush.msra.mxu0 %v3148
    %3197 = vmatpush.msra.mxu0 %v3146
    %3198 = vmatpush.msra.mxu0 %v3144
    %3199 = vmatpush.msra.mxu0 %v3142
    %3200 = vmatpush.msra.mxu0 %v3140
    %3201 = vmatpush.msra.mxu0 %v3138
    %3202 = vmatpush.msra.mxu0 %v3136
    %3203 = vmatpush.msra.mxu0 %v3134
    %3204 = vmatpush.msra.mxu0 %v3132
    %3205 = vmatmul.f32.gmra.mxu0 %v3130
    %v3206 = vpop.f32.mrf.mxu0
    %v3207 = vadd.f32 %v3166, %v3206
    %3208 = vdwg.mxu0
    %v3209 = vmax.f32 %v3187, 0.0
    %v3210 = vmax.f32 %v3207, 0.0
    %v3213 = vrot.slane %v3210, 6
    %v3214 = vsel %vm3093, %v3209, %v3213
    %3216 = vst [vmem:[#allocation5] sm:$0xf] %v3214
    // Predicated region
    $region45: #{cnn_forward.1} parent=1 // pred_check
      _
    $region46: #{cnn_forward.1} parent=1 // pred_check_branch
      %3218 = sbr.rel (0) target = $region48
    $region47: #{cnn_forward.1} parent=1 // pred_region
      %3220 = vsyncadd [#allocation6], 0
      %s3222 = sshll.u32 [#allocation5], 4
      %s3223 = int_to_ptr.vmem [resolvable:$true] %s3222
      %s3224 = sshll.u32 %s7, 4
      %s3225 = int_to_ptr.hbm [resolvable:$true] %s3224
      %3227 = dma.vmem_to_hbm [thread:$0]  %s3223, 64, %s3225, [#allocation6]
    $region48: #{cnn_forward.1} parent=1 // pred_fallthru
      _
    // Predicated region
    $region49: #{cnn_forward.1} parent=1 // pred_check
      _
    $region50: #{cnn_forward.1} parent=1 // pred_check_branch
      %3229 = sbr.rel (0) target = $region52
    $region51: #{cnn_forward.1} parent=1 // pred_region
      %3231 = dma.done [#allocation6], 64
    $region52: #{cnn_forward.1} parent=1 // pred_fallthru
      _
    %3232 = vsyncpa [#allocation6], 1
  %3233 = vsyncmov [#allocation4]
  %s3234 = vpop.sfrf %3233
  %p3235 = scmp.eq.s32.totalorder %s3234, 0
  %p3236 = pneg %p3235
  %3238 = shalt.err (%p3236)

</llo_original>
